<compile_context>
chip_gen: v7x
topology: tpu7x:2x2x1
jax: 0.10.0
libtpu: 0.0.40
codegen_flags: <defaults>
</compile_context>

<pallas_src>
import functools

import jax
import jax.numpy as jnp
from jax import lax
from jax.experimental import pallas as pl
from jax.experimental.pallas import tpu as pltpu

_INV_SQRT2 = 0.7071067811865476


# --------------------------- in-kernel helpers ------------------------------ #

def _layernorm(x, g, b, eps):
    # x: (M, C) f32; g, b: (1, C)
    mu = jnp.mean(x, axis=-1, keepdims=True)
    var = jnp.mean(jnp.square(x - mu), axis=-1, keepdims=True)
    return (x - mu) * lax.rsqrt(var + eps) * g + b


def _rotate_every_two(x):
    # x: (M, D), D even. result[2k] = -x[2k+1]; result[2k+1] = x[2k].
    # XLU rolls + VPU select; pairs never straddle the circular wrap, so wrapped
    # elements are never selected.
    d = x.shape[-1]
    col = lax.broadcasted_iota(jnp.int32, x.shape, 1)
    is_even = (col & 1) == 0
    x_next = pltpu.roll(x, d - 1, 1)   # x[(i+1) % d]
    x_prev = pltpu.roll(x, 1, 1)       # x[(i-1) % d]
    return jnp.where(is_even, -x_next, x_prev)


def _dwconv3x3(x, w9, b1, tap_mask, W):
    # Depthwise 3x3 conv, stride 1, padding 1, per image.
    # x: (M, Cc) f32, rows laid out (image, h, w) row-major.
    # w9: (9, Cc); b1: (1, Cc); tap_mask: (M, 9) f32 boundary-validity multipliers.
    # Implemented as 9 shift-taps via XLU sublane rolls — no padded VMEM scratch,
    # no buffer zeroing, no unaligned window reads.  The roll wraps across image
    # boundaries, but those rows are exactly the ones masked to zero.
    M, Cc = x.shape
    acc = jnp.zeros((M, Cc), jnp.float32)
    t = 0
    for di in (-1, 0, 1):
        for dj in (-1, 0, 1):
            k = di * W + dj
            tap = w9[t:t + 1, :]                         # (1, Cc)
            if k == 0:
                acc = acc + x * tap                      # center tap: always valid
            else:
                shifted = pltpu.roll(x, (-k) % M, 0)     # shifted[n] = x[(n + k) % M]
                acc = acc + (shifted * tap_mask[:, t:t + 1]) * tap
            t += 1
    return acc + b1


# ------------------------------ fused kernel -------------------------------- #

def _block_kernel(x_ref, mask_ref, sin_ref, cos_ref,
                  pos_w_ref, pos_b_ref,
                  ln1_g_ref, ln1_b_ref,
                  qk_w_ref, qk_b_ref,
                  ln2_g_ref, ln2_b_ref,
                  fc1_w_ref, fc1_b_ref,
                  dw_w_ref, dw_b_ref,
                  fc2_w_ref, fc2_b_ref,
                  o_ref,
                  *, heads, eps, scale):
    bblk, H, W, C = x_ref.shape
    N = H * W
    M = bblk * N
    Dh = C // heads

    tap_mask = mask_ref[...]                                         # (M, 9) f32
    x = x_ref[...].astype(jnp.float32).reshape(M, C)                 # (M, C)

    # ---- x = x + pos(x): depthwise 3x3 ----
    x = x + _dwconv3x3(x, pos_w_ref[...], pos_b_ref[...], tap_mask, W)

    # ---- attention branch: LN1 -> q,k projection -> theta-shift -> per-head SDPA ----
    xn = _layernorm(x, ln1_g_ref[...], ln1_b_ref[...], eps)
    qk = jnp.dot(xn.astype(jnp.bfloat16), qk_w_ref[...],
                 preferred_element_type=jnp.float32) + qk_b_ref[...]  # (M, 2C) f32
    # theta_shift on the whole q|k slab at once (sin/cos pre-tiled over heads,
    # q|k halves and block_b images in the wrapper; pairs never cross Dh bounds).
    qk = qk * cos_ref[...] + _rotate_every_two(qk) * sin_ref[...]
    q_bf = (qk[:, 0:C] * scale).astype(jnp.bfloat16)   # fold scale into q (M*Dh, not N*N)
    k_bf = qk[:, C:2 * C].astype(jnp.bfloat16)

    img_outs = []
    for b in range(bblk):                     # attention is per-image (no cross-image mix)
        r0 = b * N
        head_outs = []
        for h in range(heads):
            c0 = h * Dh
            qh = q_bf[r0:r0 + N, c0:c0 + Dh]
            kh = k_bf[r0:r0 + N, c0:c0 + Dh]
            s = lax.dot_general(qh, kh, (((1,), (1,)), ((), ())),
                                preferred_element_type=jnp.float32)   # (N, N) f32
            s = s - jnp.max(s, axis=-1, keepdims=True)
            p = jnp.exp(s)
            inv = pl.reciprocal(jnp.sum(p, axis=-1, keepdims=True), approx=True)
            # NOTE: the reference multiplies attention weights by (theta-shifted) K,
            # not V — reproduced as-is.  Output kept in registers, no VMEM scratch.
            head_outs.append(jnp.dot((p * inv).astype(jnp.bfloat16), kh,
                                     preferred_element_type=jnp.float32))
        img_outs.append(jnp.concatenate(head_outs, axis=-1))          # (N, C)
    x = x + jnp.concatenate(img_outs, axis=0)   # DropPath(0.0) == identity

    # ---- FFN branch: LN2 -> fc1 + exact GELU -> dwconv residual -> fc2 ----
    xn2 = _layernorm(x, ln2_g_ref[...], ln2_b_ref[...], eps)
    h1 = jnp.dot(xn2.astype(jnp.bfloat16), fc1_w_ref[...],
                 preferred_element_type=jnp.float32) + fc1_b_ref[...]
    h1 = 0.5 * h1 * (1.0 + lax.erf(h1 * _INV_SQRT2))                  # F.gelu (erf), f32
    h2 = h1 + _dwconv3x3(h1, dw_w_ref[...], dw_b_ref[...], tap_mask, W)
    y = jnp.dot(h2.astype(jnp.bfloat16), fc2_w_ref[...],
                preferred_element_type=jnp.float32) + fc2_b_ref[...]

    o_ref[...] = (x + y).reshape(bblk, H, W, C).astype(o_ref.dtype)


# ------------------------------ host wrapper -------------------------------- #

def sparse_attention_block(x, sin, cos, params, *, block_b=2):
    """x: (B, H, W, C); sin/cos: (H, W, Dh).  One fused pallas_call, grid=(B/block_b,)."""
    B, H, W, C = x.shape
    heads = params['heads']
    Dh = C // heads
    N = H * W
    Fd = params['fc1_w'].shape[1]
    scale = float(Dh) ** -0.5
    if B % block_b != 0:
        block_b = 1
    M = block_b * N

    # Tiny constant preprocessing (no activation-sized XLA work):
    # sin/cos tiled over q|k halves, heads, and the block_b images -> (M, 2C).
    sin_t = jnp.tile(sin.reshape(N, Dh).astype(jnp.float32), (block_b, 2 * heads))
    cos_t = jnp.tile(cos.reshape(N, Dh).astype(jnp.float32), (block_b, 2 * heads))

    # Per-tap boundary-validity masks for the roll-based depthwise convs (M, 9).
    n = jnp.arange(N, dtype=jnp.int32)
    hh, ww = n // W, n % W
    masks = []
    for di in (-1, 0, 1):
        for dj in (-1, 0, 1):
            ok = (hh + di >= 0) & (hh + di < H) & (ww + dj >= 0) & (ww + dj < W)
            masks.append(ok.astype(jnp.float32))
    tap_mask = jnp.tile(jnp.stack(masks, axis=-1), (block_b, 1))

    # bf16 weights for MXU operands (f32 accumulation inside the kernel).
    # The V projection never reaches the output (reference uses K as the value),
    # so only the q|k columns of to_qkv are needed.
    qk_w = params['qkv_w'][:, :2 * C].astype(jnp.bfloat16)
    qk_b = params['qkv_b'][:, :2 * C]
    fc1_w = params['fc1_w'].astype(jnp.bfloat16)
    fc2_w = params['fc2_w'].astype(jnp.bfloat16)

    def full(shape):
        return pl.BlockSpec(shape, lambda b, _n=len(shape): (0,) * _n)

    kernel = functools.partial(_block_kernel, heads=heads, eps=1e-6, scale=scale)
    return pl.pallas_call(
        kernel,
        out_shape=jax.ShapeDtypeStruct((B, H, W, C), x.dtype),
        grid=(B // block_b,),
        in_specs=[
            pl.BlockSpec((block_b, H, W, C), lambda b: (b, 0, 0, 0)),
            full((M, 9)),
            full((M, 2 * C)), full((M, 2 * C)),
            full((9, C)), full((1, C)),
            full((1, C)), full((1, C)),
            full((C, 2 * C)), full((1, 2 * C)),
            full((1, C)), full((1, C)),
            full((C, Fd)), full((1, Fd)),
            full((9, Fd)), full((1, Fd)),
            full((Fd, C)), full((1, C)),
        ],
        out_specs=pl.BlockSpec((block_b, H, W, C), lambda b: (b, 0, 0, 0)),
        compiler_params=pltpu.CompilerParams(
            dimension_semantics=("parallel",),
            vmem_limit_bytes=32 * 1024 * 1024),
    )(x, tap_mask, sin_t, cos_t,
      params['pos_w'], params['pos_b'],
      params['ln1_g'], params['ln1_b'],
      qk_w, qk_b,
      params['ln2_g'], params['ln2_b'],
      fc1_w, params['fc1_b'],
      params['dw_w'], params['dw_b'],
      fc2_w, params['fc2_b'])


# ---------------------------------- main ------------------------------------ #

if __name__ == "__main__":
    B, H, W = 4, 8, 8
    embed_dim, heads, ffn_dim = 64, 2, 128
    Dh = embed_dim // heads

    key = jax.random.PRNGKey(0)
    keys = jax.random.split(key, 12)

    def init(k, shape, s=0.02):
        return s * jax.random.normal(k, shape, jnp.float32)

    params = {
        'heads': heads,
        # pos: DWConv2d(embed_dim, 3, 1, 1)
        'pos_w': init(keys[0], (9, embed_dim)),
        'pos_b': init(keys[1], (1, embed_dim)),
        # attentionLayerNorm
        'ln1_g': jnp.ones((1, embed_dim), jnp.float32),
        'ln1_b': jnp.zeros((1, embed_dim), jnp.float32),
        # to_qkv: Conv2d(embed_dim, 3*embed_dim, 1) stored as a (C, 3C) linear
        'qkv_w': init(keys[2], (embed_dim, 3 * embed_dim)),
        'qkv_b': init(keys[3], (1, 3 * embed_dim)),
        # final_layer_norm
        'ln2_g': jnp.ones((1, embed_dim), jnp.float32),
        'ln2_b': jnp.zeros((1, embed_dim), jnp.float32),
        # FFN
        'fc1_w': init(keys[4], (embed_dim, ffn_dim)),
        'fc1_b': init(keys[5], (1, ffn_dim)),
        'dw_w': init(keys[6], (9, ffn_dim)),     # DWConv2d(ffn_dim, 3, 1, 1)
        'dw_b': init(keys[7], (1, ffn_dim)),
        'fc2_w': init(keys[8], (ffn_dim, embed_dim)),
        'fc2_b': init(keys[9], (1, embed_dim)),
    }

    x = jax.random.normal(keys[10], (B, H, W, embed_dim), jnp.float32)

    # deterministic rel_pos (sin, cos) of shape (H, W, Dh)
    pos = jnp.arange(H * W, dtype=jnp.float32).reshape(H, W)
    inv_freq = 1.0 / (10000.0 ** (jnp.arange(0, Dh, 2, dtype=jnp.float32) / Dh))
    ang = pos[..., None] * inv_freq            # (H, W, Dh//2)
    ang = jnp.repeat(ang, 2, axis=-1)          # (H, W, Dh)
    sin_r, cos_r = jnp.sin(ang), jnp.cos(ang)

    out = sparse_attention_block(x, sin_r, cos_r, params)
    jax.block_until_ready(out)
    assert out.shape == (B, H, W, embed_dim)
    assert bool(jnp.all(jnp.isfinite(out)))
    print("KERNEL_OK")
</pallas_src>

<mosaic_0001>
module attributes {stable_mosaic.version = 11 : i64} {
  func.func @_block_kernel(%arg0: i32, %arg1: memref<2x8x8x64xf32, #tpu.memory_space<vmem>>, %arg2: memref<128x9xf32, #tpu.memory_space<vmem>>, %arg3: memref<128x128xf32, #tpu.memory_space<vmem>>, %arg4: memref<128x128xf32, #tpu.memory_space<vmem>>, %arg5: memref<9x64xf32, #tpu.memory_space<vmem>>, %arg6: memref<1x64xf32, #tpu.memory_space<vmem>>, %arg7: memref<1x64xf32, #tpu.memory_space<vmem>>, %arg8: memref<1x64xf32, #tpu.memory_space<vmem>>, %arg9: memref<64x128xbf16, #tpu.memory_space<vmem>>, %arg10: memref<1x128xf32, #tpu.memory_space<vmem>>, %arg11: memref<1x64xf32, #tpu.memory_space<vmem>>, %arg12: memref<1x64xf32, #tpu.memory_space<vmem>>, %arg13: memref<64x128xbf16, #tpu.memory_space<vmem>>, %arg14: memref<1x128xf32, #tpu.memory_space<vmem>>, %arg15: memref<9x128xf32, #tpu.memory_space<vmem>>, %arg16: memref<1x128xf32, #tpu.memory_space<vmem>>, %arg17: memref<128x64xbf16, #tpu.memory_space<vmem>>, %arg18: memref<1x64xf32, #tpu.memory_space<vmem>>, %arg19: memref<2x8x8x64xf32, #tpu.memory_space<vmem>>) attributes {dimension_semantics = [#tpu.dimension_semantics<parallel>], iteration_bounds = array<i64: 2>, scalar_prefetch = 0 : i64, scratch_operands = 0 : i64, tpu.core_type = #tpu.core_type<tc>, window_params = [{transform_indices = @transform_0, window_bounds = array<i64: 2, 8, 8, 64>}, {pipeline_mode = #tpu.pipeline_mode<synchronous>, transform_indices = @transform_1, window_bounds = array<i64: 128, 9>}, {pipeline_mode = #tpu.pipeline_mode<synchronous>, transform_indices = @transform_2, window_bounds = array<i64: 128, 128>}, {pipeline_mode = #tpu.pipeline_mode<synchronous>, transform_indices = @transform_3, window_bounds = array<i64: 128, 128>}, {pipeline_mode = #tpu.pipeline_mode<synchronous>, transform_indices = @transform_4, window_bounds = array<i64: 9, 64>}, {pipeline_mode = #tpu.pipeline_mode<synchronous>, transform_indices = @transform_5, window_bounds = array<i64: 1, 64>}, {pipeline_mode = #tpu.pipeline_mode<synchronous>, transform_indices = @transform_6, window_bounds = array<i64: 1, 64>}, {pipeline_mode = #tpu.pipeline_mode<synchronous>, transform_indices = @transform_7, window_bounds = array<i64: 1, 64>}, {pipeline_mode = #tpu.pipeline_mode<synchronous>, transform_indices = @transform_8, window_bounds = array<i64: 64, 128>}, {pipeline_mode = #tpu.pipeline_mode<synchronous>, transform_indices = @transform_9, window_bounds = array<i64: 1, 128>}, {pipeline_mode = #tpu.pipeline_mode<synchronous>, transform_indices = @transform_10, window_bounds = array<i64: 1, 64>}, {pipeline_mode = #tpu.pipeline_mode<synchronous>, transform_indices = @transform_11, window_bounds = array<i64: 1, 64>}, {pipeline_mode = #tpu.pipeline_mode<synchronous>, transform_indices = @transform_12, window_bounds = array<i64: 64, 128>}, {pipeline_mode = #tpu.pipeline_mode<synchronous>, transform_indices = @transform_13, window_bounds = array<i64: 1, 128>}, {pipeline_mode = #tpu.pipeline_mode<synchronous>, transform_indices = @transform_14, window_bounds = array<i64: 9, 128>}, {pipeline_mode = #tpu.pipeline_mode<synchronous>, transform_indices = @transform_15, window_bounds = array<i64: 1, 128>}, {pipeline_mode = #tpu.pipeline_mode<synchronous>, transform_indices = @transform_16, window_bounds = array<i64: 128, 64>}, {pipeline_mode = #tpu.pipeline_mode<synchronous>, transform_indices = @transform_17, window_bounds = array<i64: 1, 64>}, {transform_indices = @transform_18, window_bounds = array<i64: 2, 8, 8, 64>}]} {
    %c0 = arith.constant 0 : index
    %c0_0 = arith.constant 0 : index
    %0 = vector.load %arg2[%c0, %c0_0] : memref<128x9xf32, #tpu.memory_space<vmem>>, vector<128x9xf32>
    %c0_1 = arith.constant 0 : index
    %c0_2 = arith.constant 0 : index
    %c0_3 = arith.constant 0 : index
    %c0_4 = arith.constant 0 : index
    %1 = vector.load %arg1[%c0_1, %c0_2, %c0_3, %c0_4] : memref<2x8x8x64xf32, #tpu.memory_space<vmem>>, vector<2x8x8x64xf32>
    %2 = vector.shape_cast %1 : vector<2x8x8x64xf32> to vector<128x64xf32>
    %c0_5 = arith.constant 0 : index
    %c0_6 = arith.constant 0 : index
    %3 = vector.load %arg5[%c0_5, %c0_6] : memref<9x64xf32, #tpu.memory_space<vmem>>, vector<9x64xf32>
    %c0_7 = arith.constant 0 : index
    %c0_8 = arith.constant 0 : index
    %4 = vector.load %arg6[%c0_7, %c0_8] : memref<1x64xf32, #tpu.memory_space<vmem>>, vector<1x64xf32>
    %cst = arith.constant 0.000000e+00 : f32
    %5 = vector.broadcast %cst : f32 to vector<128x64xf32>
    %6 = vector.extract_strided_slice %3 {offsets = [0, 0], sizes = [1, 64], strides = [1, 1]} : vector<9x64xf32> to vector<1x64xf32>
    %c9_i32 = arith.constant 9 : i32
    %7 = tpu.dynamic_rotate %2 by %c9_i32 dim 0 : vector<128x64xf32>, i32 -> vector<128x64xf32>
    %8 = vector.extract_strided_slice %0 {offsets = [0, 0], sizes = [128, 1], strides = [1, 1]} : vector<128x9xf32> to vector<128x1xf32>
    %9 = vector.broadcast %8 : vector<128x1xf32> to vector<128x64xf32>
    %10 = arith.mulf %7, %9 : vector<128x64xf32>
    %11 = vector.broadcast %6 : vector<1x64xf32> to vector<128x64xf32>
    %12 = arith.mulf %10, %11 : vector<128x64xf32>
    %13 = arith.addf %5, %12 : vector<128x64xf32>
    %14 = vector.extract_strided_slice %3 {offsets = [1, 0], sizes = [1, 64], strides = [1, 1]} : vector<9x64xf32> to vector<1x64xf32>
    %c8_i32 = arith.constant 8 : i32
    %15 = tpu.dynamic_rotate %2 by %c8_i32 dim 0 : vector<128x64xf32>, i32 -> vector<128x64xf32>
    %16 = vector.extract_strided_slice %0 {offsets = [0, 1], sizes = [128, 1], strides = [1, 1]} : vector<128x9xf32> to vector<128x1xf32>
    %17 = vector.broadcast %16 : vector<128x1xf32> to vector<128x64xf32>
    %18 = arith.mulf %15, %17 : vector<128x64xf32>
    %19 = vector.broadcast %14 : vector<1x64xf32> to vector<128x64xf32>
    %20 = arith.mulf %18, %19 : vector<128x64xf32>
    %21 = arith.addf %13, %20 : vector<128x64xf32>
    %22 = vector.extract_strided_slice %3 {offsets = [2, 0], sizes = [1, 64], strides = [1, 1]} : vector<9x64xf32> to vector<1x64xf32>
    %c7_i32 = arith.constant 7 : i32
    %23 = tpu.dynamic_rotate %2 by %c7_i32 dim 0 : vector<128x64xf32>, i32 -> vector<128x64xf32>
    %24 = vector.extract_strided_slice %0 {offsets = [0, 2], sizes = [128, 1], strides = [1, 1]} : vector<128x9xf32> to vector<128x1xf32>
    %25 = vector.broadcast %24 : vector<128x1xf32> to vector<128x64xf32>
    %26 = arith.mulf %23, %25 : vector<128x64xf32>
    %27 = vector.broadcast %22 : vector<1x64xf32> to vector<128x64xf32>
    %28 = arith.mulf %26, %27 : vector<128x64xf32>
    %29 = arith.addf %21, %28 : vector<128x64xf32>
    %30 = vector.extract_strided_slice %3 {offsets = [3, 0], sizes = [1, 64], strides = [1, 1]} : vector<9x64xf32> to vector<1x64xf32>
    %c1_i32 = arith.constant 1 : i32
    %31 = tpu.dynamic_rotate %2 by %c1_i32 dim 0 : vector<128x64xf32>, i32 -> vector<128x64xf32>
    %32 = vector.extract_strided_slice %0 {offsets = [0, 3], sizes = [128, 1], strides = [1, 1]} : vector<128x9xf32> to vector<128x1xf32>
    %33 = vector.broadcast %32 : vector<128x1xf32> to vector<128x64xf32>
    %34 = arith.mulf %31, %33 : vector<128x64xf32>
    %35 = vector.broadcast %30 : vector<1x64xf32> to vector<128x64xf32>
    %36 = arith.mulf %34, %35 : vector<128x64xf32>
    %37 = arith.addf %29, %36 : vector<128x64xf32>
    %38 = vector.extract_strided_slice %3 {offsets = [4, 0], sizes = [1, 64], strides = [1, 1]} : vector<9x64xf32> to vector<1x64xf32>
    %39 = vector.broadcast %38 : vector<1x64xf32> to vector<128x64xf32>
    %40 = arith.mulf %2, %39 : vector<128x64xf32>
    %41 = arith.addf %37, %40 : vector<128x64xf32>
    %42 = vector.extract_strided_slice %3 {offsets = [5, 0], sizes = [1, 64], strides = [1, 1]} : vector<9x64xf32> to vector<1x64xf32>
    %c127_i32 = arith.constant 127 : i32
    %43 = tpu.dynamic_rotate %2 by %c127_i32 dim 0 : vector<128x64xf32>, i32 -> vector<128x64xf32>
    %44 = vector.extract_strided_slice %0 {offsets = [0, 5], sizes = [128, 1], strides = [1, 1]} : vector<128x9xf32> to vector<128x1xf32>
    %45 = vector.broadcast %44 : vector<128x1xf32> to vector<128x64xf32>
    %46 = arith.mulf %43, %45 : vector<128x64xf32>
    %47 = vector.broadcast %42 : vector<1x64xf32> to vector<128x64xf32>
    %48 = arith.mulf %46, %47 : vector<128x64xf32>
    %49 = arith.addf %41, %48 : vector<128x64xf32>
    %50 = vector.extract_strided_slice %3 {offsets = [6, 0], sizes = [1, 64], strides = [1, 1]} : vector<9x64xf32> to vector<1x64xf32>
    %c121_i32 = arith.constant 121 : i32
    %51 = tpu.dynamic_rotate %2 by %c121_i32 dim 0 : vector<128x64xf32>, i32 -> vector<128x64xf32>
    %52 = vector.extract_strided_slice %0 {offsets = [0, 6], sizes = [128, 1], strides = [1, 1]} : vector<128x9xf32> to vector<128x1xf32>
    %53 = vector.broadcast %52 : vector<128x1xf32> to vector<128x64xf32>
    %54 = arith.mulf %51, %53 : vector<128x64xf32>
    %55 = vector.broadcast %50 : vector<1x64xf32> to vector<128x64xf32>
    %56 = arith.mulf %54, %55 : vector<128x64xf32>
    %57 = arith.addf %49, %56 : vector<128x64xf32>
    %58 = vector.extract_strided_slice %3 {offsets = [7, 0], sizes = [1, 64], strides = [1, 1]} : vector<9x64xf32> to vector<1x64xf32>
    %c120_i32 = arith.constant 120 : i32
    %59 = tpu.dynamic_rotate %2 by %c120_i32 dim 0 : vector<128x64xf32>, i32 -> vector<128x64xf32>
    %60 = vector.extract_strided_slice %0 {offsets = [0, 7], sizes = [128, 1], strides = [1, 1]} : vector<128x9xf32> to vector<128x1xf32>
    %61 = vector.broadcast %60 : vector<128x1xf32> to vector<128x64xf32>
    %62 = arith.mulf %59, %61 : vector<128x64xf32>
    %63 = vector.broadcast %58 : vector<1x64xf32> to vector<128x64xf32>
    %64 = arith.mulf %62, %63 : vector<128x64xf32>
    %65 = arith.addf %57, %64 : vector<128x64xf32>
    %66 = vector.extract_strided_slice %3 {offsets = [8, 0], sizes = [1, 64], strides = [1, 1]} : vector<9x64xf32> to vector<1x64xf32>
    %c119_i32 = arith.constant 119 : i32
    %67 = tpu.dynamic_rotate %2 by %c119_i32 dim 0 : vector<128x64xf32>, i32 -> vector<128x64xf32>
    %68 = vector.extract_strided_slice %0 {offsets = [0, 8], sizes = [128, 1], strides = [1, 1]} : vector<128x9xf32> to vector<128x1xf32>
    %69 = vector.broadcast %68 : vector<128x1xf32> to vector<128x64xf32>
    %70 = arith.mulf %67, %69 : vector<128x64xf32>
    %71 = vector.broadcast %66 : vector<1x64xf32> to vector<128x64xf32>
    %72 = arith.mulf %70, %71 : vector<128x64xf32>
    %73 = arith.addf %65, %72 : vector<128x64xf32>
    %74 = vector.broadcast %4 : vector<1x64xf32> to vector<128x64xf32>
    %75 = arith.addf %73, %74 : vector<128x64xf32>
    %76 = arith.addf %2, %75 : vector<128x64xf32>
    %c0_9 = arith.constant 0 : index
    %c0_10 = arith.constant 0 : index
    %77 = vector.load %arg7[%c0_9, %c0_10] : memref<1x64xf32, #tpu.memory_space<vmem>>, vector<1x64xf32>
    %c0_11 = arith.constant 0 : index
    %c0_12 = arith.constant 0 : index
    %78 = vector.load %arg8[%c0_11, %c0_12] : memref<1x64xf32, #tpu.memory_space<vmem>>, vector<1x64xf32>
    %cst_13 = arith.constant dense<0.000000e+00> : vector<128xf32>
    %79 = vector.multi_reduction <add>, %76, %cst_13 [1] : vector<128x64xf32> to vector<128xf32>
    %80 = vector.shape_cast %79 : vector<128xf32> to vector<128x1xf32>
    %cst_14 = arith.constant 6.400000e+01 : f32
    %81 = vector.broadcast %cst_14 : f32 to vector<128x1xf32>
    %82 = arith.divf %80, %81 : vector<128x1xf32>
    %83 = vector.broadcast %82 : vector<128x1xf32> to vector<128x64xf32>
    %84 = arith.subf %76, %83 : vector<128x64xf32>
    %85 = arith.mulf %84, %84 : vector<128x64xf32>
    %cst_15 = arith.constant dense<0.000000e+00> : vector<128xf32>
    %86 = vector.multi_reduction <add>, %85, %cst_15 [1] : vector<128x64xf32> to vector<128xf32>
    %87 = vector.shape_cast %86 : vector<128xf32> to vector<128x1xf32>
    %cst_16 = arith.constant 6.400000e+01 : f32
    %88 = vector.broadcast %cst_16 : f32 to vector<128x1xf32>
    %89 = arith.divf %87, %88 : vector<128x1xf32>
    %90 = vector.broadcast %82 : vector<128x1xf32> to vector<128x64xf32>
    %91 = arith.subf %76, %90 : vector<128x64xf32>
    %cst_17 = arith.constant 9.99999997E-7 : f32
    %92 = vector.broadcast %cst_17 : f32 to vector<128x1xf32>
    %93 = arith.addf %89, %92 : vector<128x1xf32>
    %94 = math.rsqrt %93 : vector<128x1xf32>
    %95 = vector.broadcast %94 : vector<128x1xf32> to vector<128x64xf32>
    %96 = arith.mulf %91, %95 : vector<128x64xf32>
    %97 = vector.broadcast %77 : vector<1x64xf32> to vector<128x64xf32>
    %98 = arith.mulf %96, %97 : vector<128x64xf32>
    %99 = vector.broadcast %78 : vector<1x64xf32> to vector<128x64xf32>
    %100 = arith.addf %98, %99 : vector<128x64xf32>
    %101 = arith.truncf %100 : vector<128x64xf32> to vector<128x64xbf16>
    %c0_18 = arith.constant 0 : index
    %c0_19 = arith.constant 0 : index
    %102 = vector.load %arg9[%c0_18, %c0_19] : memref<64x128xbf16, #tpu.memory_space<vmem>>, vector<64x128xbf16>
    %cst_20 = arith.constant dense<0.000000e+00> : vector<128x128xf32>
    %103 = tpu.matmul %101, %102, %cst_20 {dimension_numbers = #tpu.dot_dimension_numbers<[1], [0], [0], [1], [0, 0, 1, 1], [], []>} : vector<128x64xbf16>, vector<64x128xbf16>, vector<128x128xf32> -> vector<128x128xf32>
    %c0_21 = arith.constant 0 : index
    %c0_22 = arith.constant 0 : index
    %104 = vector.load %arg10[%c0_21, %c0_22] : memref<1x128xf32, #tpu.memory_space<vmem>>, vector<1x128xf32>
    %105 = vector.broadcast %104 : vector<1x128xf32> to vector<128x128xf32>
    %106 = arith.addf %103, %105 : vector<128x128xf32>
    %c0_23 = arith.constant 0 : index
    %c0_24 = arith.constant 0 : index
    %107 = vector.load %arg4[%c0_23, %c0_24] : memref<128x128xf32, #tpu.memory_space<vmem>>, vector<128x128xf32>
    %108 = arith.mulf %106, %107 : vector<128x128xf32>
    %109 = tpu.iota {dimensions = array<i32: 1>} : vector<128x128xi32>
    %c1_i32_25 = arith.constant 1 : i32
    %110 = vector.broadcast %c1_i32_25 : i32 to vector<128x128xi32>
    %111 = arith.andi %109, %110 : vector<128x128xi32>
    %c0_i32 = arith.constant 0 : i32
    %112 = vector.broadcast %c0_i32 : i32 to vector<128x128xi32>
    %113 = arith.cmpi eq, %111, %112 : vector<128x128xi32>
    %c127_i32_26 = arith.constant 127 : i32
    %114 = tpu.dynamic_rotate %106 by %c127_i32_26 dim 1 : vector<128x128xf32>, i32 -> vector<128x128xf32>
    %c1_i32_27 = arith.constant 1 : i32
    %115 = tpu.dynamic_rotate %106 by %c1_i32_27 dim 1 : vector<128x128xf32>, i32 -> vector<128x128xf32>
    %cst_28 = arith.constant 0.000000e+00 : f32
    %116 = vector.broadcast %cst_28 : f32 to vector<128x128xf32>
    %117 = arith.subf %116, %114 : vector<128x128xf32>
    %118 = arith.select %113, %117, %115 : vector<128x128xi1>, vector<128x128xf32>
    %c0_29 = arith.constant 0 : index
    %c0_30 = arith.constant 0 : index
    %119 = vector.load %arg3[%c0_29, %c0_30] : memref<128x128xf32, #tpu.memory_space<vmem>>, vector<128x128xf32>
    %120 = arith.mulf %118, %119 : vector<128x128xf32>
    %121 = arith.addf %108, %120 : vector<128x128xf32>
    %122 = vector.extract_strided_slice %121 {offsets = [0, 0], sizes = [128, 64], strides = [1, 1]} : vector<128x128xf32> to vector<128x64xf32>
    %cst_31 = arith.constant 0.176776692 : f32
    %123 = vector.broadcast %cst_31 : f32 to vector<128x64xf32>
    %124 = arith.mulf %122, %123 : vector<128x64xf32>
    %125 = arith.truncf %124 : vector<128x64xf32> to vector<128x64xbf16>
    %126 = vector.extract_strided_slice %121 {offsets = [0, 64], sizes = [128, 64], strides = [1, 1]} : vector<128x128xf32> to vector<128x64xf32>
    %127 = arith.truncf %126 : vector<128x64xf32> to vector<128x64xbf16>
    %128 = vector.extract_strided_slice %125 {offsets = [0, 0], sizes = [64, 32], strides = [1, 1]} : vector<128x64xbf16> to vector<64x32xbf16>
    %129 = vector.extract_strided_slice %127 {offsets = [0, 0], sizes = [64, 32], strides = [1, 1]} : vector<128x64xbf16> to vector<64x32xbf16>
    %cst_32 = arith.constant dense<0.000000e+00> : vector<64x64xf32>
    %130 = tpu.matmul %128, %129, %cst_32 {dimension_numbers = #tpu.dot_dimension_numbers<[1], [1], [0], [0], [0, 0, 1, 0], [], []>} : vector<64x32xbf16>, vector<64x32xbf16>, vector<64x64xf32> -> vector<64x64xf32>
    %cst_33 = arith.constant dense<0xFF800000> : vector<64xf32>
    %131 = vector.multi_reduction <maximumf>, %130, %cst_33 [1] : vector<64x64xf32> to vector<64xf32>
    %132 = vector.shape_cast %131 : vector<64xf32> to vector<64x1xf32>
    %133 = vector.broadcast %132 : vector<64x1xf32> to vector<64x64xf32>
    %134 = arith.subf %130, %133 : vector<64x64xf32>
    %135 = math.exp %134 : vector<64x64xf32>
    %cst_34 = arith.constant dense<0.000000e+00> : vector<64xf32>
    %136 = vector.multi_reduction <add>, %135, %cst_34 [1] : vector<64x64xf32> to vector<64xf32>
    %137 = vector.shape_cast %136 : vector<64xf32> to vector<64x1xf32>
    %138 = tpu.reciprocal %137 {approx = true} : vector<64x1xf32> -> vector<64x1xf32>
    %139 = vector.broadcast %138 : vector<64x1xf32> to vector<64x64xf32>
    %140 = arith.mulf %135, %139 : vector<64x64xf32>
    %141 = arith.truncf %140 : vector<64x64xf32> to vector<64x64xbf16>
    %cst_35 = arith.constant dense<0.000000e+00> : vector<64x32xf32>
    %142 = tpu.matmul %141, %129, %cst_35 {dimension_numbers = #tpu.dot_dimension_numbers<[1], [0], [0], [1], [0, 0, 1, 1], [], []>} : vector<64x64xbf16>, vector<64x32xbf16>, vector<64x32xf32> -> vector<64x32xf32>
    %143 = vector.extract_strided_slice %125 {offsets = [0, 32], sizes = [64, 32], strides = [1, 1]} : vector<128x64xbf16> to vector<64x32xbf16>
    %144 = vector.extract_strided_slice %127 {offsets = [0, 32], sizes = [64, 32], strides = [1, 1]} : vector<128x64xbf16> to vector<64x32xbf16>
    %cst_36 = arith.constant dense<0.000000e+00> : vector<64x64xf32>
    %145 = tpu.matmul %143, %144, %cst_36 {dimension_numbers = #tpu.dot_dimension_numbers<[1], [1], [0], [0], [0, 0, 1, 0], [], []>} : vector<64x32xbf16>, vector<64x32xbf16>, vector<64x64xf32> -> vector<64x64xf32>
    %cst_37 = arith.constant dense<0xFF800000> : vector<64xf32>
    %146 = vector.multi_reduction <maximumf>, %145, %cst_37 [1] : vector<64x64xf32> to vector<64xf32>
    %147 = vector.shape_cast %146 : vector<64xf32> to vector<64x1xf32>
    %148 = vector.broadcast %147 : vector<64x1xf32> to vector<64x64xf32>
    %149 = arith.subf %145, %148 : vector<64x64xf32>
    %150 = math.exp %149 : vector<64x64xf32>
    %cst_38 = arith.constant dense<0.000000e+00> : vector<64xf32>
    %151 = vector.multi_reduction <add>, %150, %cst_38 [1] : vector<64x64xf32> to vector<64xf32>
    %152 = vector.shape_cast %151 : vector<64xf32> to vector<64x1xf32>
    %153 = tpu.reciprocal %152 {approx = true} : vector<64x1xf32> -> vector<64x1xf32>
    %154 = vector.broadcast %153 : vector<64x1xf32> to vector<64x64xf32>
    %155 = arith.mulf %150, %154 : vector<64x64xf32>
    %156 = arith.truncf %155 : vector<64x64xf32> to vector<64x64xbf16>
    %cst_39 = arith.constant dense<0.000000e+00> : vector<64x32xf32>
    %157 = tpu.matmul %156, %144, %cst_39 {dimension_numbers = #tpu.dot_dimension_numbers<[1], [0], [0], [1], [0, 0, 1, 1], [], []>} : vector<64x64xbf16>, vector<64x32xbf16>, vector<64x32xf32> -> vector<64x32xf32>
    %158 = tpu.concatenate %142, %157 in 1 : vector<64x32xf32>, vector<64x32xf32> -> vector<64x64xf32>
    %159 = vector.extract_strided_slice %125 {offsets = [64, 0], sizes = [64, 32], strides = [1, 1]} : vector<128x64xbf16> to vector<64x32xbf16>
    %160 = vector.extract_strided_slice %127 {offsets = [64, 0], sizes = [64, 32], strides = [1, 1]} : vector<128x64xbf16> to vector<64x32xbf16>
    %cst_40 = arith.constant dense<0.000000e+00> : vector<64x64xf32>
    %161 = tpu.matmul %159, %160, %cst_40 {dimension_numbers = #tpu.dot_dimension_numbers<[1], [1], [0], [0], [0, 0, 1, 0], [], []>} : vector<64x32xbf16>, vector<64x32xbf16>, vector<64x64xf32> -> vector<64x64xf32>
    %cst_41 = arith.constant dense<0xFF800000> : vector<64xf32>
    %162 = vector.multi_reduction <maximumf>, %161, %cst_41 [1] : vector<64x64xf32> to vector<64xf32>
    %163 = vector.shape_cast %162 : vector<64xf32> to vector<64x1xf32>
    %164 = vector.broadcast %163 : vector<64x1xf32> to vector<64x64xf32>
    %165 = arith.subf %161, %164 : vector<64x64xf32>
    %166 = math.exp %165 : vector<64x64xf32>
    %cst_42 = arith.constant dense<0.000000e+00> : vector<64xf32>
    %167 = vector.multi_reduction <add>, %166, %cst_42 [1] : vector<64x64xf32> to vector<64xf32>
    %168 = vector.shape_cast %167 : vector<64xf32> to vector<64x1xf32>
    %169 = tpu.reciprocal %168 {approx = true} : vector<64x1xf32> -> vector<64x1xf32>
    %170 = vector.broadcast %169 : vector<64x1xf32> to vector<64x64xf32>
    %171 = arith.mulf %166, %170 : vector<64x64xf32>
    %172 = arith.truncf %171 : vector<64x64xf32> to vector<64x64xbf16>
    %cst_43 = arith.constant dense<0.000000e+00> : vector<64x32xf32>
    %173 = tpu.matmul %172, %160, %cst_43 {dimension_numbers = #tpu.dot_dimension_numbers<[1], [0], [0], [1], [0, 0, 1, 1], [], []>} : vector<64x64xbf16>, vector<64x32xbf16>, vector<64x32xf32> -> vector<64x32xf32>
    %174 = vector.extract_strided_slice %125 {offsets = [64, 32], sizes = [64, 32], strides = [1, 1]} : vector<128x64xbf16> to vector<64x32xbf16>
    %175 = vector.extract_strided_slice %127 {offsets = [64, 32], sizes = [64, 32], strides = [1, 1]} : vector<128x64xbf16> to vector<64x32xbf16>
    %cst_44 = arith.constant dense<0.000000e+00> : vector<64x64xf32>
    %176 = tpu.matmul %174, %175, %cst_44 {dimension_numbers = #tpu.dot_dimension_numbers<[1], [1], [0], [0], [0, 0, 1, 0], [], []>} : vector<64x32xbf16>, vector<64x32xbf16>, vector<64x64xf32> -> vector<64x64xf32>
    %cst_45 = arith.constant dense<0xFF800000> : vector<64xf32>
    %177 = vector.multi_reduction <maximumf>, %176, %cst_45 [1] : vector<64x64xf32> to vector<64xf32>
    %178 = vector.shape_cast %177 : vector<64xf32> to vector<64x1xf32>
    %179 = vector.broadcast %178 : vector<64x1xf32> to vector<64x64xf32>
    %180 = arith.subf %176, %179 : vector<64x64xf32>
    %181 = math.exp %180 : vector<64x64xf32>
    %cst_46 = arith.constant dense<0.000000e+00> : vector<64xf32>
    %182 = vector.multi_reduction <add>, %181, %cst_46 [1] : vector<64x64xf32> to vector<64xf32>
    %183 = vector.shape_cast %182 : vector<64xf32> to vector<64x1xf32>
    %184 = tpu.reciprocal %183 {approx = true} : vector<64x1xf32> -> vector<64x1xf32>
    %185 = vector.broadcast %184 : vector<64x1xf32> to vector<64x64xf32>
    %186 = arith.mulf %181, %185 : vector<64x64xf32>
    %187 = arith.truncf %186 : vector<64x64xf32> to vector<64x64xbf16>
    %cst_47 = arith.constant dense<0.000000e+00> : vector<64x32xf32>
    %188 = tpu.matmul %187, %175, %cst_47 {dimension_numbers = #tpu.dot_dimension_numbers<[1], [0], [0], [1], [0, 0, 1, 1], [], []>} : vector<64x64xbf16>, vector<64x32xbf16>, vector<64x32xf32> -> vector<64x32xf32>
    %189 = tpu.concatenate %173, %188 in 1 : vector<64x32xf32>, vector<64x32xf32> -> vector<64x64xf32>
    %190 = tpu.concatenate %158, %189 in 0 : vector<64x64xf32>, vector<64x64xf32> -> vector<128x64xf32>
    %191 = arith.addf %76, %190 : vector<128x64xf32>
    %c0_48 = arith.constant 0 : index
    %c0_49 = arith.constant 0 : index
    %192 = vector.load %arg11[%c0_48, %c0_49] : memref<1x64xf32, #tpu.memory_space<vmem>>, vector<1x64xf32>
    %c0_50 = arith.constant 0 : index
    %c0_51 = arith.constant 0 : index
    %193 = vector.load %arg12[%c0_50, %c0_51] : memref<1x64xf32, #tpu.memory_space<vmem>>, vector<1x64xf32>
    %cst_52 = arith.constant dense<0.000000e+00> : vector<128xf32>
    %194 = vector.multi_reduction <add>, %191, %cst_52 [1] : vector<128x64xf32> to vector<128xf32>
    %195 = vector.shape_cast %194 : vector<128xf32> to vector<128x1xf32>
    %cst_53 = arith.constant 6.400000e+01 : f32
    %196 = vector.broadcast %cst_53 : f32 to vector<128x1xf32>
    %197 = arith.divf %195, %196 : vector<128x1xf32>
    %198 = vector.broadcast %197 : vector<128x1xf32> to vector<128x64xf32>
    %199 = arith.subf %191, %198 : vector<128x64xf32>
    %200 = arith.mulf %199, %199 : vector<128x64xf32>
    %cst_54 = arith.constant dense<0.000000e+00> : vector<128xf32>
    %201 = vector.multi_reduction <add>, %200, %cst_54 [1] : vector<128x64xf32> to vector<128xf32>
    %202 = vector.shape_cast %201 : vector<128xf32> to vector<128x1xf32>
    %cst_55 = arith.constant 6.400000e+01 : f32
    %203 = vector.broadcast %cst_55 : f32 to vector<128x1xf32>
    %204 = arith.divf %202, %203 : vector<128x1xf32>
    %205 = vector.broadcast %197 : vector<128x1xf32> to vector<128x64xf32>
    %206 = arith.subf %191, %205 : vector<128x64xf32>
    %cst_56 = arith.constant 9.99999997E-7 : f32
    %207 = vector.broadcast %cst_56 : f32 to vector<128x1xf32>
    %208 = arith.addf %204, %207 : vector<128x1xf32>
    %209 = math.rsqrt %208 : vector<128x1xf32>
    %210 = vector.broadcast %209 : vector<128x1xf32> to vector<128x64xf32>
    %211 = arith.mulf %206, %210 : vector<128x64xf32>
    %212 = vector.broadcast %192 : vector<1x64xf32> to vector<128x64xf32>
    %213 = arith.mulf %211, %212 : vector<128x64xf32>
    %214 = vector.broadcast %193 : vector<1x64xf32> to vector<128x64xf32>
    %215 = arith.addf %213, %214 : vector<128x64xf32>
    %216 = arith.truncf %215 : vector<128x64xf32> to vector<128x64xbf16>
    %c0_57 = arith.constant 0 : index
    %c0_58 = arith.constant 0 : index
    %217 = vector.load %arg13[%c0_57, %c0_58] : memref<64x128xbf16, #tpu.memory_space<vmem>>, vector<64x128xbf16>
    %cst_59 = arith.constant dense<0.000000e+00> : vector<128x128xf32>
    %218 = tpu.matmul %216, %217, %cst_59 {dimension_numbers = #tpu.dot_dimension_numbers<[1], [0], [0], [1], [0, 0, 1, 1], [], []>} : vector<128x64xbf16>, vector<64x128xbf16>, vector<128x128xf32> -> vector<128x128xf32>
    %c0_60 = arith.constant 0 : index
    %c0_61 = arith.constant 0 : index
    %219 = vector.load %arg14[%c0_60, %c0_61] : memref<1x128xf32, #tpu.memory_space<vmem>>, vector<1x128xf32>
    %220 = vector.broadcast %219 : vector<1x128xf32> to vector<128x128xf32>
    %221 = arith.addf %218, %220 : vector<128x128xf32>
    %cst_62 = arith.constant 5.000000e-01 : f32
    %222 = vector.broadcast %cst_62 : f32 to vector<128x128xf32>
    %223 = arith.mulf %222, %221 : vector<128x128xf32>
    %cst_63 = arith.constant 0.707106769 : f32
    %224 = vector.broadcast %cst_63 : f32 to vector<128x128xf32>
    %225 = arith.mulf %221, %224 : vector<128x128xf32>
    %226 = math.erf %225 : vector<128x128xf32>
    %cst_64 = arith.constant 1.000000e+00 : f32
    %227 = vector.broadcast %cst_64 : f32 to vector<128x128xf32>
    %228 = arith.addf %227, %226 : vector<128x128xf32>
    %229 = arith.mulf %223, %228 : vector<128x128xf32>
    %c0_65 = arith.constant 0 : index
    %c0_66 = arith.constant 0 : index
    %230 = vector.load %arg15[%c0_65, %c0_66] : memref<9x128xf32, #tpu.memory_space<vmem>>, vector<9x128xf32>
    %c0_67 = arith.constant 0 : index
    %c0_68 = arith.constant 0 : index
    %231 = vector.load %arg16[%c0_67, %c0_68] : memref<1x128xf32, #tpu.memory_space<vmem>>, vector<1x128xf32>
    %cst_69 = arith.constant 0.000000e+00 : f32
    %232 = vector.broadcast %cst_69 : f32 to vector<128x128xf32>
    %233 = vector.extract_strided_slice %230 {offsets = [0, 0], sizes = [1, 128], strides = [1, 1]} : vector<9x128xf32> to vector<1x128xf32>
    %c9_i32_70 = arith.constant 9 : i32
    %234 = tpu.dynamic_rotate %229 by %c9_i32_70 dim 0 : vector<128x128xf32>, i32 -> vector<128x128xf32>
    %235 = vector.extract_strided_slice %0 {offsets = [0, 0], sizes = [128, 1], strides = [1, 1]} : vector<128x9xf32> to vector<128x1xf32>
    %236 = vector.broadcast %235 : vector<128x1xf32> to vector<128x128xf32>
    %237 = arith.mulf %234, %236 : vector<128x128xf32>
    %238 = vector.broadcast %233 : vector<1x128xf32> to vector<128x128xf32>
    %239 = arith.mulf %237, %238 : vector<128x128xf32>
    %240 = arith.addf %232, %239 : vector<128x128xf32>
    %241 = vector.extract_strided_slice %230 {offsets = [1, 0], sizes = [1, 128], strides = [1, 1]} : vector<9x128xf32> to vector<1x128xf32>
    %c8_i32_71 = arith.constant 8 : i32
    %242 = tpu.dynamic_rotate %229 by %c8_i32_71 dim 0 : vector<128x128xf32>, i32 -> vector<128x128xf32>
    %243 = vector.extract_strided_slice %0 {offsets = [0, 1], sizes = [128, 1], strides = [1, 1]} : vector<128x9xf32> to vector<128x1xf32>
    %244 = vector.broadcast %243 : vector<128x1xf32> to vector<128x128xf32>
    %245 = arith.mulf %242, %244 : vector<128x128xf32>
    %246 = vector.broadcast %241 : vector<1x128xf32> to vector<128x128xf32>
    %247 = arith.mulf %245, %246 : vector<128x128xf32>
    %248 = arith.addf %240, %247 : vector<128x128xf32>
    %249 = vector.extract_strided_slice %230 {offsets = [2, 0], sizes = [1, 128], strides = [1, 1]} : vector<9x128xf32> to vector<1x128xf32>
    %c7_i32_72 = arith.constant 7 : i32
    %250 = tpu.dynamic_rotate %229 by %c7_i32_72 dim 0 : vector<128x128xf32>, i32 -> vector<128x128xf32>
    %251 = vector.extract_strided_slice %0 {offsets = [0, 2], sizes = [128, 1], strides = [1, 1]} : vector<128x9xf32> to vector<128x1xf32>
    %252 = vector.broadcast %251 : vector<128x1xf32> to vector<128x128xf32>
    %253 = arith.mulf %250, %252 : vector<128x128xf32>
    %254 = vector.broadcast %249 : vector<1x128xf32> to vector<128x128xf32>
    %255 = arith.mulf %253, %254 : vector<128x128xf32>
    %256 = arith.addf %248, %255 : vector<128x128xf32>
    %257 = vector.extract_strided_slice %230 {offsets = [3, 0], sizes = [1, 128], strides = [1, 1]} : vector<9x128xf32> to vector<1x128xf32>
    %c1_i32_73 = arith.constant 1 : i32
    %258 = tpu.dynamic_rotate %229 by %c1_i32_73 dim 0 : vector<128x128xf32>, i32 -> vector<128x128xf32>
    %259 = vector.extract_strided_slice %0 {offsets = [0, 3], sizes = [128, 1], strides = [1, 1]} : vector<128x9xf32> to vector<128x1xf32>
    %260 = vector.broadcast %259 : vector<128x1xf32> to vector<128x128xf32>
    %261 = arith.mulf %258, %260 : vector<128x128xf32>
    %262 = vector.broadcast %257 : vector<1x128xf32> to vector<128x128xf32>
    %263 = arith.mulf %261, %262 : vector<128x128xf32>
    %264 = arith.addf %256, %263 : vector<128x128xf32>
    %265 = vector.extract_strided_slice %230 {offsets = [4, 0], sizes = [1, 128], strides = [1, 1]} : vector<9x128xf32> to vector<1x128xf32>
    %266 = vector.broadcast %265 : vector<1x128xf32> to vector<128x128xf32>
    %267 = arith.mulf %229, %266 : vector<128x128xf32>
    %268 = arith.addf %264, %267 : vector<128x128xf32>
    %269 = vector.extract_strided_slice %230 {offsets = [5, 0], sizes = [1, 128], strides = [1, 1]} : vector<9x128xf32> to vector<1x128xf32>
    %c127_i32_74 = arith.constant 127 : i32
    %270 = tpu.dynamic_rotate %229 by %c127_i32_74 dim 0 : vector<128x128xf32>, i32 -> vector<128x128xf32>
    %271 = vector.extract_strided_slice %0 {offsets = [0, 5], sizes = [128, 1], strides = [1, 1]} : vector<128x9xf32> to vector<128x1xf32>
    %272 = vector.broadcast %271 : vector<128x1xf32> to vector<128x128xf32>
    %273 = arith.mulf %270, %272 : vector<128x128xf32>
    %274 = vector.broadcast %269 : vector<1x128xf32> to vector<128x128xf32>
    %275 = arith.mulf %273, %274 : vector<128x128xf32>
    %276 = arith.addf %268, %275 : vector<128x128xf32>
    %277 = vector.extract_strided_slice %230 {offsets = [6, 0], sizes = [1, 128], strides = [1, 1]} : vector<9x128xf32> to vector<1x128xf32>
    %c121_i32_75 = arith.constant 121 : i32
    %278 = tpu.dynamic_rotate %229 by %c121_i32_75 dim 0 : vector<128x128xf32>, i32 -> vector<128x128xf32>
    %279 = vector.extract_strided_slice %0 {offsets = [0, 6], sizes = [128, 1], strides = [1, 1]} : vector<128x9xf32> to vector<128x1xf32>
    %280 = vector.broadcast %279 : vector<128x1xf32> to vector<128x128xf32>
    %281 = arith.mulf %278, %280 : vector<128x128xf32>
    %282 = vector.broadcast %277 : vector<1x128xf32> to vector<128x128xf32>
    %283 = arith.mulf %281, %282 : vector<128x128xf32>
    %284 = arith.addf %276, %283 : vector<128x128xf32>
    %285 = vector.extract_strided_slice %230 {offsets = [7, 0], sizes = [1, 128], strides = [1, 1]} : vector<9x128xf32> to vector<1x128xf32>
    %c120_i32_76 = arith.constant 120 : i32
    %286 = tpu.dynamic_rotate %229 by %c120_i32_76 dim 0 : vector<128x128xf32>, i32 -> vector<128x128xf32>
    %287 = vector.extract_strided_slice %0 {offsets = [0, 7], sizes = [128, 1], strides = [1, 1]} : vector<128x9xf32> to vector<128x1xf32>
    %288 = vector.broadcast %287 : vector<128x1xf32> to vector<128x128xf32>
    %289 = arith.mulf %286, %288 : vector<128x128xf32>
    %290 = vector.broadcast %285 : vector<1x128xf32> to vector<128x128xf32>
    %291 = arith.mulf %289, %290 : vector<128x128xf32>
    %292 = arith.addf %284, %291 : vector<128x128xf32>
    %293 = vector.extract_strided_slice %230 {offsets = [8, 0], sizes = [1, 128], strides = [1, 1]} : vector<9x128xf32> to vector<1x128xf32>
    %c119_i32_77 = arith.constant 119 : i32
    %294 = tpu.dynamic_rotate %229 by %c119_i32_77 dim 0 : vector<128x128xf32>, i32 -> vector<128x128xf32>
    %295 = vector.extract_strided_slice %0 {offsets = [0, 8], sizes = [128, 1], strides = [1, 1]} : vector<128x9xf32> to vector<128x1xf32>
    %296 = vector.broadcast %295 : vector<128x1xf32> to vector<128x128xf32>
    %297 = arith.mulf %294, %296 : vector<128x128xf32>
    %298 = vector.broadcast %293 : vector<1x128xf32> to vector<128x128xf32>
    %299 = arith.mulf %297, %298 : vector<128x128xf32>
    %300 = arith.addf %292, %299 : vector<128x128xf32>
    %301 = vector.broadcast %231 : vector<1x128xf32> to vector<128x128xf32>
    %302 = arith.addf %300, %301 : vector<128x128xf32>
    %303 = arith.addf %229, %302 : vector<128x128xf32>
    %304 = arith.truncf %303 : vector<128x128xf32> to vector<128x128xbf16>
    %c0_78 = arith.constant 0 : index
    %c0_79 = arith.constant 0 : index
    %305 = vector.load %arg17[%c0_78, %c0_79] : memref<128x64xbf16, #tpu.memory_space<vmem>>, vector<128x64xbf16>
    %cst_80 = arith.constant dense<0.000000e+00> : vector<128x64xf32>
    %306 = tpu.matmul %304, %305, %cst_80 {dimension_numbers = #tpu.dot_dimension_numbers<[1], [0], [0], [1], [0, 0, 1, 1], [], []>} : vector<128x128xbf16>, vector<128x64xbf16>, vector<128x64xf32> -> vector<128x64xf32>
    %c0_81 = arith.constant 0 : index
    %c0_82 = arith.constant 0 : index
    %307 = vector.load %arg18[%c0_81, %c0_82] : memref<1x64xf32, #tpu.memory_space<vmem>>, vector<1x64xf32>
    %308 = vector.broadcast %307 : vector<1x64xf32> to vector<128x64xf32>
    %309 = arith.addf %306, %308 : vector<128x64xf32>
    %310 = arith.addf %191, %309 : vector<128x64xf32>
    %311 = vector.shape_cast %310 : vector<128x64xf32> to vector<2x8x8x64xf32>
    %c0_83 = arith.constant 0 : index
    %c0_84 = arith.constant 0 : index
    %c0_85 = arith.constant 0 : index
    %c0_86 = arith.constant 0 : index
    %312 = vector.load %arg19[%c0_83, %c0_84, %c0_85, %c0_86] : memref<2x8x8x64xf32, #tpu.memory_space<vmem>>, vector<2x8x8x64xf32>
    tpu.vector_store %arg19[%c0_83, %c0_84, %c0_85, %c0_86], %311 {strides = array<i32>} : memref<2x8x8x64xf32, #tpu.memory_space<vmem>>, vector<2x8x8x64xf32>,
    return
  }
  func.func @transform_0(%arg0: i32) -> (i32, i32, i32, i32) {
    %c0_i32 = arith.constant 0 : i32
    %c0_i32_0 = arith.constant 0 : i32
    %c0_i32_1 = arith.constant 0 : i32
    %c0_i32_2 = arith.constant 0 : i32
    return %arg0, %c0_i32, %c0_i32_0, %c0_i32_1 : i32, i32, i32, i32
  }
  func.func @transform_1(%arg0: i32) -> (i32, i32) {
    %c0_i32 = arith.constant 0 : i32
    %c0_i32_0 = arith.constant 0 : i32
    %c0_i32_1 = arith.constant 0 : i32
    return %c0_i32, %c0_i32_0 : i32, i32
  }
  func.func @transform_2(%arg0: i32) -> (i32, i32) {
    %c0_i32 = arith.constant 0 : i32
    %c0_i32_0 = arith.constant 0 : i32
    %c0_i32_1 = arith.constant 0 : i32
    return %c0_i32, %c0_i32_0 : i32, i32
  }
  func.func @transform_3(%arg0: i32) -> (i32, i32) {
    %c0_i32 = arith.constant 0 : i32
    %c0_i32_0 = arith.constant 0 : i32
    %c0_i32_1 = arith.constant 0 : i32
    return %c0_i32, %c0_i32_0 : i32, i32
  }
  func.func @transform_4(%arg0: i32) -> (i32, i32) {
    %c0_i32 = arith.constant 0 : i32
    %c0_i32_0 = arith.constant 0 : i32
    %c0_i32_1 = arith.constant 0 : i32
    return %c0_i32, %c0_i32_0 : i32, i32
  }
  func.func @transform_5(%arg0: i32) -> (i32, i32) {
    %c0_i32 = arith.constant 0 : i32
    %c0_i32_0 = arith.constant 0 : i32
    %c0_i32_1 = arith.constant 0 : i32
    return %c0_i32, %c0_i32_0 : i32, i32
  }
  func.func @transform_6(%arg0: i32) -> (i32, i32) {
    %c0_i32 = arith.constant 0 : i32
    %c0_i32_0 = arith.constant 0 : i32
    %c0_i32_1 = arith.constant 0 : i32
    return %c0_i32, %c0_i32_0 : i32, i32
  }
  func.func @transform_7(%arg0: i32) -> (i32, i32) {
    %c0_i32 = arith.constant 0 : i32
    %c0_i32_0 = arith.constant 0 : i32
    %c0_i32_1 = arith.constant 0 : i32
    return %c0_i32, %c0_i32_0 : i32, i32
  }
  func.func @transform_8(%arg0: i32) -> (i32, i32) {
    %c0_i32 = arith.constant 0 : i32
    %c0_i32_0 = arith.constant 0 : i32
    %c0_i32_1 = arith.constant 0 : i32
    return %c0_i32, %c0_i32_0 : i32, i32
  }
  func.func @transform_9(%arg0: i32) -> (i32, i32) {
    %c0_i32 = arith.constant 0 : i32
    %c0_i32_0 = arith.constant 0 : i32
    %c0_i32_1 = arith.constant 0 : i32
    return %c0_i32, %c0_i32_0 : i32, i32
  }
  func.func @transform_10(%arg0: i32) -> (i32, i32) {
    %c0_i32 = arith.constant 0 : i32
    %c0_i32_0 = arith.constant 0 : i32
    %c0_i32_1 = arith.constant 0 : i32
    return %c0_i32, %c0_i32_0 : i32, i32
  }
  func.func @transform_11(%arg0: i32) -> (i32, i32) {
    %c0_i32 = arith.constant 0 : i32
    %c0_i32_0 = arith.constant 0 : i32
    %c0_i32_1 = arith.constant 0 : i32
    return %c0_i32, %c0_i32_0 : i32, i32
  }
  func.func @transform_12(%arg0: i32) -> (i32, i32) {
    %c0_i32 = arith.constant 0 : i32
    %c0_i32_0 = arith.constant 0 : i32
    %c0_i32_1 = arith.constant 0 : i32
    return %c0_i32, %c0_i32_0 : i32, i32
  }
  func.func @transform_13(%arg0: i32) -> (i32, i32) {
    %c0_i32 = arith.constant 0 : i32
    %c0_i32_0 = arith.constant 0 : i32
    %c0_i32_1 = arith.constant 0 : i32
    return %c0_i32, %c0_i32_0 : i32, i32
  }
  func.func @transform_14(%arg0: i32) -> (i32, i32) {
    %c0_i32 = arith.constant 0 : i32
    %c0_i32_0 = arith.constant 0 : i32
    %c0_i32_1 = arith.constant 0 : i32
    return %c0_i32, %c0_i32_0 : i32, i32
  }
  func.func @transform_15(%arg0: i32) -> (i32, i32) {
    %c0_i32 = arith.constant 0 : i32
    %c0_i32_0 = arith.constant 0 : i32
    %c0_i32_1 = arith.constant 0 : i32
    return %c0_i32, %c0_i32_0 : i32, i32
  }
  func.func @transform_16(%arg0: i32) -> (i32, i32) {
    %c0_i32 = arith.constant 0 : i32
    %c0_i32_0 = arith.constant 0 : i32
    %c0_i32_1 = arith.constant 0 : i32
    return %c0_i32, %c0_i32_0 : i32, i32
  }
  func.func @transform_17(%arg0: i32) -> (i32, i32) {
    %c0_i32 = arith.constant 0 : i32
    %c0_i32_0 = arith.constant 0 : i32
    %c0_i32_1 = arith.constant 0 : i32
    return %c0_i32, %c0_i32_0 : i32, i32
  }
  func.func @transform_18(%arg0: i32) -> (i32, i32, i32, i32) {
    %c0_i32 = arith.constant 0 : i32
    %c0_i32_0 = arith.constant 0 : i32
    %c0_i32_1 = arith.constant 0 : i32
    %c0_i32_2 = arith.constant 0 : i32
    return %arg0, %c0_i32, %c0_i32_0, %c0_i32_1 : i32, i32, i32, i32
  }
}

</mosaic_0001>

<llo_original>
// kernel: tpu_custom_call.1
$region0: #{tpu_custom_call.1}
  #allocation0 [shape = 'u32[]', space=smem, size = 0x4, offset = 0x4, fixed_abs, tag = 'smem constant byte address 0x4 - core index']
  #allocation1 [shape = 'u32[144,128]{1,0:T(1,128)}', space=vmem, size = 0x12000, scoped, tag = 'internal scratch']
  %s0 = inlined_call_operand.hbm [shape: f32[4,8,8,64], index: 0, kind: input, shape index: {}]
  %s1 = inlined_call_operand.vmem [shape: f32[128,9], index: 1, kind: input, shape index: {}]
  %s2 = inlined_call_operand.vmem [shape: f32[128,128], index: 2, kind: input, shape index: {}]
  %s3 = inlined_call_operand.hbm [shape: f32[128,128], index: 3, kind: input, shape index: {}]
  %s4 = inlined_call_operand.vmem [shape: f32[9,64], index: 4, kind: input, shape index: {}]
  %s5 = inlined_call_operand.vmem [shape: f32[1,64], index: 5, kind: input, shape index: {}]
  %s6 = inlined_call_operand.vmem [shape: f32[1,64], index: 6, kind: input, shape index: {}]
  %s7 = inlined_call_operand.vmem [shape: f32[1,64], index: 7, kind: input, shape index: {}]
  %s8 = inlined_call_operand.vmem [shape: bf16[64,128], index: 8, kind: input, shape index: {}]
  %s9 = inlined_call_operand.vmem [shape: f32[1,128], index: 9, kind: input, shape index: {}]
  %s10 = inlined_call_operand.vmem [shape: f32[1,64], index: 10, kind: input, shape index: {}]
  %s11 = inlined_call_operand.vmem [shape: f32[1,64], index: 11, kind: input, shape index: {}]
  %s12 = inlined_call_operand.vmem [shape: bf16[64,128], index: 12, kind: input, shape index: {}]
  %s13 = inlined_call_operand.vmem [shape: f32[1,128], index: 13, kind: input, shape index: {}]
  %s14 = inlined_call_operand.vmem [shape: f32[9,128], index: 14, kind: input, shape index: {}]
  %s15 = inlined_call_operand.vmem [shape: f32[1,128], index: 15, kind: input, shape index: {}]
  %s16 = inlined_call_operand.vmem [shape: bf16[128,64], index: 16, kind: input, shape index: {}]
  %s17 = inlined_call_operand.vmem [shape: f32[1,64], index: 17, kind: input, shape index: {}]
  %s18 = inlined_call_operand.hbm [shape: f32[4,8,8,64], index: 18, kind: output, shape index: {}]
  %s19 = sld [smem:[#allocation0]]
  $region113: #{tpu_custom_call.1} parent=0
    _
  %s21 = ssub.s32 1, %s19
  %s22 = scalar_select 0, %s21, %s19
  $region1: #{tpu_custom_call.1} parent=0
    #allocation2 [shape = 'u8[131072]{0}', space=vmem, size = 0x20000, scoped, tag = 'input window, operand 0']
    #allocation3 [shape = 's32[2]{0}', space=sflag, size = 0x8, scoped, tag = 'scoped memory for tpu_custom_call.1']
    #allocation4 [shape = 's32[2]{0}', space=sflag, size = 0x8, scoped, tag = 'scoped memory for tpu_custom_call.1']
    #allocation5 [shape = 'u8[65536]{0}', space=vmem, size = 0x10000, scoped, tag = 'input window, operand 3, single buffered']
    #allocation6 [shape = 's32[1]{0}', space=sflag, size = 0x4, scoped, tag = 'scoped memory for tpu_custom_call.1']
    #allocation7 [shape = 'u8[131072]{0}', space=vmem, size = 0x20000, scoped, tag = 'output window, operand 0']
    %23 = vsyncpa [#allocation3], 0
    %s24 = scalar_lea.sflag [#allocation3], 1
    %25 = vsyncpa %s24, 0
    %26 = vsyncpa [#allocation6], 0
    %27 = vsyncpa [#allocation4], 0
    %s28 = scalar_lea.sflag [#allocation4], 1
    %29 = vsyncpa %s28, 0
    loop: start=0, step=1, limit=4
    $region2: #{tpu_custom_call.1} parent=1 // loop_pre_header
      _
    $region3: #{tpu_custom_call.1} parent=1 // loop_header
      %s31 = sphi 0, %s35
      %p32 = scmp.ge.s32.totalorder %s31, 4
      %s41 = sphi 0, %s43
      %s44 = sphi 0, %s41
      %s45 = sphi 0, %s44
      %s61 = sphi 0, %s45
      %s65 = sphi 0, %s65
      %s67 = sphi 0, %s65
      %s68 = sphi 0, %s67
      %s82 = sphi 0, %s68
      %s86 = sphi 0, %s86
      %s88 = sphi 0, %s86
      %s89 = sphi 0, %s88
      %s103 = sphi 0, %s89
      %s107 = sphi 0, %s107
      %s109 = sphi 0, %s107
      %s110 = sphi 0, %s109
      %s124 = sphi 0, %s110
      %s128 = sphi 0, %s128
      %s130 = sphi 0, %s128
      %s131 = sphi 0, %s130
      %s145 = sphi 0, %s131
      %s149 = sphi 0, %s149
      %s151 = sphi 0, %s149
      %s152 = sphi 0, %s151
      %s166 = sphi 0, %s152
      %s170 = sphi 0, %s170
      %s172 = sphi 0, %s170
      %s173 = sphi 0, %s172
      %s187 = sphi 0, %s173
      %s191 = sphi 0, %s191
      %s193 = sphi 0, %s191
      %s194 = sphi 0, %s193
      %s208 = sphi 0, %s194
      %s212 = sphi 0, %s212
      %s214 = sphi 0, %s212
      %s215 = sphi 0, %s214
      %s229 = sphi 0, %s215
      %s233 = sphi 0, %s233
      %s235 = sphi 0, %s233
      %s236 = sphi 0, %s235
      %s250 = sphi 0, %s236
      %s254 = sphi 0, %s254
      %s256 = sphi 0, %s254
      %s257 = sphi 0, %s256
      %s271 = sphi 0, %s257
      %s275 = sphi 0, %s275
      %s277 = sphi 0, %s275
      %s278 = sphi 0, %s277
      %s292 = sphi 0, %s278
      %s296 = sphi 0, %s296
      %s298 = sphi 0, %s296
      %s299 = sphi 0, %s298
      %s313 = sphi 0, %s299
      %s317 = sphi 0, %s317
      %s319 = sphi 0, %s317
      %s320 = sphi 0, %s319
      %s334 = sphi 0, %s320
      %s338 = sphi 0, %s338
      %s340 = sphi 0, %s338
      %s341 = sphi 0, %s340
      %s355 = sphi 0, %s341
      %s359 = sphi 0, %s359
      %s361 = sphi 0, %s359
      %s362 = sphi 0, %s361
      %s376 = sphi 0, %s362
      %s380 = sphi 0, %s380
      %s382 = sphi 0, %s380
      %s383 = sphi 0, %s382
      %s397 = sphi 0, %s383
      %s401 = sphi 0, %s401
      %s403 = sphi 0, %s401
      %s404 = sphi 0, %s403
      %s418 = sphi 0, %s404
      %s424 = sphi 0, %s426
      %s427 = sphi 0, %s424
      %s428 = sphi 0, %s427
      %s444 = sphi 0, %s428
    $region4: #{tpu_custom_call.1} parent=1 // loop_header_branch
      %34 = sbr.rel (%p32) target = $region8
    $region5: #{tpu_custom_call.1} parent=1 // loop_body
      %s36 = ssub.s32 %s31, 1
      %s37 = ssub.s32 %s31, 2
      %s38 = sadd.s32 %s31, 1
      %s39 = ssub.s32 %s31, %s38
      %p40 = scmp.eq.s32.totalorder %s39, 0
      %s42 = sadd.s32 %s41, 1
      %s43 = scalar_select %p40, %s41, %s42
      %p46 = pneg %p40
      %p47 = scmp.eq.s32.totalorder %s31, 1
      %p48 = por %p46, %p47
      %p49 = scmp.ne.s32.totalorder %s41, %s44
      %p50 = scmp.eq.s32.totalorder %s31, 0
      %p51 = por %p49, %p50
      %p52 = scmp.ne.s32.totalorder %s41, %s44
      %p53 = scmp.eq.s32.totalorder %s36, 1
      %p54 = por %p52, %p53
      %p55 = scmp.ne.s32.totalorder %s44, %s45
      %p56 = scmp.eq.s32.totalorder %s36, 0
      %p57 = por %p55, %p56
      %p58 = scmp.ne.s32.totalorder %s44, %s45
      %p59 = scmp.eq.s32.totalorder %s37, 1
      %p60 = por %p58, %p59
      %p62 = scmp.ne.s32.totalorder %s45, %s61
      %p63 = scmp.eq.s32.totalorder %s37, 0
      %p64 = por %p62, %p63
      %s66 = sadd.s32 %s65, 1
      %p69 = scmp.eq.s32.totalorder %s31, 1
      %p70 = scmp.ne.s32.totalorder %s65, %s67
      %p71 = scmp.eq.s32.totalorder %s31, 0
      %p72 = por %p70, %p71
      %p73 = scmp.ne.s32.totalorder %s65, %s67
      %p74 = scmp.eq.s32.totalorder %s36, 1
      %p75 = por %p73, %p74
      %p76 = scmp.ne.s32.totalorder %s67, %s68
      %p77 = scmp.eq.s32.totalorder %s36, 0
      %p78 = por %p76, %p77
      %p79 = scmp.ne.s32.totalorder %s67, %s68
      %p80 = scmp.eq.s32.totalorder %s37, 1
      %p81 = por %p79, %p80
      %p83 = scmp.ne.s32.totalorder %s68, %s82
      %p84 = scmp.eq.s32.totalorder %s37, 0
      %p85 = por %p83, %p84
      %s87 = sadd.s32 %s86, 1
      %p90 = scmp.eq.s32.totalorder %s31, 1
      %p91 = scmp.ne.s32.totalorder %s86, %s88
      %p92 = scmp.eq.s32.totalorder %s31, 0
      %p93 = por %p91, %p92
      %p94 = scmp.ne.s32.totalorder %s86, %s88
      %p95 = scmp.eq.s32.totalorder %s36, 1
      %p96 = por %p94, %p95
      %p97 = scmp.ne.s32.totalorder %s88, %s89
      %p98 = scmp.eq.s32.totalorder %s36, 0
      %p99 = por %p97, %p98
      %p100 = scmp.ne.s32.totalorder %s88, %s89
      %p101 = scmp.eq.s32.totalorder %s37, 1
      %p102 = por %p100, %p101
      %p104 = scmp.ne.s32.totalorder %s89, %s103
      %p105 = scmp.eq.s32.totalorder %s37, 0
      %p106 = por %p104, %p105
      %s108 = sadd.s32 %s107, 1
      %p111 = scmp.eq.s32.totalorder %s31, 1
      %p112 = scmp.ne.s32.totalorder %s107, %s109
      %p113 = scmp.eq.s32.totalorder %s31, 0
      %p114 = por %p112, %p113
      %p115 = scmp.ne.s32.totalorder %s107, %s109
      %p116 = scmp.eq.s32.totalorder %s36, 1
      %p117 = por %p115, %p116
      %p118 = scmp.ne.s32.totalorder %s109, %s110
      %p119 = scmp.eq.s32.totalorder %s36, 0
      %p120 = por %p118, %p119
      %p121 = scmp.ne.s32.totalorder %s109, %s110
      %p122 = scmp.eq.s32.totalorder %s37, 1
      %p123 = por %p121, %p122
      %p125 = scmp.ne.s32.totalorder %s110, %s124
      %p126 = scmp.eq.s32.totalorder %s37, 0
      %p127 = por %p125, %p126
      %s129 = sadd.s32 %s128, 1
      %p132 = scmp.eq.s32.totalorder %s31, 1
      %p133 = scmp.ne.s32.totalorder %s128, %s130
      %p134 = scmp.eq.s32.totalorder %s31, 0
      %p135 = por %p133, %p134
      %p136 = scmp.ne.s32.totalorder %s128, %s130
      %p137 = scmp.eq.s32.totalorder %s36, 1
      %p138 = por %p136, %p137
      %p139 = scmp.ne.s32.totalorder %s130, %s131
      %p140 = scmp.eq.s32.totalorder %s36, 0
      %p141 = por %p139, %p140
      %p142 = scmp.ne.s32.totalorder %s130, %s131
      %p143 = scmp.eq.s32.totalorder %s37, 1
      %p144 = por %p142, %p143
      %p146 = scmp.ne.s32.totalorder %s131, %s145
      %p147 = scmp.eq.s32.totalorder %s37, 0
      %p148 = por %p146, %p147
      %s150 = sadd.s32 %s149, 1
      %p153 = scmp.eq.s32.totalorder %s31, 1
      %p154 = scmp.ne.s32.totalorder %s149, %s151
      %p155 = scmp.eq.s32.totalorder %s31, 0
      %p156 = por %p154, %p155
      %p157 = scmp.ne.s32.totalorder %s149, %s151
      %p158 = scmp.eq.s32.totalorder %s36, 1
      %p159 = por %p157, %p158
      %p160 = scmp.ne.s32.totalorder %s151, %s152
      %p161 = scmp.eq.s32.totalorder %s36, 0
      %p162 = por %p160, %p161
      %p163 = scmp.ne.s32.totalorder %s151, %s152
      %p164 = scmp.eq.s32.totalorder %s37, 1
      %p165 = por %p163, %p164
      %p167 = scmp.ne.s32.totalorder %s152, %s166
      %p168 = scmp.eq.s32.totalorder %s37, 0
      %p169 = por %p167, %p168
      %s171 = sadd.s32 %s170, 1
      %p174 = scmp.eq.s32.totalorder %s31, 1
      %p175 = scmp.ne.s32.totalorder %s170, %s172
      %p176 = scmp.eq.s32.totalorder %s31, 0
      %p177 = por %p175, %p176
      %p178 = scmp.ne.s32.totalorder %s170, %s172
      %p179 = scmp.eq.s32.totalorder %s36, 1
      %p180 = por %p178, %p179
      %p181 = scmp.ne.s32.totalorder %s172, %s173
      %p182 = scmp.eq.s32.totalorder %s36, 0
      %p183 = por %p181, %p182
      %p184 = scmp.ne.s32.totalorder %s172, %s173
      %p185 = scmp.eq.s32.totalorder %s37, 1
      %p186 = por %p184, %p185
      %p188 = scmp.ne.s32.totalorder %s173, %s187
      %p189 = scmp.eq.s32.totalorder %s37, 0
      %p190 = por %p188, %p189
      %s192 = sadd.s32 %s191, 1
      %p195 = scmp.eq.s32.totalorder %s31, 1
      %p196 = scmp.ne.s32.totalorder %s191, %s193
      %p197 = scmp.eq.s32.totalorder %s31, 0
      %p198 = por %p196, %p197
      %p199 = scmp.ne.s32.totalorder %s191, %s193
      %p200 = scmp.eq.s32.totalorder %s36, 1
      %p201 = por %p199, %p200
      %p202 = scmp.ne.s32.totalorder %s193, %s194
      %p203 = scmp.eq.s32.totalorder %s36, 0
      %p204 = por %p202, %p203
      %p205 = scmp.ne.s32.totalorder %s193, %s194
      %p206 = scmp.eq.s32.totalorder %s37, 1
      %p207 = por %p205, %p206
      %p209 = scmp.ne.s32.totalorder %s194, %s208
      %p210 = scmp.eq.s32.totalorder %s37, 0
      %p211 = por %p209, %p210
      %s213 = sadd.s32 %s212, 1
      %p216 = scmp.eq.s32.totalorder %s31, 1
      %p217 = scmp.ne.s32.totalorder %s212, %s214
      %p218 = scmp.eq.s32.totalorder %s31, 0
      %p219 = por %p217, %p218
      %p220 = scmp.ne.s32.totalorder %s212, %s214
      %p221 = scmp.eq.s32.totalorder %s36, 1
      %p222 = por %p220, %p221
      %p223 = scmp.ne.s32.totalorder %s214, %s215
      %p224 = scmp.eq.s32.totalorder %s36, 0
      %p225 = por %p223, %p224
      %p226 = scmp.ne.s32.totalorder %s214, %s215
      %p227 = scmp.eq.s32.totalorder %s37, 1
      %p228 = por %p226, %p227
      %p230 = scmp.ne.s32.totalorder %s215, %s229
      %p231 = scmp.eq.s32.totalorder %s37, 0
      %p232 = por %p230, %p231
      %s234 = sadd.s32 %s233, 1
      %p237 = scmp.eq.s32.totalorder %s31, 1
      %p238 = scmp.ne.s32.totalorder %s233, %s235
      %p239 = scmp.eq.s32.totalorder %s31, 0
      %p240 = por %p238, %p239
      %p241 = scmp.ne.s32.totalorder %s233, %s235
      %p242 = scmp.eq.s32.totalorder %s36, 1
      %p243 = por %p241, %p242
      %p244 = scmp.ne.s32.totalorder %s235, %s236
      %p245 = scmp.eq.s32.totalorder %s36, 0
      %p246 = por %p244, %p245
      %p247 = scmp.ne.s32.totalorder %s235, %s236
      %p248 = scmp.eq.s32.totalorder %s37, 1
      %p249 = por %p247, %p248
      %p251 = scmp.ne.s32.totalorder %s236, %s250
      %p252 = scmp.eq.s32.totalorder %s37, 0
      %p253 = por %p251, %p252
      %s255 = sadd.s32 %s254, 1
      %p258 = scmp.eq.s32.totalorder %s31, 1
      %p259 = scmp.ne.s32.totalorder %s254, %s256
      %p260 = scmp.eq.s32.totalorder %s31, 0
      %p261 = por %p259, %p260
      %p262 = scmp.ne.s32.totalorder %s254, %s256
      %p263 = scmp.eq.s32.totalorder %s36, 1
      %p264 = por %p262, %p263
      %p265 = scmp.ne.s32.totalorder %s256, %s257
      %p266 = scmp.eq.s32.totalorder %s36, 0
      %p267 = por %p265, %p266
      %p268 = scmp.ne.s32.totalorder %s256, %s257
      %p269 = scmp.eq.s32.totalorder %s37, 1
      %p270 = por %p268, %p269
      %p272 = scmp.ne.s32.totalorder %s257, %s271
      %p273 = scmp.eq.s32.totalorder %s37, 0
      %p274 = por %p272, %p273
      %s276 = sadd.s32 %s275, 1
      %p279 = scmp.eq.s32.totalorder %s31, 1
      %p280 = scmp.ne.s32.totalorder %s275, %s277
      %p281 = scmp.eq.s32.totalorder %s31, 0
      %p282 = por %p280, %p281
      %p283 = scmp.ne.s32.totalorder %s275, %s277
      %p284 = scmp.eq.s32.totalorder %s36, 1
      %p285 = por %p283, %p284
      %p286 = scmp.ne.s32.totalorder %s277, %s278
      %p287 = scmp.eq.s32.totalorder %s36, 0
      %p288 = por %p286, %p287
      %p289 = scmp.ne.s32.totalorder %s277, %s278
      %p290 = scmp.eq.s32.totalorder %s37, 1
      %p291 = por %p289, %p290
      %p293 = scmp.ne.s32.totalorder %s278, %s292
      %p294 = scmp.eq.s32.totalorder %s37, 0
      %p295 = por %p293, %p294
      %s297 = sadd.s32 %s296, 1
      %p300 = scmp.eq.s32.totalorder %s31, 1
      %p301 = scmp.ne.s32.totalorder %s296, %s298
      %p302 = scmp.eq.s32.totalorder %s31, 0
      %p303 = por %p301, %p302
      %p304 = scmp.ne.s32.totalorder %s296, %s298
      %p305 = scmp.eq.s32.totalorder %s36, 1
      %p306 = por %p304, %p305
      %p307 = scmp.ne.s32.totalorder %s298, %s299
      %p308 = scmp.eq.s32.totalorder %s36, 0
      %p309 = por %p307, %p308
      %p310 = scmp.ne.s32.totalorder %s298, %s299
      %p311 = scmp.eq.s32.totalorder %s37, 1
      %p312 = por %p310, %p311
      %p314 = scmp.ne.s32.totalorder %s299, %s313
      %p315 = scmp.eq.s32.totalorder %s37, 0
      %p316 = por %p314, %p315
      %s318 = sadd.s32 %s317, 1
      %p321 = scmp.eq.s32.totalorder %s31, 1
      %p322 = scmp.ne.s32.totalorder %s317, %s319
      %p323 = scmp.eq.s32.totalorder %s31, 0
      %p324 = por %p322, %p323
      %p325 = scmp.ne.s32.totalorder %s317, %s319
      %p326 = scmp.eq.s32.totalorder %s36, 1
      %p327 = por %p325, %p326
      %p328 = scmp.ne.s32.totalorder %s319, %s320
      %p329 = scmp.eq.s32.totalorder %s36, 0
      %p330 = por %p328, %p329
      %p331 = scmp.ne.s32.totalorder %s319, %s320
      %p332 = scmp.eq.s32.totalorder %s37, 1
      %p333 = por %p331, %p332
      %p335 = scmp.ne.s32.totalorder %s320, %s334
      %p336 = scmp.eq.s32.totalorder %s37, 0
      %p337 = por %p335, %p336
      %s339 = sadd.s32 %s338, 1
      %p342 = scmp.eq.s32.totalorder %s31, 1
      %p343 = scmp.ne.s32.totalorder %s338, %s340
      %p344 = scmp.eq.s32.totalorder %s31, 0
      %p345 = por %p343, %p344
      %p346 = scmp.ne.s32.totalorder %s338, %s340
      %p347 = scmp.eq.s32.totalorder %s36, 1
      %p348 = por %p346, %p347
      %p349 = scmp.ne.s32.totalorder %s340, %s341
      %p350 = scmp.eq.s32.totalorder %s36, 0
      %p351 = por %p349, %p350
      %p352 = scmp.ne.s32.totalorder %s340, %s341
      %p353 = scmp.eq.s32.totalorder %s37, 1
      %p354 = por %p352, %p353
      %p356 = scmp.ne.s32.totalorder %s341, %s355
      %p357 = scmp.eq.s32.totalorder %s37, 0
      %p358 = por %p356, %p357
      %s360 = sadd.s32 %s359, 1
      %p363 = scmp.eq.s32.totalorder %s31, 1
      %p364 = scmp.ne.s32.totalorder %s359, %s361
      %p365 = scmp.eq.s32.totalorder %s31, 0
      %p366 = por %p364, %p365
      %p367 = scmp.ne.s32.totalorder %s359, %s361
      %p368 = scmp.eq.s32.totalorder %s36, 1
      %p369 = por %p367, %p368
      %p370 = scmp.ne.s32.totalorder %s361, %s362
      %p371 = scmp.eq.s32.totalorder %s36, 0
      %p372 = por %p370, %p371
      %p373 = scmp.ne.s32.totalorder %s361, %s362
      %p374 = scmp.eq.s32.totalorder %s37, 1
      %p375 = por %p373, %p374
      %p377 = scmp.ne.s32.totalorder %s362, %s376
      %p378 = scmp.eq.s32.totalorder %s37, 0
      %p379 = por %p377, %p378
      %s381 = sadd.s32 %s380, 1
      %p384 = scmp.eq.s32.totalorder %s31, 1
      %p385 = scmp.ne.s32.totalorder %s380, %s382
      %p386 = scmp.eq.s32.totalorder %s31, 0
      %p387 = por %p385, %p386
      %p388 = scmp.ne.s32.totalorder %s380, %s382
      %p389 = scmp.eq.s32.totalorder %s36, 1
      %p390 = por %p388, %p389
      %p391 = scmp.ne.s32.totalorder %s382, %s383
      %p392 = scmp.eq.s32.totalorder %s36, 0
      %p393 = por %p391, %p392
      %p394 = scmp.ne.s32.totalorder %s382, %s383
      %p395 = scmp.eq.s32.totalorder %s37, 1
      %p396 = por %p394, %p395
      %p398 = scmp.ne.s32.totalorder %s383, %s397
      %p399 = scmp.eq.s32.totalorder %s37, 0
      %p400 = por %p398, %p399
      %s402 = sadd.s32 %s401, 1
      %p405 = scmp.eq.s32.totalorder %s31, 1
      %p406 = scmp.ne.s32.totalorder %s401, %s403
      %p407 = scmp.eq.s32.totalorder %s31, 0
      %p408 = por %p406, %p407
      %p409 = scmp.ne.s32.totalorder %s401, %s403
      %p410 = scmp.eq.s32.totalorder %s36, 1
      %p411 = por %p409, %p410
      %p412 = scmp.ne.s32.totalorder %s403, %s404
      %p413 = scmp.eq.s32.totalorder %s36, 0
      %p414 = por %p412, %p413
      %p415 = scmp.ne.s32.totalorder %s403, %s404
      %p416 = scmp.eq.s32.totalorder %s37, 1
      %p417 = por %p415, %p416
      %p419 = scmp.ne.s32.totalorder %s404, %s418
      %p420 = scmp.eq.s32.totalorder %s37, 0
      %p421 = por %p419, %p420
      %s422 = ssub.s32 %s31, %s38
      %p423 = scmp.eq.s32.totalorder %s422, 0
      %s425 = sadd.s32 %s424, 1
      %s426 = scalar_select %p423, %s424, %s425
      %p429 = pneg %p423
      %p430 = scmp.eq.s32.totalorder %s31, 1
      %p431 = por %p429, %p430
      %p432 = scmp.ne.s32.totalorder %s424, %s427
      %p433 = scmp.eq.s32.totalorder %s31, 0
      %p434 = por %p432, %p433
      %p435 = scmp.ne.s32.totalorder %s424, %s427
      %p436 = scmp.eq.s32.totalorder %s36, 1
      %p437 = por %p435, %p436
      %p438 = scmp.ne.s32.totalorder %s427, %s428
      %p439 = scmp.eq.s32.totalorder %s36, 0
      %p440 = por %p438, %p439
      %p441 = scmp.ne.s32.totalorder %s427, %s428
      %p442 = scmp.eq.s32.totalorder %s37, 1
      %p443 = por %p441, %p442
      %p445 = scmp.ne.s32.totalorder %s428, %s444
      %p446 = scmp.eq.s32.totalorder %s37, 0
      %p447 = por %p445, %p446
      %p448 = scmp.le.s32.totalorder 1, %s31
      %p449 = scmp.lt.s32.totalorder %s31, 3
      %p450 = pnand %p448, %p449
      %p451 = pneg %p450
      // Predicated region
      $region9: #{tpu_custom_call.1} parent=5 // pred_check
        _
      $region10: #{tpu_custom_call.1} parent=5 // pred_check_branch
        %453 = sbr.rel (%p450) target = $region12
      $region11: #{tpu_custom_call.1} parent=5 // pred_region
        %s454 = ssub.s32 %s31, 1
        // Predicated region
        $region13: #{tpu_custom_call.1} parent=11 // pred_check
          %p455 = pneg %p78
        $region14: #{tpu_custom_call.1} parent=11 // pred_check_branch
          %457 = sbr.rel (%p455) target = $region16
        $region15: #{tpu_custom_call.1} parent=11 // pred_region
          _
        $region16: #{tpu_custom_call.1} parent=11 // pred_fallthru
          _
        // Predicated region
        $region17: #{tpu_custom_call.1} parent=11 // pred_check
          %p458 = pneg %p99
        $region18: #{tpu_custom_call.1} parent=11 // pred_check_branch
          %460 = sbr.rel (%p458) target = $region20
        $region19: #{tpu_custom_call.1} parent=11 // pred_region
          _
        $region20: #{tpu_custom_call.1} parent=11 // pred_fallthru
          _
        // Predicated region
        $region21: #{tpu_custom_call.1} parent=11 // pred_check
          %p461 = pneg %p120
        $region22: #{tpu_custom_call.1} parent=11 // pred_check_branch
          %463 = sbr.rel (%p461) target = $region24
        $region23: #{tpu_custom_call.1} parent=11 // pred_region
          %s465 = ssub.s32 2048, 2048
          %466 = vsyncadd [#allocation6], %s465
          %s467 = sshll.u32 [#allocation5], 4
          %s468 = int_to_ptr.vmem [resolvable:$true] %s467
          %473 = dma.hbm_to_vmem [thread:$0]  %s3, 2048, %s468, [#allocation6], 128, 128, 8
        $region24: #{tpu_custom_call.1} parent=11 // pred_fallthru
          _
        // Predicated region
        $region25: #{tpu_custom_call.1} parent=11 // pred_check
          %p474 = pneg %p141
        $region26: #{tpu_custom_call.1} parent=11 // pred_check_branch
          %476 = sbr.rel (%p474) target = $region28
        $region27: #{tpu_custom_call.1} parent=11 // pred_region
          _
        $region28: #{tpu_custom_call.1} parent=11 // pred_fallthru
          _
        // Predicated region
        $region29: #{tpu_custom_call.1} parent=11 // pred_check
          %p477 = pneg %p162
        $region30: #{tpu_custom_call.1} parent=11 // pred_check_branch
          %479 = sbr.rel (%p477) target = $region32
        $region31: #{tpu_custom_call.1} parent=11 // pred_region
          _
        $region32: #{tpu_custom_call.1} parent=11 // pred_fallthru
          _
        // Predicated region
        $region33: #{tpu_custom_call.1} parent=11 // pred_check
          %p480 = pneg %p183
        $region34: #{tpu_custom_call.1} parent=11 // pred_check_branch
          %482 = sbr.rel (%p480) target = $region36
        $region35: #{tpu_custom_call.1} parent=11 // pred_region
          _
        $region36: #{tpu_custom_call.1} parent=11 // pred_fallthru
          _
        // Predicated region
        $region37: #{tpu_custom_call.1} parent=11 // pred_check
          %p483 = pneg %p204
        $region38: #{tpu_custom_call.1} parent=11 // pred_check_branch
          %485 = sbr.rel (%p483) target = $region40
        $region39: #{tpu_custom_call.1} parent=11 // pred_region
          _
        $region40: #{tpu_custom_call.1} parent=11 // pred_fallthru
          _
        // Predicated region
        $region41: #{tpu_custom_call.1} parent=11 // pred_check
          %p486 = pneg %p225
        $region42: #{tpu_custom_call.1} parent=11 // pred_check_branch
          %488 = sbr.rel (%p486) target = $region44
        $region43: #{tpu_custom_call.1} parent=11 // pred_region
          _
        $region44: #{tpu_custom_call.1} parent=11 // pred_fallthru
          _
        // Predicated region
        $region45: #{tpu_custom_call.1} parent=11 // pred_check
          %p489 = pneg %p246
        $region46: #{tpu_custom_call.1} parent=11 // pred_check_branch
          %491 = sbr.rel (%p489) target = $region48
        $region47: #{tpu_custom_call.1} parent=11 // pred_region
          _
        $region48: #{tpu_custom_call.1} parent=11 // pred_fallthru
          _
        // Predicated region
        $region49: #{tpu_custom_call.1} parent=11 // pred_check
          %p492 = pneg %p267
        $region50: #{tpu_custom_call.1} parent=11 // pred_check_branch
          %494 = sbr.rel (%p492) target = $region52
        $region51: #{tpu_custom_call.1} parent=11 // pred_region
          _
        $region52: #{tpu_custom_call.1} parent=11 // pred_fallthru
          _
        // Predicated region
        $region53: #{tpu_custom_call.1} parent=11 // pred_check
          %p495 = pneg %p288
        $region54: #{tpu_custom_call.1} parent=11 // pred_check_branch
          %497 = sbr.rel (%p495) target = $region56
        $region55: #{tpu_custom_call.1} parent=11 // pred_region
          _
        $region56: #{tpu_custom_call.1} parent=11 // pred_fallthru
          _
        // Predicated region
        $region57: #{tpu_custom_call.1} parent=11 // pred_check
          %p498 = pneg %p309
        $region58: #{tpu_custom_call.1} parent=11 // pred_check_branch
          %500 = sbr.rel (%p498) target = $region60
        $region59: #{tpu_custom_call.1} parent=11 // pred_region
          _
        $region60: #{tpu_custom_call.1} parent=11 // pred_fallthru
          _
        // Predicated region
        $region61: #{tpu_custom_call.1} parent=11 // pred_check
          %p501 = pneg %p330
        $region62: #{tpu_custom_call.1} parent=11 // pred_check_branch
          %503 = sbr.rel (%p501) target = $region64
        $region63: #{tpu_custom_call.1} parent=11 // pred_region
          _
        $region64: #{tpu_custom_call.1} parent=11 // pred_fallthru
          _
        // Predicated region
        $region65: #{tpu_custom_call.1} parent=11 // pred_check
          %p504 = pneg %p351
        $region66: #{tpu_custom_call.1} parent=11 // pred_check_branch
          %506 = sbr.rel (%p504) target = $region68
        $region67: #{tpu_custom_call.1} parent=11 // pred_region
          _
        $region68: #{tpu_custom_call.1} parent=11 // pred_fallthru
          _
        // Predicated region
        $region69: #{tpu_custom_call.1} parent=11 // pred_check
          %p507 = pneg %p372
        $region70: #{tpu_custom_call.1} parent=11 // pred_check_branch
          %509 = sbr.rel (%p507) target = $region72
        $region71: #{tpu_custom_call.1} parent=11 // pred_region
          _
        $region72: #{tpu_custom_call.1} parent=11 // pred_fallthru
          _
        // Predicated region
        $region73: #{tpu_custom_call.1} parent=11 // pred_check
          %p510 = pneg %p393
        $region74: #{tpu_custom_call.1} parent=11 // pred_check_branch
          %512 = sbr.rel (%p510) target = $region76
        $region75: #{tpu_custom_call.1} parent=11 // pred_region
          _
        $region76: #{tpu_custom_call.1} parent=11 // pred_fallthru
          _
        // Predicated region
        $region77: #{tpu_custom_call.1} parent=11 // pred_check
          %p513 = pneg %p414
        $region78: #{tpu_custom_call.1} parent=11 // pred_check_branch
          %515 = sbr.rel (%p513) target = $region80
        $region79: #{tpu_custom_call.1} parent=11 // pred_region
          _
        $region80: #{tpu_custom_call.1} parent=11 // pred_fallthru
          _
      $region12: #{tpu_custom_call.1} parent=5 // pred_fallthru
        _
      %p516 = scmp.lt.s32.totalorder %s31, 2
      // Predicated region
      $region81: #{tpu_custom_call.1} parent=5 // pred_check
        %p517 = pneg %p516
      $region82: #{tpu_custom_call.1} parent=5 // pred_check_branch
        %519 = sbr.rel (%p517) target = $region84
      $region83: #{tpu_custom_call.1} parent=5 // pred_region
        // Predicated region
        $region85: #{tpu_custom_call.1} parent=83 // pred_check
          %p520 = pneg %p51
        $region86: #{tpu_custom_call.1} parent=83 // pred_check_branch
          %522 = sbr.rel (%p520) target = $region88
        $region87: #{tpu_custom_call.1} parent=83 // pred_region
          %s523 = sand.u32 %s41, 1
          %s524 = scalar_lea.sflag [#allocation3], %s523
          %s525 = sand.u32 %s41, 1
          %s526 = smul.addr %s525, 128
          %s527 = scalar_lea.vmem [#allocation2], %s526
          %s528 = smul.u32 2, %s31
          %s530 = ssub.s32 2048, 2048
          %531 = vsyncadd %s524, %s530
          %s532 = smul.addr %s528, 8
          %s533 = smul.addr %s532, 128
          %s534 = scalar_lea.hbm %s0, %s533
          %s535 = sshll.u32 %s527, 4
          %s536 = int_to_ptr.vmem [resolvable:$true] %s535
          %541 = dma.hbm_to_vmem [thread:$0]  %s534, 2048, %s536, %s524, 128, 128, 8
        $region88: #{tpu_custom_call.1} parent=83 // pred_fallthru
          _
      $region84: #{tpu_custom_call.1} parent=5 // pred_fallthru
        _
      %p542 = scmp.le.s32.totalorder 1, %s31
      %p543 = scmp.lt.s32.totalorder %s31, 3
      %p544 = pnand %p542, %p543
      %p545 = pneg %p544
      // Predicated region
      $region89: #{tpu_custom_call.1} parent=5 // pred_check
        _
      $region90: #{tpu_custom_call.1} parent=5 // pred_check_branch
        %547 = sbr.rel (%p544) target = $region92
      $region91: #{tpu_custom_call.1} parent=5 // pred_region
        %s548 = ssub.s32 %s31, 1
        %s549 = sand.u32 %s44, 1
        %s550 = scalar_lea.sflag [#allocation3], %s549
        %s551 = sand.u32 %s44, 1
        %s552 = smul.addr %s551, 128
        %s553 = scalar_lea.vmem [#allocation2], %s552
        // Predicated region
        $region93: #{tpu_custom_call.1} parent=91 // pred_check
          %p554 = pneg %p57
        $region94: #{tpu_custom_call.1} parent=91 // pred_check_branch
          %556 = sbr.rel (%p554) target = $region96
        $region95: #{tpu_custom_call.1} parent=91 // pred_region
          %557 = dma.done %s550, 2048
        $region96: #{tpu_custom_call.1} parent=91 // pred_fallthru
          _
        // Predicated region
        $region97: #{tpu_custom_call.1} parent=91 // pred_check
          %p558 = pneg %p120
        $region98: #{tpu_custom_call.1} parent=91 // pred_check_branch
          %560 = sbr.rel (%p558) target = $region100
        $region99: #{tpu_custom_call.1} parent=91 // pred_region
          %561 = dma.done [#allocation6], 2048
        $region100: #{tpu_custom_call.1} parent=91 // pred_fallthru
          _
        %s562 = sand.u32 %s44, 1
        %s563 = scalar_lea.sflag [#allocation3], %s562
        %s564 = sand.u32 %s44, 1
        %s565 = smul.addr %s564, 128
        %s566 = scalar_lea.vmem [#allocation2], %s565
        %p567 = pneg %p57
        %p568 = pneg %p54
        %p569 = pneg %p78
        %p570 = pneg %p75
        %p571 = pneg %p99
        %p572 = pneg %p96
        %p573 = pneg %p120
        %p574 = pneg %p117
        %p575 = pneg %p141
        %p576 = pneg %p138
        %p577 = pneg %p162
        %p578 = pneg %p159
        %p579 = pneg %p183
        %p580 = pneg %p180
        %p581 = pneg %p204
        %p582 = pneg %p201
        %p583 = pneg %p225
        %p584 = pneg %p222
        %p585 = pneg %p246
        %p586 = pneg %p243
        %p587 = pneg %p267
        %p588 = pneg %p264
        %p589 = pneg %p288
        %p590 = pneg %p285
        %p591 = pneg %p309
        %p592 = pneg %p306
        %p593 = pneg %p330
        %p594 = pneg %p327
        %p595 = pneg %p351
        %p596 = pneg %p348
        %p597 = pneg %p372
        %p598 = pneg %p369
        %p599 = pneg %p393
        %p600 = pneg %p390
        %p601 = pneg %p414
        %p602 = pneg %p411
        %p603 = pneg %p440
        %p604 = pneg %p437
        %s605 = sand.u32 %s427, 1
        %s606 = scalar_lea.sflag [#allocation4], %s605
        %s607 = sand.u32 %s427, 1
        %s608 = smul.addr %s607, 128
        %s609 = scalar_lea.vmem [#allocation7], %s608
        %s610 = smul.u32 2, %s36
        %s611 = smul.u32 2, %s36
        %v613 = vld [vmem:[%s1] sm:$0xff]
        %v614 = vld [vmem:[%s1 + $0x8] sm:$0xff]
        %v615 = vld [vmem:[%s1 + $0x10] sm:$0xff]
        %v616 = vld [vmem:[%s1 + $0x18] sm:$0xff]
        %v617 = vld [vmem:[%s1 + $0x20] sm:$0xff]
        %v618 = vld [vmem:[%s1 + $0x28] sm:$0xff]
        %v619 = vld [vmem:[%s1 + $0x30] sm:$0xff]
        %v620 = vld [vmem:[%s1 + $0x38] sm:$0xff]
        %v621 = vld [vmem:[%s1 + $0x40] sm:$0xff]
        %v622 = vld [vmem:[%s1 + $0x48] sm:$0xff]
        %v623 = vld [vmem:[%s1 + $0x50] sm:$0xff]
        %v624 = vld [vmem:[%s1 + $0x58] sm:$0xff]
        %v625 = vld [vmem:[%s1 + $0x60] sm:$0xff]
        %v626 = vld [vmem:[%s1 + $0x68] sm:$0xff]
        %v627 = vld [vmem:[%s1 + $0x70] sm:$0xff]
        %v628 = vld [vmem:[%s1 + $0x78] sm:$0xff]
        %v629 = vld [vmem:[%s553] sm:$0xff]
        %v630 = vld [vmem:[%s553 + $0x8] sm:$0xff]
        %v631 = vld [vmem:[%s553 + $0x10] sm:$0xff]
        %v632 = vld [vmem:[%s553 + $0x18] sm:$0xff]
        %v633 = vld [vmem:[%s553 + $0x20] sm:$0xff]
        %v634 = vld [vmem:[%s553 + $0x28] sm:$0xff]
        %v635 = vld [vmem:[%s553 + $0x30] sm:$0xff]
        %v636 = vld [vmem:[%s553 + $0x38] sm:$0xff]
        %v637 = vld [vmem:[%s553 + $0x40] sm:$0xff]
        %v638 = vld [vmem:[%s553 + $0x48] sm:$0xff]
        %v639 = vld [vmem:[%s553 + $0x50] sm:$0xff]
        %v640 = vld [vmem:[%s553 + $0x58] sm:$0xff]
        %v641 = vld [vmem:[%s553 + $0x60] sm:$0xff]
        %v642 = vld [vmem:[%s553 + $0x68] sm:$0xff]
        %v643 = vld [vmem:[%s553 + $0x70] sm:$0xff]
        %v644 = vld [vmem:[%s553 + $0x78] sm:$0xff]
        %v645 = vld [vmem:[%s4] sm:$0xff]
        %v646 = vld [vmem:[%s4 + $0x8] sm:$0x1]
        %v647 = vld [vmem:[%s5] sm:$0x1]
        %v648 = vrot.slane %v629, 7
        %v649 = vrot.slane %v630, 7
        %v650 = vrot.slane %v631, 7
        %v651 = vrot.slane %v632, 7
        %v652 = vrot.slane %v633, 7
        %v653 = vrot.slane %v634, 7
        %v654 = vrot.slane %v635, 7
        %v655 = vrot.slane %v636, 7
        %v656 = vrot.slane %v637, 7
        %v657 = vrot.slane %v638, 7
        %v658 = vrot.slane %v639, 7
        %v659 = vrot.slane %v640, 7
        %v660 = vrot.slane %v641, 7
        %v661 = vrot.slane %v642, 7
        %v662 = vrot.slane %v643, 7
        %v663 = vrot.slane %v644, 7
        %v664 = vlaneseq
        %v665 = vshrl.u32 %v664, 7
        %vm666 = vcmp.lt.s32.totalorder %v665, 1
        %v667 = vsel %vm666, %v662, %v663
        %v668 = vsel %vm666, %v661, %v662
        %v669 = vsel %vm666, %v660, %v661
        %v670 = vsel %vm666, %v659, %v660
        %v671 = vsel %vm666, %v658, %v659
        %v672 = vsel %vm666, %v657, %v658
        %v673 = vsel %vm666, %v656, %v657
        %v674 = vsel %vm666, %v655, %v656
        %v675 = vsel %vm666, %v654, %v655
        %v676 = vsel %vm666, %v653, %v654
        %v677 = vsel %vm666, %v652, %v653
        %v678 = vsel %vm666, %v651, %v652
        %v679 = vsel %vm666, %v650, %v651
        %v680 = vsel %vm666, %v649, %v650
        %v681 = vsel %vm666, %v648, %v649
        %v682 = vsel %vm666, %v663, %v648
        %684 = vset.pattern.permute.xlu0 0
        %685 = vperm.xlu0 %684, %v613
        %v686 = vpop.permute.xlu0 %685
        %689 = vset.pattern.permute.xlu0 0
        %690 = vperm.xlu0 %689, %v614
        %v691 = vpop.permute.xlu0 %690
        %694 = vset.pattern.permute.xlu0 0
        %695 = vperm.xlu0 %694, %v615
        %v696 = vpop.permute.xlu0 %695
        %699 = vset.pattern.permute.xlu0 0
        %700 = vperm.xlu0 %699, %v616
        %v701 = vpop.permute.xlu0 %700
        %704 = vset.pattern.permute.xlu0 0
        %705 = vperm.xlu0 %704, %v617
        %v706 = vpop.permute.xlu0 %705
        %709 = vset.pattern.permute.xlu0 0
        %710 = vperm.xlu0 %709, %v618
        %v711 = vpop.permute.xlu0 %710
        %714 = vset.pattern.permute.xlu0 0
        %715 = vperm.xlu0 %714, %v619
        %v716 = vpop.permute.xlu0 %715
        %719 = vset.pattern.permute.xlu0 0
        %720 = vperm.xlu0 %719, %v620
        %v721 = vpop.permute.xlu0 %720
        %724 = vset.pattern.permute.xlu0 0
        %725 = vperm.xlu0 %724, %v621
        %v726 = vpop.permute.xlu0 %725
        %729 = vset.pattern.permute.xlu0 0
        %730 = vperm.xlu0 %729, %v622
        %v731 = vpop.permute.xlu0 %730
        %734 = vset.pattern.permute.xlu0 0
        %735 = vperm.xlu0 %734, %v623
        %v736 = vpop.permute.xlu0 %735
        %739 = vset.pattern.permute.xlu0 0
        %740 = vperm.xlu0 %739, %v624
        %v741 = vpop.permute.xlu0 %740
        %744 = vset.pattern.permute.xlu0 0
        %745 = vperm.xlu0 %744, %v625
        %v746 = vpop.permute.xlu0 %745
        %749 = vset.pattern.permute.xlu0 0
        %750 = vperm.xlu0 %749, %v626
        %v751 = vpop.permute.xlu0 %750
        %754 = vset.pattern.permute.xlu0 0
        %755 = vperm.xlu0 %754, %v627
        %v756 = vpop.permute.xlu0 %755
        %759 = vset.pattern.permute.xlu0 0
        %760 = vperm.xlu0 %759, %v628
        %v761 = vpop.permute.xlu0 %760
        %v763 = vmul.f32 %v667, %v686
        %v764 = vmul.f32 %v682, %v691
        %v765 = vmul.f32 %v681, %v696
        %v766 = vmul.f32 %v680, %v701
        %v767 = vmul.f32 %v679, %v706
        %v768 = vmul.f32 %v678, %v711
        %v769 = vmul.f32 %v677, %v716
        %v770 = vmul.f32 %v676, %v721
        %v771 = vmul.f32 %v675, %v726
        %v772 = vmul.f32 %v674, %v731
        %v773 = vmul.f32 %v673, %v736
        %v774 = vmul.f32 %v672, %v741
        %v775 = vmul.f32 %v671, %v746
        %v776 = vmul.f32 %v670, %v751
        %v777 = vmul.f32 %v669, %v756
        %v778 = vmul.f32 %v668, %v761
        %v779 = vlaneseq
        %v780 = vshrl.u32 %v779, 7
        %v781 = vsub.s32 0, %v780
        %v782 = vrot.slane %v645, %v781
        %v783 = vmul.f32 %v763, %v782
        %v784 = vmul.f32 %v764, %v782
        %v785 = vmul.f32 %v765, %v782
        %v786 = vmul.f32 %v766, %v782
        %v787 = vmul.f32 %v767, %v782
        %v788 = vmul.f32 %v768, %v782
        %v789 = vmul.f32 %v769, %v782
        %v790 = vmul.f32 %v770, %v782
        %v791 = vmul.f32 %v771, %v782
        %v792 = vmul.f32 %v772, %v782
        %v793 = vmul.f32 %v773, %v782
        %v794 = vmul.f32 %v774, %v782
        %v795 = vmul.f32 %v775, %v782
        %v796 = vmul.f32 %v776, %v782
        %v797 = vmul.f32 %v777, %v782
        %v798 = vmul.f32 %v778, %v782
        %v799 = vadd.f32 %v783, 0.0
        %v800 = vadd.f32 %v784, 0.0
        %v801 = vadd.f32 %v785, 0.0
        %v802 = vadd.f32 %v786, 0.0
        %v803 = vadd.f32 %v787, 0.0
        %v804 = vadd.f32 %v788, 0.0
        %v805 = vadd.f32 %v789, 0.0
        %v806 = vadd.f32 %v790, 0.0
        %v807 = vadd.f32 %v791, 0.0
        %v808 = vadd.f32 %v792, 0.0
        %v809 = vadd.f32 %v793, 0.0
        %v810 = vadd.f32 %v794, 0.0
        %v811 = vadd.f32 %v795, 0.0
        %v812 = vadd.f32 %v796, 0.0
        %v813 = vadd.f32 %v797, 0.0
        %v814 = vadd.f32 %v798, 0.0
        %815 = vset.pattern.permute.xlu0 1
        %816 = vperm.xlu0 %815, %v613
        %v817 = vpop.permute.xlu0 %816
        %819 = vset.pattern.permute.xlu0 1
        %820 = vperm.xlu0 %819, %v614
        %v821 = vpop.permute.xlu0 %820
        %823 = vset.pattern.permute.xlu0 1
        %824 = vperm.xlu0 %823, %v615
        %v825 = vpop.permute.xlu0 %824
        %827 = vset.pattern.permute.xlu0 1
        %828 = vperm.xlu0 %827, %v616
        %v829 = vpop.permute.xlu0 %828
        %831 = vset.pattern.permute.xlu0 1
        %832 = vperm.xlu0 %831, %v617
        %v833 = vpop.permute.xlu0 %832
        %835 = vset.pattern.permute.xlu0 1
        %836 = vperm.xlu0 %835, %v618
        %v837 = vpop.permute.xlu0 %836
        %839 = vset.pattern.permute.xlu0 1
        %840 = vperm.xlu0 %839, %v619
        %v841 = vpop.permute.xlu0 %840
        %843 = vset.pattern.permute.xlu0 1
        %844 = vperm.xlu0 %843, %v620
        %v845 = vpop.permute.xlu0 %844
        %847 = vset.pattern.permute.xlu0 1
        %848 = vperm.xlu0 %847, %v621
        %v849 = vpop.permute.xlu0 %848
        %851 = vset.pattern.permute.xlu0 1
        %852 = vperm.xlu0 %851, %v622
        %v853 = vpop.permute.xlu0 %852
        %855 = vset.pattern.permute.xlu0 1
        %856 = vperm.xlu0 %855, %v623
        %v857 = vpop.permute.xlu0 %856
        %859 = vset.pattern.permute.xlu0 1
        %860 = vperm.xlu0 %859, %v624
        %v861 = vpop.permute.xlu0 %860
        %863 = vset.pattern.permute.xlu0 1
        %864 = vperm.xlu0 %863, %v625
        %v865 = vpop.permute.xlu0 %864
        %867 = vset.pattern.permute.xlu0 1
        %868 = vperm.xlu0 %867, %v626
        %v869 = vpop.permute.xlu0 %868
        %871 = vset.pattern.permute.xlu0 1
        %872 = vperm.xlu0 %871, %v627
        %v873 = vpop.permute.xlu0 %872
        %875 = vset.pattern.permute.xlu0 1
        %876 = vperm.xlu0 %875, %v628
        %v877 = vpop.permute.xlu0 %876
        %v879 = vmul.f32 %v644, %v817
        %v880 = vmul.f32 %v629, %v821
        %v881 = vmul.f32 %v630, %v825
        %v882 = vmul.f32 %v631, %v829
        %v883 = vmul.f32 %v632, %v833
        %v884 = vmul.f32 %v633, %v837
        %v885 = vmul.f32 %v634, %v841
        %v886 = vmul.f32 %v635, %v845
        %v887 = vmul.f32 %v636, %v849
        %v888 = vmul.f32 %v637, %v853
        %v889 = vmul.f32 %v638, %v857
        %v890 = vmul.f32 %v639, %v861
        %v891 = vmul.f32 %v640, %v865
        %v892 = vmul.f32 %v641, %v869
        %v893 = vmul.f32 %v642, %v873
        %v894 = vmul.f32 %v643, %v877
        %v895 = vlaneseq
        %v896 = vshrl.u32 %v895, 7
        %v897 = vsub.s32 1, %v896
        %v898 = vrot.slane %v645, %v897
        %v899 = vmul.f32 %v879, %v898
        %v900 = vmul.f32 %v880, %v898
        %v901 = vmul.f32 %v881, %v898
        %v902 = vmul.f32 %v882, %v898
        %v903 = vmul.f32 %v883, %v898
        %v904 = vmul.f32 %v884, %v898
        %v905 = vmul.f32 %v885, %v898
        %v906 = vmul.f32 %v886, %v898
        %v907 = vmul.f32 %v887, %v898
        %v908 = vmul.f32 %v888, %v898
        %v909 = vmul.f32 %v889, %v898
        %v910 = vmul.f32 %v890, %v898
        %v911 = vmul.f32 %v891, %v898
        %v912 = vmul.f32 %v892, %v898
        %v913 = vmul.f32 %v893, %v898
        %v914 = vmul.f32 %v894, %v898
        %v915 = vadd.f32 %v799, %v899
        %v916 = vadd.f32 %v800, %v900
        %v917 = vadd.f32 %v801, %v901
        %v918 = vadd.f32 %v802, %v902
        %v919 = vadd.f32 %v803, %v903
        %v920 = vadd.f32 %v804, %v904
        %v921 = vadd.f32 %v805, %v905
        %v922 = vadd.f32 %v806, %v906
        %v923 = vadd.f32 %v807, %v907
        %v924 = vadd.f32 %v808, %v908
        %v925 = vadd.f32 %v809, %v909
        %v926 = vadd.f32 %v810, %v910
        %v927 = vadd.f32 %v811, %v911
        %v928 = vadd.f32 %v812, %v912
        %v929 = vadd.f32 %v813, %v913
        %v930 = vadd.f32 %v814, %v914
        %v931 = vrot.slane %v629, 1
        %v932 = vrot.slane %v630, 1
        %v933 = vrot.slane %v631, 1
        %v934 = vrot.slane %v632, 1
        %v935 = vrot.slane %v633, 1
        %v936 = vrot.slane %v634, 1
        %v937 = vrot.slane %v635, 1
        %v938 = vrot.slane %v636, 1
        %v939 = vrot.slane %v637, 1
        %v940 = vrot.slane %v638, 1
        %v941 = vrot.slane %v639, 1
        %v942 = vrot.slane %v640, 1
        %v943 = vrot.slane %v641, 1
        %v944 = vrot.slane %v642, 1
        %v945 = vrot.slane %v643, 1
        %v946 = vrot.slane %v644, 1
        %vm947 = vcmp.lt.s32.totalorder %v665, 7
        %v948 = vsel %vm947, %v945, %v946
        %v949 = vsel %vm947, %v944, %v945
        %v950 = vsel %vm947, %v943, %v944
        %v951 = vsel %vm947, %v942, %v943
        %v952 = vsel %vm947, %v941, %v942
        %v953 = vsel %vm947, %v940, %v941
        %v954 = vsel %vm947, %v939, %v940
        %v955 = vsel %vm947, %v938, %v939
        %v956 = vsel %vm947, %v937, %v938
        %v957 = vsel %vm947, %v936, %v937
        %v958 = vsel %vm947, %v935, %v936
        %v959 = vsel %vm947, %v934, %v935
        %v960 = vsel %vm947, %v933, %v934
        %v961 = vsel %vm947, %v932, %v933
        %v962 = vsel %vm947, %v931, %v932
        %v963 = vsel %vm947, %v946, %v931
        %964 = vset.pattern.permute.xlu0 2
        %965 = vperm.xlu0 %964, %v613
        %v966 = vpop.permute.xlu0 %965
        %968 = vset.pattern.permute.xlu0 2
        %969 = vperm.xlu0 %968, %v614
        %v970 = vpop.permute.xlu0 %969
        %972 = vset.pattern.permute.xlu0 2
        %973 = vperm.xlu0 %972, %v615
        %v974 = vpop.permute.xlu0 %973
        %976 = vset.pattern.permute.xlu0 2
        %977 = vperm.xlu0 %976, %v616
        %v978 = vpop.permute.xlu0 %977
        %980 = vset.pattern.permute.xlu0 2
        %981 = vperm.xlu0 %980, %v617
        %v982 = vpop.permute.xlu0 %981
        %984 = vset.pattern.permute.xlu0 2
        %985 = vperm.xlu0 %984, %v618
        %v986 = vpop.permute.xlu0 %985
        %988 = vset.pattern.permute.xlu0 2
        %989 = vperm.xlu0 %988, %v619
        %v990 = vpop.permute.xlu0 %989
        %992 = vset.pattern.permute.xlu0 2
        %993 = vperm.xlu0 %992, %v620
        %v994 = vpop.permute.xlu0 %993
        %996 = vset.pattern.permute.xlu0 2
        %997 = vperm.xlu0 %996, %v621
        %v998 = vpop.permute.xlu0 %997
        %1000 = vset.pattern.permute.xlu0 2
        %1001 = vperm.xlu0 %1000, %v622
        %v1002 = vpop.permute.xlu0 %1001
        %1004 = vset.pattern.permute.xlu0 2
        %1005 = vperm.xlu0 %1004, %v623
        %v1006 = vpop.permute.xlu0 %1005
        %1008 = vset.pattern.permute.xlu0 2
        %1009 = vperm.xlu0 %1008, %v624
        %v1010 = vpop.permute.xlu0 %1009
        %1012 = vset.pattern.permute.xlu0 2
        %1013 = vperm.xlu0 %1012, %v625
        %v1014 = vpop.permute.xlu0 %1013
        %1016 = vset.pattern.permute.xlu0 2
        %1017 = vperm.xlu0 %1016, %v626
        %v1018 = vpop.permute.xlu0 %1017
        %1020 = vset.pattern.permute.xlu0 2
        %1021 = vperm.xlu0 %1020, %v627
        %v1022 = vpop.permute.xlu0 %1021
        %1024 = vset.pattern.permute.xlu0 2
        %1025 = vperm.xlu0 %1024, %v628
        %v1026 = vpop.permute.xlu0 %1025
        %v1028 = vmul.f32 %v963, %v966
        %v1029 = vmul.f32 %v962, %v970
        %v1030 = vmul.f32 %v961, %v974
        %v1031 = vmul.f32 %v960, %v978
        %v1032 = vmul.f32 %v959, %v982
        %v1033 = vmul.f32 %v958, %v986
        %v1034 = vmul.f32 %v957, %v990
        %v1035 = vmul.f32 %v956, %v994
        %v1036 = vmul.f32 %v955, %v998
        %v1037 = vmul.f32 %v954, %v1002
        %v1038 = vmul.f32 %v953, %v1006
        %v1039 = vmul.f32 %v952, %v1010
        %v1040 = vmul.f32 %v951, %v1014
        %v1041 = vmul.f32 %v950, %v1018
        %v1042 = vmul.f32 %v949, %v1022
        %v1043 = vmul.f32 %v948, %v1026
        %v1044 = vlaneseq
        %v1045 = vshrl.u32 %v1044, 7
        %v1046 = vsub.s32 2, %v1045
        %v1047 = vrot.slane %v645, %v1046
        %v1048 = vmul.f32 %v1028, %v1047
        %v1049 = vmul.f32 %v1029, %v1047
        %v1050 = vmul.f32 %v1030, %v1047
        %v1051 = vmul.f32 %v1031, %v1047
        %v1052 = vmul.f32 %v1032, %v1047
        %v1053 = vmul.f32 %v1033, %v1047
        %v1054 = vmul.f32 %v1034, %v1047
        %v1055 = vmul.f32 %v1035, %v1047
        %v1056 = vmul.f32 %v1036, %v1047
        %v1057 = vmul.f32 %v1037, %v1047
        %v1058 = vmul.f32 %v1038, %v1047
        %v1059 = vmul.f32 %v1039, %v1047
        %v1060 = vmul.f32 %v1040, %v1047
        %v1061 = vmul.f32 %v1041, %v1047
        %v1062 = vmul.f32 %v1042, %v1047
        %v1063 = vmul.f32 %v1043, %v1047
        %v1064 = vadd.f32 %v915, %v1048
        %v1065 = vadd.f32 %v916, %v1049
        %v1066 = vadd.f32 %v917, %v1050
        %v1067 = vadd.f32 %v918, %v1051
        %v1068 = vadd.f32 %v919, %v1052
        %v1069 = vadd.f32 %v920, %v1053
        %v1070 = vadd.f32 %v921, %v1054
        %v1071 = vadd.f32 %v922, %v1055
        %v1072 = vadd.f32 %v923, %v1056
        %v1073 = vadd.f32 %v924, %v1057
        %v1074 = vadd.f32 %v925, %v1058
        %v1075 = vadd.f32 %v926, %v1059
        %v1076 = vadd.f32 %v927, %v1060
        %v1077 = vadd.f32 %v928, %v1061
        %v1078 = vadd.f32 %v929, %v1062
        %v1079 = vadd.f32 %v930, %v1063
        %1080 = vset.pattern.permute.xlu0 3
        %1081 = vperm.xlu0 %1080, %v613
        %v1082 = vpop.permute.xlu0 %1081
        %1084 = vset.pattern.permute.xlu0 3
        %1085 = vperm.xlu0 %1084, %v614
        %v1086 = vpop.permute.xlu0 %1085
        %1088 = vset.pattern.permute.xlu0 3
        %1089 = vperm.xlu0 %1088, %v615
        %v1090 = vpop.permute.xlu0 %1089
        %1092 = vset.pattern.permute.xlu0 3
        %1093 = vperm.xlu0 %1092, %v616
        %v1094 = vpop.permute.xlu0 %1093
        %1096 = vset.pattern.permute.xlu0 3
        %1097 = vperm.xlu0 %1096, %v617
        %v1098 = vpop.permute.xlu0 %1097
        %1100 = vset.pattern.permute.xlu0 3
        %1101 = vperm.xlu0 %1100, %v618
        %v1102 = vpop.permute.xlu0 %1101
        %1104 = vset.pattern.permute.xlu0 3
        %1105 = vperm.xlu0 %1104, %v619
        %v1106 = vpop.permute.xlu0 %1105
        %1108 = vset.pattern.permute.xlu0 3
        %1109 = vperm.xlu0 %1108, %v620
        %v1110 = vpop.permute.xlu0 %1109
        %1112 = vset.pattern.permute.xlu0 3
        %1113 = vperm.xlu0 %1112, %v621
        %v1114 = vpop.permute.xlu0 %1113
        %1116 = vset.pattern.permute.xlu0 3
        %1117 = vperm.xlu0 %1116, %v622
        %v1118 = vpop.permute.xlu0 %1117
        %1120 = vset.pattern.permute.xlu0 3
        %1121 = vperm.xlu0 %1120, %v623
        %v1122 = vpop.permute.xlu0 %1121
        %1124 = vset.pattern.permute.xlu0 3
        %1125 = vperm.xlu0 %1124, %v624
        %v1126 = vpop.permute.xlu0 %1125
        %1128 = vset.pattern.permute.xlu0 3
        %1129 = vperm.xlu0 %1128, %v625
        %v1130 = vpop.permute.xlu0 %1129
        %1132 = vset.pattern.permute.xlu0 3
        %1133 = vperm.xlu0 %1132, %v626
        %v1134 = vpop.permute.xlu0 %1133
        %1136 = vset.pattern.permute.xlu0 3
        %1137 = vperm.xlu0 %1136, %v627
        %v1138 = vpop.permute.xlu0 %1137
        %1140 = vset.pattern.permute.xlu0 3
        %1141 = vperm.xlu0 %1140, %v628
        %v1142 = vpop.permute.xlu0 %1141
        %v1144 = vmul.f32 %v682, %v1082
        %v1145 = vmul.f32 %v681, %v1086
        %v1146 = vmul.f32 %v680, %v1090
        %v1147 = vmul.f32 %v679, %v1094
        %v1148 = vmul.f32 %v678, %v1098
        %v1149 = vmul.f32 %v677, %v1102
        %v1150 = vmul.f32 %v676, %v1106
        %v1151 = vmul.f32 %v675, %v1110
        %v1152 = vmul.f32 %v674, %v1114
        %v1153 = vmul.f32 %v673, %v1118
        %v1154 = vmul.f32 %v672, %v1122
        %v1155 = vmul.f32 %v671, %v1126
        %v1156 = vmul.f32 %v670, %v1130
        %v1157 = vmul.f32 %v669, %v1134
        %v1158 = vmul.f32 %v668, %v1138
        %v1159 = vmul.f32 %v667, %v1142
        %v1160 = vlaneseq
        %v1161 = vshrl.u32 %v1160, 7
        %v1162 = vsub.s32 3, %v1161
        %v1163 = vrot.slane %v645, %v1162
        %v1164 = vmul.f32 %v1144, %v1163
        %v1165 = vmul.f32 %v1145, %v1163
        %v1166 = vmul.f32 %v1146, %v1163
        %v1167 = vmul.f32 %v1147, %v1163
        %v1168 = vmul.f32 %v1148, %v1163
        %v1169 = vmul.f32 %v1149, %v1163
        %v1170 = vmul.f32 %v1150, %v1163
        %v1171 = vmul.f32 %v1151, %v1163
        %v1172 = vmul.f32 %v1152, %v1163
        %v1173 = vmul.f32 %v1153, %v1163
        %v1174 = vmul.f32 %v1154, %v1163
        %v1175 = vmul.f32 %v1155, %v1163
        %v1176 = vmul.f32 %v1156, %v1163
        %v1177 = vmul.f32 %v1157, %v1163
        %v1178 = vmul.f32 %v1158, %v1163
        %v1179 = vmul.f32 %v1159, %v1163
        %v1180 = vadd.f32 %v1064, %v1164
        %v1181 = vadd.f32 %v1065, %v1165
        %v1182 = vadd.f32 %v1066, %v1166
        %v1183 = vadd.f32 %v1067, %v1167
        %v1184 = vadd.f32 %v1068, %v1168
        %v1185 = vadd.f32 %v1069, %v1169
        %v1186 = vadd.f32 %v1070, %v1170
        %v1187 = vadd.f32 %v1071, %v1171
        %v1188 = vadd.f32 %v1072, %v1172
        %v1189 = vadd.f32 %v1073, %v1173
        %v1190 = vadd.f32 %v1074, %v1174
        %v1191 = vadd.f32 %v1075, %v1175
        %v1192 = vadd.f32 %v1076, %v1176
        %v1193 = vadd.f32 %v1077, %v1177
        %v1194 = vadd.f32 %v1078, %v1178
        %v1195 = vadd.f32 %v1079, %v1179
        %v1196 = vlaneseq
        %v1197 = vshrl.u32 %v1196, 7
        %v1198 = vsub.s32 4, %v1197
        %v1199 = vrot.slane %v645, %v1198
        %v1200 = vmul.f32 %v629, %v1199
        %v1201 = vmul.f32 %v630, %v1199
        %v1202 = vmul.f32 %v631, %v1199
        %v1203 = vmul.f32 %v632, %v1199
        %v1204 = vmul.f32 %v633, %v1199
        %v1205 = vmul.f32 %v634, %v1199
        %v1206 = vmul.f32 %v635, %v1199
        %v1207 = vmul.f32 %v636, %v1199
        %v1208 = vmul.f32 %v637, %v1199
        %v1209 = vmul.f32 %v638, %v1199
        %v1210 = vmul.f32 %v639, %v1199
        %v1211 = vmul.f32 %v640, %v1199
        %v1212 = vmul.f32 %v641, %v1199
        %v1213 = vmul.f32 %v642, %v1199
        %v1214 = vmul.f32 %v643, %v1199
        %v1215 = vmul.f32 %v644, %v1199
        %v1216 = vadd.f32 %v1180, %v1200
        %v1217 = vadd.f32 %v1181, %v1201
        %v1218 = vadd.f32 %v1182, %v1202
        %v1219 = vadd.f32 %v1183, %v1203
        %v1220 = vadd.f32 %v1184, %v1204
        %v1221 = vadd.f32 %v1185, %v1205
        %v1222 = vadd.f32 %v1186, %v1206
        %v1223 = vadd.f32 %v1187, %v1207
        %v1224 = vadd.f32 %v1188, %v1208
        %v1225 = vadd.f32 %v1189, %v1209
        %v1226 = vadd.f32 %v1190, %v1210
        %v1227 = vadd.f32 %v1191, %v1211
        %v1228 = vadd.f32 %v1192, %v1212
        %v1229 = vadd.f32 %v1193, %v1213
        %v1230 = vadd.f32 %v1194, %v1214
        %v1231 = vadd.f32 %v1195, %v1215
        %1232 = vset.pattern.permute.xlu0 5
        %1233 = vperm.xlu0 %1232, %v613
        %v1234 = vpop.permute.xlu0 %1233
        %1236 = vset.pattern.permute.xlu0 5
        %1237 = vperm.xlu0 %1236, %v614
        %v1238 = vpop.permute.xlu0 %1237
        %1240 = vset.pattern.permute.xlu0 5
        %1241 = vperm.xlu0 %1240, %v615
        %v1242 = vpop.permute.xlu0 %1241
        %1244 = vset.pattern.permute.xlu0 5
        %1245 = vperm.xlu0 %1244, %v616
        %v1246 = vpop.permute.xlu0 %1245
        %1248 = vset.pattern.permute.xlu0 5
        %1249 = vperm.xlu0 %1248, %v617
        %v1250 = vpop.permute.xlu0 %1249
        %1252 = vset.pattern.permute.xlu0 5
        %1253 = vperm.xlu0 %1252, %v618
        %v1254 = vpop.permute.xlu0 %1253
        %1256 = vset.pattern.permute.xlu0 5
        %1257 = vperm.xlu0 %1256, %v619
        %v1258 = vpop.permute.xlu0 %1257
        %1260 = vset.pattern.permute.xlu0 5
        %1261 = vperm.xlu0 %1260, %v620
        %v1262 = vpop.permute.xlu0 %1261
        %1264 = vset.pattern.permute.xlu0 5
        %1265 = vperm.xlu0 %1264, %v621
        %v1266 = vpop.permute.xlu0 %1265
        %1268 = vset.pattern.permute.xlu0 5
        %1269 = vperm.xlu0 %1268, %v622
        %v1270 = vpop.permute.xlu0 %1269
        %1272 = vset.pattern.permute.xlu0 5
        %1273 = vperm.xlu0 %1272, %v623
        %v1274 = vpop.permute.xlu0 %1273
        %1276 = vset.pattern.permute.xlu0 5
        %1277 = vperm.xlu0 %1276, %v624
        %v1278 = vpop.permute.xlu0 %1277
        %1280 = vset.pattern.permute.xlu0 5
        %1281 = vperm.xlu0 %1280, %v625
        %v1282 = vpop.permute.xlu0 %1281
        %1284 = vset.pattern.permute.xlu0 5
        %1285 = vperm.xlu0 %1284, %v626
        %v1286 = vpop.permute.xlu0 %1285
        %1288 = vset.pattern.permute.xlu0 5
        %1289 = vperm.xlu0 %1288, %v627
        %v1290 = vpop.permute.xlu0 %1289
        %1292 = vset.pattern.permute.xlu0 5
        %1293 = vperm.xlu0 %1292, %v628
        %v1294 = vpop.permute.xlu0 %1293
        %v1296 = vmul.f32 %v962, %v1234
        %v1297 = vmul.f32 %v961, %v1238
        %v1298 = vmul.f32 %v960, %v1242
        %v1299 = vmul.f32 %v959, %v1246
        %v1300 = vmul.f32 %v958, %v1250
        %v1301 = vmul.f32 %v957, %v1254
        %v1302 = vmul.f32 %v956, %v1258
        %v1303 = vmul.f32 %v955, %v1262
        %v1304 = vmul.f32 %v954, %v1266
        %v1305 = vmul.f32 %v953, %v1270
        %v1306 = vmul.f32 %v952, %v1274
        %v1307 = vmul.f32 %v951, %v1278
        %v1308 = vmul.f32 %v950, %v1282
        %v1309 = vmul.f32 %v949, %v1286
        %v1310 = vmul.f32 %v948, %v1290
        %v1311 = vmul.f32 %v963, %v1294
        %v1312 = vlaneseq
        %v1313 = vshrl.u32 %v1312, 7
        %v1314 = vsub.s32 5, %v1313
        %v1315 = vrot.slane %v645, %v1314
        %v1316 = vmul.f32 %v1296, %v1315
        %v1317 = vmul.f32 %v1297, %v1315
        %v1318 = vmul.f32 %v1298, %v1315
        %v1319 = vmul.f32 %v1299, %v1315
        %v1320 = vmul.f32 %v1300, %v1315
        %v1321 = vmul.f32 %v1301, %v1315
        %v1322 = vmul.f32 %v1302, %v1315
        %v1323 = vmul.f32 %v1303, %v1315
        %v1324 = vmul.f32 %v1304, %v1315
        %v1325 = vmul.f32 %v1305, %v1315
        %v1326 = vmul.f32 %v1306, %v1315
        %v1327 = vmul.f32 %v1307, %v1315
        %v1328 = vmul.f32 %v1308, %v1315
        %v1329 = vmul.f32 %v1309, %v1315
        %v1330 = vmul.f32 %v1310, %v1315
        %v1331 = vmul.f32 %v1311, %v1315
        %v1332 = vadd.f32 %v1216, %v1316
        %v1333 = vadd.f32 %v1217, %v1317
        %v1334 = vadd.f32 %v1218, %v1318
        %v1335 = vadd.f32 %v1219, %v1319
        %v1336 = vadd.f32 %v1220, %v1320
        %v1337 = vadd.f32 %v1221, %v1321
        %v1338 = vadd.f32 %v1222, %v1322
        %v1339 = vadd.f32 %v1223, %v1323
        %v1340 = vadd.f32 %v1224, %v1324
        %v1341 = vadd.f32 %v1225, %v1325
        %v1342 = vadd.f32 %v1226, %v1326
        %v1343 = vadd.f32 %v1227, %v1327
        %v1344 = vadd.f32 %v1228, %v1328
        %v1345 = vadd.f32 %v1229, %v1329
        %v1346 = vadd.f32 %v1230, %v1330
        %v1347 = vadd.f32 %v1231, %v1331
        %1348 = vset.pattern.permute.xlu0 6
        %1349 = vperm.xlu0 %1348, %v613
        %v1350 = vpop.permute.xlu0 %1349
        %1352 = vset.pattern.permute.xlu0 6
        %1353 = vperm.xlu0 %1352, %v614
        %v1354 = vpop.permute.xlu0 %1353
        %1356 = vset.pattern.permute.xlu0 6
        %1357 = vperm.xlu0 %1356, %v615
        %v1358 = vpop.permute.xlu0 %1357
        %1360 = vset.pattern.permute.xlu0 6
        %1361 = vperm.xlu0 %1360, %v616
        %v1362 = vpop.permute.xlu0 %1361
        %1364 = vset.pattern.permute.xlu0 6
        %1365 = vperm.xlu0 %1364, %v617
        %v1366 = vpop.permute.xlu0 %1365
        %1368 = vset.pattern.permute.xlu0 6
        %1369 = vperm.xlu0 %1368, %v618
        %v1370 = vpop.permute.xlu0 %1369
        %1372 = vset.pattern.permute.xlu0 6
        %1373 = vperm.xlu0 %1372, %v619
        %v1374 = vpop.permute.xlu0 %1373
        %1376 = vset.pattern.permute.xlu0 6
        %1377 = vperm.xlu0 %1376, %v620
        %v1378 = vpop.permute.xlu0 %1377
        %1380 = vset.pattern.permute.xlu0 6
        %1381 = vperm.xlu0 %1380, %v621
        %v1382 = vpop.permute.xlu0 %1381
        %1384 = vset.pattern.permute.xlu0 6
        %1385 = vperm.xlu0 %1384, %v622
        %v1386 = vpop.permute.xlu0 %1385
        %1388 = vset.pattern.permute.xlu0 6
        %1389 = vperm.xlu0 %1388, %v623
        %v1390 = vpop.permute.xlu0 %1389
        %1392 = vset.pattern.permute.xlu0 6
        %1393 = vperm.xlu0 %1392, %v624
        %v1394 = vpop.permute.xlu0 %1393
        %1396 = vset.pattern.permute.xlu0 6
        %1397 = vperm.xlu0 %1396, %v625
        %v1398 = vpop.permute.xlu0 %1397
        %1400 = vset.pattern.permute.xlu0 6
        %1401 = vperm.xlu0 %1400, %v626
        %v1402 = vpop.permute.xlu0 %1401
        %1404 = vset.pattern.permute.xlu0 6
        %1405 = vperm.xlu0 %1404, %v627
        %v1406 = vpop.permute.xlu0 %1405
        %1408 = vset.pattern.permute.xlu0 6
        %1409 = vperm.xlu0 %1408, %v628
        %v1410 = vpop.permute.xlu0 %1409
        %v1412 = vmul.f32 %v681, %v1350
        %v1413 = vmul.f32 %v680, %v1354
        %v1414 = vmul.f32 %v679, %v1358
        %v1415 = vmul.f32 %v678, %v1362
        %v1416 = vmul.f32 %v677, %v1366
        %v1417 = vmul.f32 %v676, %v1370
        %v1418 = vmul.f32 %v675, %v1374
        %v1419 = vmul.f32 %v674, %v1378
        %v1420 = vmul.f32 %v673, %v1382
        %v1421 = vmul.f32 %v672, %v1386
        %v1422 = vmul.f32 %v671, %v1390
        %v1423 = vmul.f32 %v670, %v1394
        %v1424 = vmul.f32 %v669, %v1398
        %v1425 = vmul.f32 %v668, %v1402
        %v1426 = vmul.f32 %v667, %v1406
        %v1427 = vmul.f32 %v682, %v1410
        %v1428 = vlaneseq
        %v1429 = vshrl.u32 %v1428, 7
        %v1430 = vsub.s32 6, %v1429
        %v1431 = vrot.slane %v645, %v1430
        %v1432 = vmul.f32 %v1412, %v1431
        %v1433 = vmul.f32 %v1413, %v1431
        %v1434 = vmul.f32 %v1414, %v1431
        %v1435 = vmul.f32 %v1415, %v1431
        %v1436 = vmul.f32 %v1416, %v1431
        %v1437 = vmul.f32 %v1417, %v1431
        %v1438 = vmul.f32 %v1418, %v1431
        %v1439 = vmul.f32 %v1419, %v1431
        %v1440 = vmul.f32 %v1420, %v1431
        %v1441 = vmul.f32 %v1421, %v1431
        %v1442 = vmul.f32 %v1422, %v1431
        %v1443 = vmul.f32 %v1423, %v1431
        %v1444 = vmul.f32 %v1424, %v1431
        %v1445 = vmul.f32 %v1425, %v1431
        %v1446 = vmul.f32 %v1426, %v1431
        %v1447 = vmul.f32 %v1427, %v1431
        %v1448 = vadd.f32 %v1332, %v1432
        %v1449 = vadd.f32 %v1333, %v1433
        %v1450 = vadd.f32 %v1334, %v1434
        %v1451 = vadd.f32 %v1335, %v1435
        %v1452 = vadd.f32 %v1336, %v1436
        %v1453 = vadd.f32 %v1337, %v1437
        %v1454 = vadd.f32 %v1338, %v1438
        %v1455 = vadd.f32 %v1339, %v1439
        %v1456 = vadd.f32 %v1340, %v1440
        %v1457 = vadd.f32 %v1341, %v1441
        %v1458 = vadd.f32 %v1342, %v1442
        %v1459 = vadd.f32 %v1343, %v1443
        %v1460 = vadd.f32 %v1344, %v1444
        %v1461 = vadd.f32 %v1345, %v1445
        %v1462 = vadd.f32 %v1346, %v1446
        %v1463 = vadd.f32 %v1347, %v1447
        %1464 = vset.pattern.permute.xlu0 7
        %1465 = vperm.xlu0 %1464, %v613
        %v1466 = vpop.permute.xlu0 %1465
        %1468 = vset.pattern.permute.xlu0 7
        %1469 = vperm.xlu0 %1468, %v614
        %v1470 = vpop.permute.xlu0 %1469
        %1472 = vset.pattern.permute.xlu0 7
        %1473 = vperm.xlu0 %1472, %v615
        %v1474 = vpop.permute.xlu0 %1473
        %1476 = vset.pattern.permute.xlu0 7
        %1477 = vperm.xlu0 %1476, %v616
        %v1478 = vpop.permute.xlu0 %1477
        %1480 = vset.pattern.permute.xlu0 7
        %1481 = vperm.xlu0 %1480, %v617
        %v1482 = vpop.permute.xlu0 %1481
        %1484 = vset.pattern.permute.xlu0 7
        %1485 = vperm.xlu0 %1484, %v618
        %v1486 = vpop.permute.xlu0 %1485
        %1488 = vset.pattern.permute.xlu0 7
        %1489 = vperm.xlu0 %1488, %v619
        %v1490 = vpop.permute.xlu0 %1489
        %1492 = vset.pattern.permute.xlu0 7
        %1493 = vperm.xlu0 %1492, %v620
        %v1494 = vpop.permute.xlu0 %1493
        %1496 = vset.pattern.permute.xlu0 7
        %1497 = vperm.xlu0 %1496, %v621
        %v1498 = vpop.permute.xlu0 %1497
        %1500 = vset.pattern.permute.xlu0 7
        %1501 = vperm.xlu0 %1500, %v622
        %v1502 = vpop.permute.xlu0 %1501
        %1504 = vset.pattern.permute.xlu0 7
        %1505 = vperm.xlu0 %1504, %v623
        %v1506 = vpop.permute.xlu0 %1505
        %1508 = vset.pattern.permute.xlu0 7
        %1509 = vperm.xlu0 %1508, %v624
        %v1510 = vpop.permute.xlu0 %1509
        %1512 = vset.pattern.permute.xlu0 7
        %1513 = vperm.xlu0 %1512, %v625
        %v1514 = vpop.permute.xlu0 %1513
        %1516 = vset.pattern.permute.xlu0 7
        %1517 = vperm.xlu0 %1516, %v626
        %v1518 = vpop.permute.xlu0 %1517
        %1520 = vset.pattern.permute.xlu0 7
        %1521 = vperm.xlu0 %1520, %v627
        %v1522 = vpop.permute.xlu0 %1521
        %1524 = vset.pattern.permute.xlu0 7
        %1525 = vperm.xlu0 %1524, %v628
        %v1526 = vpop.permute.xlu0 %1525
        %v1528 = vmul.f32 %v630, %v1466
        %v1529 = vmul.f32 %v631, %v1470
        %v1530 = vmul.f32 %v632, %v1474
        %v1531 = vmul.f32 %v633, %v1478
        %v1532 = vmul.f32 %v634, %v1482
        %v1533 = vmul.f32 %v635, %v1486
        %v1534 = vmul.f32 %v636, %v1490
        %v1535 = vmul.f32 %v637, %v1494
        %v1536 = vmul.f32 %v638, %v1498
        %v1537 = vmul.f32 %v639, %v1502
        %v1538 = vmul.f32 %v640, %v1506
        %v1539 = vmul.f32 %v641, %v1510
        %v1540 = vmul.f32 %v642, %v1514
        %v1541 = vmul.f32 %v643, %v1518
        %v1542 = vmul.f32 %v644, %v1522
        %v1543 = vmul.f32 %v629, %v1526
        %v1544 = vlaneseq
        %v1545 = vshrl.u32 %v1544, 7
        %v1546 = vsub.s32 7, %v1545
        %v1547 = vrot.slane %v645, %v1546
        %v1548 = vmul.f32 %v1528, %v1547
        %v1549 = vmul.f32 %v1529, %v1547
        %v1550 = vmul.f32 %v1530, %v1547
        %v1551 = vmul.f32 %v1531, %v1547
        %v1552 = vmul.f32 %v1532, %v1547
        %v1553 = vmul.f32 %v1533, %v1547
        %v1554 = vmul.f32 %v1534, %v1547
        %v1555 = vmul.f32 %v1535, %v1547
        %v1556 = vmul.f32 %v1536, %v1547
        %v1557 = vmul.f32 %v1537, %v1547
        %v1558 = vmul.f32 %v1538, %v1547
        %v1559 = vmul.f32 %v1539, %v1547
        %v1560 = vmul.f32 %v1540, %v1547
        %v1561 = vmul.f32 %v1541, %v1547
        %v1562 = vmul.f32 %v1542, %v1547
        %v1563 = vmul.f32 %v1543, %v1547
        %v1564 = vadd.f32 %v1448, %v1548
        %v1565 = vadd.f32 %v1449, %v1549
        %v1566 = vadd.f32 %v1450, %v1550
        %v1567 = vadd.f32 %v1451, %v1551
        %v1568 = vadd.f32 %v1452, %v1552
        %v1569 = vadd.f32 %v1453, %v1553
        %v1570 = vadd.f32 %v1454, %v1554
        %v1571 = vadd.f32 %v1455, %v1555
        %v1572 = vadd.f32 %v1456, %v1556
        %v1573 = vadd.f32 %v1457, %v1557
        %v1574 = vadd.f32 %v1458, %v1558
        %v1575 = vadd.f32 %v1459, %v1559
        %v1576 = vadd.f32 %v1460, %v1560
        %v1577 = vadd.f32 %v1461, %v1561
        %v1578 = vadd.f32 %v1462, %v1562
        %v1579 = vadd.f32 %v1463, %v1563
        %1580 = vset.pattern.permute.xlu0 8
        %1581 = vperm.xlu0 %1580, %v613
        %v1582 = vpop.permute.xlu0 %1581
        %1584 = vset.pattern.permute.xlu0 8
        %1585 = vperm.xlu0 %1584, %v614
        %v1586 = vpop.permute.xlu0 %1585
        %1588 = vset.pattern.permute.xlu0 8
        %1589 = vperm.xlu0 %1588, %v615
        %v1590 = vpop.permute.xlu0 %1589
        %1592 = vset.pattern.permute.xlu0 8
        %1593 = vperm.xlu0 %1592, %v616
        %v1594 = vpop.permute.xlu0 %1593
        %1596 = vset.pattern.permute.xlu0 8
        %1597 = vperm.xlu0 %1596, %v617
        %v1598 = vpop.permute.xlu0 %1597
        %1600 = vset.pattern.permute.xlu0 8
        %1601 = vperm.xlu0 %1600, %v618
        %v1602 = vpop.permute.xlu0 %1601
        %1604 = vset.pattern.permute.xlu0 8
        %1605 = vperm.xlu0 %1604, %v619
        %v1606 = vpop.permute.xlu0 %1605
        %1608 = vset.pattern.permute.xlu0 8
        %1609 = vperm.xlu0 %1608, %v620
        %v1610 = vpop.permute.xlu0 %1609
        %1612 = vset.pattern.permute.xlu0 8
        %1613 = vperm.xlu0 %1612, %v621
        %v1614 = vpop.permute.xlu0 %1613
        %1616 = vset.pattern.permute.xlu0 8
        %1617 = vperm.xlu0 %1616, %v622
        %v1618 = vpop.permute.xlu0 %1617
        %1620 = vset.pattern.permute.xlu0 8
        %1621 = vperm.xlu0 %1620, %v623
        %v1622 = vpop.permute.xlu0 %1621
        %1624 = vset.pattern.permute.xlu0 8
        %1625 = vperm.xlu0 %1624, %v624
        %v1626 = vpop.permute.xlu0 %1625
        %1628 = vset.pattern.permute.xlu0 8
        %1629 = vperm.xlu0 %1628, %v625
        %v1630 = vpop.permute.xlu0 %1629
        %1632 = vset.pattern.permute.xlu0 8
        %1633 = vperm.xlu0 %1632, %v626
        %v1634 = vpop.permute.xlu0 %1633
        %1636 = vset.pattern.permute.xlu0 8
        %1637 = vperm.xlu0 %1636, %v627
        %v1638 = vpop.permute.xlu0 %1637
        %1640 = vset.pattern.permute.xlu0 8
        %1641 = vperm.xlu0 %1640, %v628
        %v1642 = vpop.permute.xlu0 %1641
        %v1644 = vmul.f32 %v961, %v1582
        %v1645 = vmul.f32 %v960, %v1586
        %v1646 = vmul.f32 %v959, %v1590
        %v1647 = vmul.f32 %v958, %v1594
        %v1648 = vmul.f32 %v957, %v1598
        %v1649 = vmul.f32 %v956, %v1602
        %v1650 = vmul.f32 %v955, %v1606
        %v1651 = vmul.f32 %v954, %v1610
        %v1652 = vmul.f32 %v953, %v1614
        %v1653 = vmul.f32 %v952, %v1618
        %v1654 = vmul.f32 %v951, %v1622
        %v1655 = vmul.f32 %v950, %v1626
        %v1656 = vmul.f32 %v949, %v1630
        %v1657 = vmul.f32 %v948, %v1634
        %v1658 = vmul.f32 %v963, %v1638
        %v1659 = vmul.f32 %v962, %v1642
        %v1660 = vlaneseq
        %v1661 = vshrl.u32 %v1660, 7
        %v1662 = vsub.s32 0, %v1661
        %v1663 = vrot.slane %v646, %v1662
        %v1664 = vmul.f32 %v1644, %v1663
        %v1665 = vmul.f32 %v1645, %v1663
        %v1666 = vmul.f32 %v1646, %v1663
        %v1667 = vmul.f32 %v1647, %v1663
        %v1668 = vmul.f32 %v1648, %v1663
        %v1669 = vmul.f32 %v1649, %v1663
        %v1670 = vmul.f32 %v1650, %v1663
        %v1671 = vmul.f32 %v1651, %v1663
        %v1672 = vmul.f32 %v1652, %v1663
        %v1673 = vmul.f32 %v1653, %v1663
        %v1674 = vmul.f32 %v1654, %v1663
        %v1675 = vmul.f32 %v1655, %v1663
        %v1676 = vmul.f32 %v1656, %v1663
        %v1677 = vmul.f32 %v1657, %v1663
        %v1678 = vmul.f32 %v1658, %v1663
        %v1679 = vmul.f32 %v1659, %v1663
        %v1680 = vadd.f32 %v1564, %v1664
        %v1681 = vadd.f32 %v1565, %v1665
        %v1682 = vadd.f32 %v1566, %v1666
        %v1683 = vadd.f32 %v1567, %v1667
        %v1684 = vadd.f32 %v1568, %v1668
        %v1685 = vadd.f32 %v1569, %v1669
        %v1686 = vadd.f32 %v1570, %v1670
        %v1687 = vadd.f32 %v1571, %v1671
        %v1688 = vadd.f32 %v1572, %v1672
        %v1689 = vadd.f32 %v1573, %v1673
        %v1690 = vadd.f32 %v1574, %v1674
        %v1691 = vadd.f32 %v1575, %v1675
        %v1692 = vadd.f32 %v1576, %v1676
        %v1693 = vadd.f32 %v1577, %v1677
        %v1694 = vadd.f32 %v1578, %v1678
        %v1695 = vadd.f32 %v1579, %v1679
        %v1697 = vlaneseq
        %v1698 = vshrl.u32 %v1697, 7
        %v1699 = vsub.s32 0, %v1698
        %v1700 = vrot.slane %v647, %v1699
        %v1702 = vadd.f32 %v1680, %v1700
        %v1703 = vadd.f32 %v1681, %v1700
        %v1704 = vadd.f32 %v1682, %v1700
        %v1705 = vadd.f32 %v1683, %v1700
        %v1706 = vadd.f32 %v1684, %v1700
        %v1707 = vadd.f32 %v1685, %v1700
        %v1708 = vadd.f32 %v1686, %v1700
        %v1709 = vadd.f32 %v1687, %v1700
        %v1710 = vadd.f32 %v1688, %v1700
        %v1711 = vadd.f32 %v1689, %v1700
        %v1712 = vadd.f32 %v1690, %v1700
        %v1713 = vadd.f32 %v1691, %v1700
        %v1714 = vadd.f32 %v1692, %v1700
        %v1715 = vadd.f32 %v1693, %v1700
        %v1716 = vadd.f32 %v1694, %v1700
        %v1717 = vadd.f32 %v1695, %v1700
        %v1718 = vadd.f32 %v629, %v1702
        %v1719 = vadd.f32 %v630, %v1703
        %v1720 = vadd.f32 %v631, %v1704
        %v1721 = vadd.f32 %v632, %v1705
        %v1722 = vadd.f32 %v633, %v1706
        %v1723 = vadd.f32 %v634, %v1707
        %v1724 = vadd.f32 %v635, %v1708
        %v1725 = vadd.f32 %v636, %v1709
        %v1726 = vadd.f32 %v637, %v1710
        %v1727 = vadd.f32 %v638, %v1711
        %v1728 = vadd.f32 %v639, %v1712
        %v1729 = vadd.f32 %v640, %v1713
        %v1730 = vadd.f32 %v641, %v1714
        %v1731 = vadd.f32 %v642, %v1715
        %v1732 = vadd.f32 %v643, %v1716
        %v1733 = vadd.f32 %v644, %v1717
        %v1734 = vld [vmem:[%s6] sm:$0x1]
        %v1735 = vld [vmem:[%s7] sm:$0x1]
        %vm1736 = vcmask 523264
        %v1737 = vsel %vm1736, %v1718, 0.0
        %1738 = vadd.xlane.f32.xlu0 %v1737
        %v1739 = vpop.xlane.xlu0 %1738
        %v1740 = vsel %vm1736, %v1719, 0.0
        %1741 = vadd.xlane.f32.xlu0 %v1740
        %v1742 = vpop.xlane.xlu0 %1741
        %v1743 = vsel %vm1736, %v1720, 0.0
        %1744 = vadd.xlane.f32.xlu0 %v1743
        %v1745 = vpop.xlane.xlu0 %1744
        %v1746 = vsel %vm1736, %v1721, 0.0
        %1747 = vadd.xlane.f32.xlu0 %v1746
        %v1748 = vpop.xlane.xlu0 %1747
        %v1749 = vsel %vm1736, %v1722, 0.0
        %1750 = vadd.xlane.f32.xlu0 %v1749
        %v1751 = vpop.xlane.xlu0 %1750
        %v1752 = vsel %vm1736, %v1723, 0.0
        %1753 = vadd.xlane.f32.xlu0 %v1752
        %v1754 = vpop.xlane.xlu0 %1753
        %v1755 = vsel %vm1736, %v1724, 0.0
        %1756 = vadd.xlane.f32.xlu0 %v1755
        %v1757 = vpop.xlane.xlu0 %1756
        %v1758 = vsel %vm1736, %v1725, 0.0
        %1759 = vadd.xlane.f32.xlu0 %v1758
        %v1760 = vpop.xlane.xlu0 %1759
        %v1761 = vsel %vm1736, %v1726, 0.0
        %1762 = vadd.xlane.f32.xlu0 %v1761
        %v1763 = vpop.xlane.xlu0 %1762
        %v1764 = vsel %vm1736, %v1727, 0.0
        %1765 = vadd.xlane.f32.xlu0 %v1764
        %v1766 = vpop.xlane.xlu0 %1765
        %v1767 = vsel %vm1736, %v1728, 0.0
        %1768 = vadd.xlane.f32.xlu0 %v1767
        %v1769 = vpop.xlane.xlu0 %1768
        %v1770 = vsel %vm1736, %v1729, 0.0
        %1771 = vadd.xlane.f32.xlu0 %v1770
        %v1772 = vpop.xlane.xlu0 %1771
        %v1773 = vsel %vm1736, %v1730, 0.0
        %1774 = vadd.xlane.f32.xlu0 %v1773
        %v1775 = vpop.xlane.xlu0 %1774
        %v1776 = vsel %vm1736, %v1731, 0.0
        %1777 = vadd.xlane.f32.xlu0 %v1776
        %v1778 = vpop.xlane.xlu0 %1777
        %v1779 = vsel %vm1736, %v1732, 0.0
        %1780 = vadd.xlane.f32.xlu0 %v1779
        %v1781 = vpop.xlane.xlu0 %1780
        %v1782 = vsel %vm1736, %v1733, 0.0
        %1783 = vadd.xlane.f32.xlu0 %v1782
        %v1784 = vpop.xlane.xlu0 %1783
        %v1785 = vrcp.pop 64.0
        %v1786 = vmul.f32 %v1739, %v1785
        %v1787 = vmul.f32 %v1742, %v1785
        %v1788 = vmul.f32 %v1745, %v1785
        %v1789 = vmul.f32 %v1748, %v1785
        %v1790 = vmul.f32 %v1751, %v1785
        %v1791 = vmul.f32 %v1754, %v1785
        %v1792 = vmul.f32 %v1757, %v1785
        %v1793 = vmul.f32 %v1760, %v1785
        %v1794 = vmul.f32 %v1763, %v1785
        %v1795 = vmul.f32 %v1766, %v1785
        %v1796 = vmul.f32 %v1769, %v1785
        %v1797 = vmul.f32 %v1772, %v1785
        %v1798 = vmul.f32 %v1775, %v1785
        %v1799 = vmul.f32 %v1778, %v1785
        %v1800 = vmul.f32 %v1781, %v1785
        %v1801 = vmul.f32 %v1784, %v1785
        %v1802 = vsub.f32 %v1718, %v1786
        %v1803 = vsub.f32 %v1719, %v1787
        %v1804 = vsub.f32 %v1720, %v1788
        %v1805 = vsub.f32 %v1721, %v1789
        %v1806 = vsub.f32 %v1722, %v1790
        %v1807 = vsub.f32 %v1723, %v1791
        %v1808 = vsub.f32 %v1724, %v1792
        %v1809 = vsub.f32 %v1725, %v1793
        %v1810 = vsub.f32 %v1726, %v1794
        %v1811 = vsub.f32 %v1727, %v1795
        %v1812 = vsub.f32 %v1728, %v1796
        %v1813 = vsub.f32 %v1729, %v1797
        %v1814 = vsub.f32 %v1730, %v1798
        %v1815 = vsub.f32 %v1731, %v1799
        %v1816 = vsub.f32 %v1732, %v1800
        %v1817 = vsub.f32 %v1733, %v1801
        %v1818 = vmul.f32 %v1802, %v1802
        %v1819 = vmul.f32 %v1803, %v1803
        %v1820 = vmul.f32 %v1804, %v1804
        %v1821 = vmul.f32 %v1805, %v1805
        %v1822 = vmul.f32 %v1806, %v1806
        %v1823 = vmul.f32 %v1807, %v1807
        %v1824 = vmul.f32 %v1808, %v1808
        %v1825 = vmul.f32 %v1809, %v1809
        %v1826 = vmul.f32 %v1810, %v1810
        %v1827 = vmul.f32 %v1811, %v1811
        %v1828 = vmul.f32 %v1812, %v1812
        %v1829 = vmul.f32 %v1813, %v1813
        %v1830 = vmul.f32 %v1814, %v1814
        %v1831 = vmul.f32 %v1815, %v1815
        %v1832 = vmul.f32 %v1816, %v1816
        %v1833 = vmul.f32 %v1817, %v1817
        %v1834 = vsel %vm1736, %v1818, 0.0
        %1835 = vadd.xlane.f32.xlu0 %v1834
        %v1836 = vpop.xlane.xlu0 %1835
        %v1837 = vsel %vm1736, %v1819, 0.0
        %1838 = vadd.xlane.f32.xlu0 %v1837
        %v1839 = vpop.xlane.xlu0 %1838
        %v1840 = vsel %vm1736, %v1820, 0.0
        %1841 = vadd.xlane.f32.xlu0 %v1840
        %v1842 = vpop.xlane.xlu0 %1841
        %v1843 = vsel %vm1736, %v1821, 0.0
        %1844 = vadd.xlane.f32.xlu0 %v1843
        %v1845 = vpop.xlane.xlu0 %1844
        %v1846 = vsel %vm1736, %v1822, 0.0
        %1847 = vadd.xlane.f32.xlu0 %v1846
        %v1848 = vpop.xlane.xlu0 %1847
        %v1849 = vsel %vm1736, %v1823, 0.0
        %1850 = vadd.xlane.f32.xlu0 %v1849
        %v1851 = vpop.xlane.xlu0 %1850
        %v1852 = vsel %vm1736, %v1824, 0.0
        %1853 = vadd.xlane.f32.xlu0 %v1852
        %v1854 = vpop.xlane.xlu0 %1853
        %v1855 = vsel %vm1736, %v1825, 0.0
        %1856 = vadd.xlane.f32.xlu0 %v1855
        %v1857 = vpop.xlane.xlu0 %1856
        %v1858 = vsel %vm1736, %v1826, 0.0
        %1859 = vadd.xlane.f32.xlu0 %v1858
        %v1860 = vpop.xlane.xlu0 %1859
        %v1861 = vsel %vm1736, %v1827, 0.0
        %1862 = vadd.xlane.f32.xlu0 %v1861
        %v1863 = vpop.xlane.xlu0 %1862
        %v1864 = vsel %vm1736, %v1828, 0.0
        %1865 = vadd.xlane.f32.xlu0 %v1864
        %v1866 = vpop.xlane.xlu0 %1865
        %v1867 = vsel %vm1736, %v1829, 0.0
        %1868 = vadd.xlane.f32.xlu0 %v1867
        %v1869 = vpop.xlane.xlu0 %1868
        %v1870 = vsel %vm1736, %v1830, 0.0
        %1871 = vadd.xlane.f32.xlu0 %v1870
        %v1872 = vpop.xlane.xlu0 %1871
        %v1873 = vsel %vm1736, %v1831, 0.0
        %1874 = vadd.xlane.f32.xlu0 %v1873
        %v1875 = vpop.xlane.xlu0 %1874
        %v1876 = vsel %vm1736, %v1832, 0.0
        %1877 = vadd.xlane.f32.xlu0 %v1876
        %v1878 = vpop.xlane.xlu0 %1877
        %v1879 = vsel %vm1736, %v1833, 0.0
        %1880 = vadd.xlane.f32.xlu0 %v1879
        %v1881 = vpop.xlane.xlu0 %1880
        %v1882 = vmul.f32 %v1836, %v1785
        %v1883 = vmul.f32 %v1839, %v1785
        %v1884 = vmul.f32 %v1842, %v1785
        %v1885 = vmul.f32 %v1845, %v1785
        %v1886 = vmul.f32 %v1848, %v1785
        %v1887 = vmul.f32 %v1851, %v1785
        %v1888 = vmul.f32 %v1854, %v1785
        %v1889 = vmul.f32 %v1857, %v1785
        %v1890 = vmul.f32 %v1860, %v1785
        %v1891 = vmul.f32 %v1863, %v1785
        %v1892 = vmul.f32 %v1866, %v1785
        %v1893 = vmul.f32 %v1869, %v1785
        %v1894 = vmul.f32 %v1872, %v1785
        %v1895 = vmul.f32 %v1875, %v1785
        %v1896 = vmul.f32 %v1878, %v1785
        %v1897 = vmul.f32 %v1881, %v1785
        %v1898 = vadd.f32 %v1882, 1e-06
        %v1899 = vadd.f32 %v1883, 1e-06
        %v1900 = vadd.f32 %v1884, 1e-06
        %v1901 = vadd.f32 %v1885, 1e-06
        %v1902 = vadd.f32 %v1886, 1e-06
        %v1903 = vadd.f32 %v1887, 1e-06
        %v1904 = vadd.f32 %v1888, 1e-06
        %v1905 = vadd.f32 %v1889, 1e-06
        %v1906 = vadd.f32 %v1890, 1e-06
        %v1907 = vadd.f32 %v1891, 1e-06
        %v1908 = vadd.f32 %v1892, 1e-06
        %v1909 = vadd.f32 %v1893, 1e-06
        %v1910 = vadd.f32 %v1894, 1e-06
        %v1911 = vadd.f32 %v1895, 1e-06
        %v1912 = vadd.f32 %v1896, 1e-06
        %v1913 = vadd.f32 %v1897, 1e-06
        %v1914 = vrsqrt.pop %v1898
        %v1915 = vrsqrt.pop %v1899
        %v1916 = vrsqrt.pop %v1900
        %v1917 = vrsqrt.pop %v1901
        %v1918 = vrsqrt.pop %v1902
        %v1919 = vrsqrt.pop %v1903
        %v1920 = vrsqrt.pop %v1904
        %v1921 = vrsqrt.pop %v1905
        %v1922 = vrsqrt.pop %v1906
        %v1923 = vrsqrt.pop %v1907
        %v1924 = vrsqrt.pop %v1908
        %v1925 = vrsqrt.pop %v1909
        %v1926 = vrsqrt.pop %v1910
        %v1927 = vrsqrt.pop %v1911
        %v1928 = vrsqrt.pop %v1912
        %v1929 = vrsqrt.pop %v1913
        %v1930 = vmul.f32 %v1802, %v1914
        %v1931 = vmul.f32 %v1803, %v1915
        %v1932 = vmul.f32 %v1804, %v1916
        %v1933 = vmul.f32 %v1805, %v1917
        %v1934 = vmul.f32 %v1806, %v1918
        %v1935 = vmul.f32 %v1807, %v1919
        %v1936 = vmul.f32 %v1808, %v1920
        %v1937 = vmul.f32 %v1809, %v1921
        %v1938 = vmul.f32 %v1810, %v1922
        %v1939 = vmul.f32 %v1811, %v1923
        %v1940 = vmul.f32 %v1812, %v1924
        %v1941 = vmul.f32 %v1813, %v1925
        %v1942 = vmul.f32 %v1814, %v1926
        %v1943 = vmul.f32 %v1815, %v1927
        %v1944 = vmul.f32 %v1816, %v1928
        %v1945 = vmul.f32 %v1817, %v1929
        %v1947 = vlaneseq
        %v1948 = vshrl.u32 %v1947, 7
        %v1949 = vsub.s32 0, %v1948
        %v1950 = vrot.slane %v1734, %v1949
        %v1952 = vmul.f32 %v1930, %v1950
        %v1953 = vmul.f32 %v1931, %v1950
        %v1954 = vmul.f32 %v1932, %v1950
        %v1955 = vmul.f32 %v1933, %v1950
        %v1956 = vmul.f32 %v1934, %v1950
        %v1957 = vmul.f32 %v1935, %v1950
        %v1958 = vmul.f32 %v1936, %v1950
        %v1959 = vmul.f32 %v1937, %v1950
        %v1960 = vmul.f32 %v1938, %v1950
        %v1961 = vmul.f32 %v1939, %v1950
        %v1962 = vmul.f32 %v1940, %v1950
        %v1963 = vmul.f32 %v1941, %v1950
        %v1964 = vmul.f32 %v1942, %v1950
        %v1965 = vmul.f32 %v1943, %v1950
        %v1966 = vmul.f32 %v1944, %v1950
        %v1967 = vmul.f32 %v1945, %v1950
        %v1969 = vlaneseq
        %v1970 = vshrl.u32 %v1969, 7
        %v1971 = vsub.s32 0, %v1970
        %v1972 = vrot.slane %v1735, %v1971
        %v1974 = vadd.f32 %v1952, %v1972
        %v1975 = vadd.f32 %v1953, %v1972
        %v1976 = vadd.f32 %v1954, %v1972
        %v1977 = vadd.f32 %v1955, %v1972
        %v1978 = vadd.f32 %v1956, %v1972
        %v1979 = vadd.f32 %v1957, %v1972
        %v1980 = vadd.f32 %v1958, %v1972
        %v1981 = vadd.f32 %v1959, %v1972
        %v1982 = vadd.f32 %v1960, %v1972
        %v1983 = vadd.f32 %v1961, %v1972
        %v1984 = vadd.f32 %v1962, %v1972
        %v1985 = vadd.f32 %v1963, %v1972
        %v1986 = vadd.f32 %v1964, %v1972
        %v1987 = vadd.f32 %v1965, %v1972
        %v1988 = vadd.f32 %v1966, %v1972
        %v1989 = vadd.f32 %v1967, %v1972
        %v1990 = vpack.c.bf16 %v1975, %v1974
        %v1991 = vpack.c.bf16 %v1977, %v1976
        %v1992 = vpack.c.bf16 %v1979, %v1978
        %v1993 = vpack.c.bf16 %v1981, %v1980
        %v1994 = vpack.c.bf16 %v1983, %v1982
        %v1995 = vpack.c.bf16 %v1985, %v1984
        %v1996 = vpack.c.bf16 %v1987, %v1986
        %v1997 = vpack.c.bf16 %v1989, %v1988
        %v1998 = vld [vmem:[%s8] sm:$0xf]
        %v1999 = vld [vmem:[%s8 + $0x4] sm:$0xf]
        %v2000 = vld [vmem:[%s8 + $0x8] sm:$0xf]
        %v2001 = vld [vmem:[%s8 + $0xc] sm:$0xf]
        %v2002 = vld [vmem:[%s8 + $0x10] sm:$0xf]
        %v2003 = vld [vmem:[%s8 + $0x14] sm:$0xf]
        %v2004 = vld [vmem:[%s8 + $0x18] sm:$0xf]
        %v2005 = vld [vmem:[%s8 + $0x1c] sm:$0xf]
        %v2006 = vld [vmem:[%s9] sm:$0x1]
        %v2008 = vlaneseq
        %v2009 = vshrl.u32 %v2008, 7
        %v2010 = vsub.s32 0, %v2009
        %v2011 = vrot.slane %v2006, %v2010
        %v2021 = vunpack.c.l.b16 %v1998
        %v2022 = vunpack.c.l.b16 %v1999
        %v2023 = vunpack.c.l.b16 %v2000
        %v2024 = vunpack.c.l.b16 %v2001
        %v2025 = vunpack.c.l.b16 %v2002
        %v2026 = vunpack.c.l.b16 %v2003
        %v2027 = vunpack.c.l.b16 %v2004
        %v2028 = vunpack.c.l.b16 %v2005
        %v2029 = vpack.c.b16 %v2022, %v2021
        %v2030 = vpack.c.b16 %v2024, %v2023
        %v2031 = vpack.c.b16 %v2026, %v2025
        %v2032 = vpack.c.b16 %v2028, %v2027
        %v2038 = vsel %vm1736, %v1990, 0
        %v2041 = vsel %vm1736, %v1991, 0
        %v2044 = vsel %vm1736, %v1992, 0
        %v2047 = vsel %vm1736, %v1993, 0
        %v2050 = vsel %vm1736, %v1994, 0
        %v2053 = vsel %vm1736, %v1995, 0
        %v2056 = vsel %vm1736, %v1996, 0
        %v2059 = vsel %vm1736, %v1997, 0
        %2061 = vmatprep.subr.bf16.mxu0 0
        %2062 = vmatpush1.bf16.msra.mxu0 %v2029
        %2063 = vmatprep.subr.bf16.mxu0 0
        %2064 = vmatpush1.bf16.msra.mxu0 %v2030
        %2065 = vmatprep.subr.bf16.mxu0 0
        %2066 = vmatpush1.bf16.msra.mxu0 %v2031
        %2067 = vmatprep.subr.bf16.mxu0 0
        %2068 = vmatpush1.bf16.msra.mxu0 %v2032
        %2069 = vmatprep.subr.bf16.mxu0 0
        %2070 = vmatpush1.bf16.msra.mxu0 0
        %2071 = vmatprep.subr.bf16.mxu0 0
        %2072 = vmatpush1.bf16.msra.mxu0 0
        %2073 = vmatprep.subr.bf16.mxu0 0
        %2074 = vmatpush1.bf16.msra.mxu0 0
        %2075 = vmatprep.subr.bf16.mxu0 0
        %2076 = vmatpush1.bf16.msra.mxu0 0
        %2077 = vmatprep.subr.bf16.mxu0 0
        %2078 = vmatpush1.bf16.msra.mxu0 0
        %2079 = vmatprep.subr.bf16.mxu0 0
        %2080 = vmatpush1.bf16.msra.mxu0 0
        %2081 = vmatprep.subr.bf16.mxu0 0
        %2082 = vmatpush1.bf16.msra.mxu0 0
        %2083 = vmatprep.subr.bf16.mxu0 0
        %2084 = vmatpush1.bf16.msra.mxu0 0
        %2085 = vmatprep.subr.bf16.mxu0 0
        %2086 = vmatpush1.bf16.msra.mxu0 0
        %2087 = vmatprep.subr.bf16.mxu0 0
        %2088 = vmatpush1.bf16.msra.mxu0 0
        %2089 = vmatprep.subr.bf16.mxu0 0
        %2090 = vmatpush1.bf16.msra.mxu0 0
        %2091 = vmatprep.subr.bf16.mxu0 0
        %2092 = vmatpush1.bf16.msra.mxu0 0
        %2093 = vmatprep.mubr.bf16.mxu0 0
        %2094 = vmatmul.mubr.bf16.gmra.mrb[0].mxu0 %v2038
        %v2095 = vpop.f32.mrb[0].mxu0
        %v2096 = vadd.f32 %v2011, %v2095
        %v2097 = vpop.f32.mrb[0].mxu0
        %v2098 = vpop.f32.mrb[0].mxu0
        %v2099 = vadd.f32 %v2011, %v2098
        %v2100 = vpop.f32.mrb[0].mxu0
        %2101 = vmatprep.mubr.bf16.mxu0 0
        %2102 = vmatmul.mubr.bf16.gmra.mrb[0].mxu0 %v2041
        %v2103 = vpop.f32.mrb[0].mxu0
        %v2104 = vadd.f32 %v2011, %v2103
        %v2105 = vpop.f32.mrb[0].mxu0
        %v2106 = vpop.f32.mrb[0].mxu0
        %v2107 = vadd.f32 %v2011, %v2106
        %v2108 = vpop.f32.mrb[0].mxu0
        %2109 = vmatprep.mubr.bf16.mxu0 0
        %2110 = vmatmul.mubr.bf16.gmra.mrb[0].mxu0 %v2044
        %v2111 = vpop.f32.mrb[0].mxu0
        %v2112 = vadd.f32 %v2011, %v2111
        %v2113 = vpop.f32.mrb[0].mxu0
        %v2114 = vpop.f32.mrb[0].mxu0
        %v2115 = vadd.f32 %v2011, %v2114
        %v2116 = vpop.f32.mrb[0].mxu0
        %2117 = vmatprep.mubr.bf16.mxu0 0
        %2118 = vmatmul.mubr.bf16.gmra.mrb[0].mxu0 %v2047
        %v2119 = vpop.f32.mrb[0].mxu0
        %v2120 = vadd.f32 %v2011, %v2119
        %v2121 = vpop.f32.mrb[0].mxu0
        %v2122 = vpop.f32.mrb[0].mxu0
        %v2123 = vadd.f32 %v2011, %v2122
        %v2124 = vpop.f32.mrb[0].mxu0
        %2125 = vmatprep.mubr.bf16.mxu0 0
        %2126 = vmatmul.mubr.bf16.gmra.mrb[0].mxu0 %v2050
        %v2127 = vpop.f32.mrb[0].mxu0
        %v2128 = vadd.f32 %v2011, %v2127
        %v2129 = vpop.f32.mrb[0].mxu0
        %v2130 = vpop.f32.mrb[0].mxu0
        %v2131 = vadd.f32 %v2011, %v2130
        %v2132 = vpop.f32.mrb[0].mxu0
        %2133 = vmatprep.mubr.bf16.mxu0 0
        %2134 = vmatmul.mubr.bf16.gmra.mrb[0].mxu0 %v2053
        %v2135 = vpop.f32.mrb[0].mxu0
        %v2136 = vadd.f32 %v2011, %v2135
        %v2137 = vpop.f32.mrb[0].mxu0
        %v2138 = vpop.f32.mrb[0].mxu0
        %v2139 = vadd.f32 %v2011, %v2138
        %v2140 = vpop.f32.mrb[0].mxu0
        %2141 = vmatprep.mubr.bf16.mxu0 0
        %2142 = vmatmul.mubr.bf16.gmra.mrb[0].mxu0 %v2056
        %v2143 = vpop.f32.mrb[0].mxu0
        %v2144 = vadd.f32 %v2011, %v2143
        %v2145 = vpop.f32.mrb[0].mxu0
        %v2146 = vpop.f32.mrb[0].mxu0
        %v2147 = vadd.f32 %v2011, %v2146
        %v2148 = vpop.f32.mrb[0].mxu0
        %2149 = vmatprep.mubr.bf16.mxu0 0
        %2150 = vmatmul.mubr.bf16.gmra.mrb[0].mxu0 %v2059
        %v2151 = vpop.f32.mrb[0].mxu0
        %v2152 = vadd.f32 %v2011, %v2151
        %v2153 = vpop.f32.mrb[0].mxu0
        %v2154 = vpop.f32.mrb[0].mxu0
        %v2155 = vadd.f32 %v2011, %v2154
        %v2156 = vpop.f32.mrb[0].mxu0
        %2157 = vdwg.mxu0
        %v2158 = vld [vmem:[#allocation5] sm:$0xff]
        %v2159 = vld [vmem:[#allocation5 + $0x8] sm:$0xff]
        %v2160 = vld [vmem:[#allocation5 + $0x10] sm:$0xff]
        %v2161 = vld [vmem:[#allocation5 + $0x18] sm:$0xff]
        %v2162 = vld [vmem:[#allocation5 + $0x20] sm:$0xff]
        %v2163 = vld [vmem:[#allocation5 + $0x28] sm:$0xff]
        %v2164 = vld [vmem:[#allocation5 + $0x30] sm:$0xff]
        %v2165 = vld [vmem:[#allocation5 + $0x38] sm:$0xff]
        %v2166 = vld [vmem:[#allocation5 + $0x40] sm:$0xff]
        %v2167 = vld [vmem:[#allocation5 + $0x48] sm:$0xff]
        %v2168 = vld [vmem:[#allocation5 + $0x50] sm:$0xff]
        %v2169 = vld [vmem:[#allocation5 + $0x58] sm:$0xff]
        %v2170 = vld [vmem:[#allocation5 + $0x60] sm:$0xff]
        %v2171 = vld [vmem:[#allocation5 + $0x68] sm:$0xff]
        %v2172 = vld [vmem:[#allocation5 + $0x70] sm:$0xff]
        %v2173 = vld [vmem:[#allocation5 + $0x78] sm:$0xff]
        %v2174 = vmul.f32 %v2096, %v2158
        %v2175 = vmul.f32 %v2099, %v2159
        %v2176 = vmul.f32 %v2104, %v2160
        %v2177 = vmul.f32 %v2107, %v2161
        %v2178 = vmul.f32 %v2112, %v2162
        %v2179 = vmul.f32 %v2115, %v2163
        %v2180 = vmul.f32 %v2120, %v2164
        %v2181 = vmul.f32 %v2123, %v2165
        %v2182 = vmul.f32 %v2128, %v2166
        %v2183 = vmul.f32 %v2131, %v2167
        %v2184 = vmul.f32 %v2136, %v2168
        %v2185 = vmul.f32 %v2139, %v2169
        %v2186 = vmul.f32 %v2144, %v2170
        %v2187 = vmul.f32 %v2147, %v2171
        %v2188 = vmul.f32 %v2152, %v2172
        %v2189 = vmul.f32 %v2155, %v2173
        %v2190 = vlaneseq
        %v2191 = vand.u32 %v2190, 127
        %v2192 = vand.u32 %v2191, 1
        %vm2193 = vcmp.eq.s32.totalorder %v2192, 0
        %2194 = vrot.lane.b32.xlu0 %v2096, 127
        %v2195 = vpop.permute.xlu0 %2194
        %2196 = vrot.lane.b32.xlu0 %v2099, 127
        %v2197 = vpop.permute.xlu0 %2196
        %2198 = vrot.lane.b32.xlu0 %v2104, 127
        %v2199 = vpop.permute.xlu0 %2198
        %2200 = vrot.lane.b32.xlu0 %v2107, 127
        %v2201 = vpop.permute.xlu0 %2200
        %2202 = vrot.lane.b32.xlu0 %v2112, 127
        %v2203 = vpop.permute.xlu0 %2202
        %2204 = vrot.lane.b32.xlu0 %v2115, 127
        %v2205 = vpop.permute.xlu0 %2204
        %2206 = vrot.lane.b32.xlu0 %v2120, 127
        %v2207 = vpop.permute.xlu0 %2206
        %2208 = vrot.lane.b32.xlu0 %v2123, 127
        %v2209 = vpop.permute.xlu0 %2208
        %2210 = vrot.lane.b32.xlu0 %v2128, 127
        %v2211 = vpop.permute.xlu0 %2210
        %2212 = vrot.lane.b32.xlu0 %v2131, 127
        %v2213 = vpop.permute.xlu0 %2212
        %2214 = vrot.lane.b32.xlu0 %v2136, 127
        %v2215 = vpop.permute.xlu0 %2214
        %2216 = vrot.lane.b32.xlu0 %v2139, 127
        %v2217 = vpop.permute.xlu0 %2216
        %2218 = vrot.lane.b32.xlu0 %v2144, 127
        %v2219 = vpop.permute.xlu0 %2218
        %2220 = vrot.lane.b32.xlu0 %v2147, 127
        %v2221 = vpop.permute.xlu0 %2220
        %2222 = vrot.lane.b32.xlu0 %v2152, 127
        %v2223 = vpop.permute.xlu0 %2222
        %2224 = vrot.lane.b32.xlu0 %v2155, 127
        %v2225 = vpop.permute.xlu0 %2224
        %2226 = vrot.lane.b32.xlu0 %v2096, 1
        %v2227 = vpop.permute.xlu0 %2226
        %2228 = vrot.lane.b32.xlu0 %v2099, 1
        %v2229 = vpop.permute.xlu0 %2228
        %2230 = vrot.lane.b32.xlu0 %v2104, 1
        %v2231 = vpop.permute.xlu0 %2230
        %2232 = vrot.lane.b32.xlu0 %v2107, 1
        %v2233 = vpop.permute.xlu0 %2232
        %2234 = vrot.lane.b32.xlu0 %v2112, 1
        %v2235 = vpop.permute.xlu0 %2234
        %2236 = vrot.lane.b32.xlu0 %v2115, 1
        %v2237 = vpop.permute.xlu0 %2236
        %2238 = vrot.lane.b32.xlu0 %v2120, 1
        %v2239 = vpop.permute.xlu0 %2238
        %2240 = vrot.lane.b32.xlu0 %v2123, 1
        %v2241 = vpop.permute.xlu0 %2240
        %2242 = vrot.lane.b32.xlu0 %v2128, 1
        %v2243 = vpop.permute.xlu0 %2242
        %2244 = vrot.lane.b32.xlu0 %v2131, 1
        %v2245 = vpop.permute.xlu0 %2244
        %2246 = vrot.lane.b32.xlu0 %v2136, 1
        %v2247 = vpop.permute.xlu0 %2246
        %2248 = vrot.lane.b32.xlu0 %v2139, 1
        %v2249 = vpop.permute.xlu0 %2248
        %2250 = vrot.lane.b32.xlu0 %v2144, 1
        %v2251 = vpop.permute.xlu0 %2250
        %2252 = vrot.lane.b32.xlu0 %v2147, 1
        %v2253 = vpop.permute.xlu0 %2252
        %2254 = vrot.lane.b32.xlu0 %v2152, 1
        %v2255 = vpop.permute.xlu0 %2254
        %2256 = vrot.lane.b32.xlu0 %v2155, 1
        %v2257 = vpop.permute.xlu0 %2256
        %v2258 = vsub.f32 0.0, %v2195
        %v2259 = vsub.f32 0.0, %v2197
        %v2260 = vsub.f32 0.0, %v2199
        %v2261 = vsub.f32 0.0, %v2201
        %v2262 = vsub.f32 0.0, %v2203
        %v2263 = vsub.f32 0.0, %v2205
        %v2264 = vsub.f32 0.0, %v2207
        %v2265 = vsub.f32 0.0, %v2209
        %v2266 = vsub.f32 0.0, %v2211
        %v2267 = vsub.f32 0.0, %v2213
        %v2268 = vsub.f32 0.0, %v2215
        %v2269 = vsub.f32 0.0, %v2217
        %v2270 = vsub.f32 0.0, %v2219
        %v2271 = vsub.f32 0.0, %v2221
        %v2272 = vsub.f32 0.0, %v2223
        %v2273 = vsub.f32 0.0, %v2225
        %v2274 = vsel %vm2193, %v2258, %v2227
        %v2275 = vsel %vm2193, %v2259, %v2229
        %v2276 = vsel %vm2193, %v2260, %v2231
        %v2277 = vsel %vm2193, %v2261, %v2233
        %v2278 = vsel %vm2193, %v2262, %v2235
        %v2279 = vsel %vm2193, %v2263, %v2237
        %v2280 = vsel %vm2193, %v2264, %v2239
        %v2281 = vsel %vm2193, %v2265, %v2241
        %v2282 = vsel %vm2193, %v2266, %v2243
        %v2283 = vsel %vm2193, %v2267, %v2245
        %v2284 = vsel %vm2193, %v2268, %v2247
        %v2285 = vsel %vm2193, %v2269, %v2249
        %v2286 = vsel %vm2193, %v2270, %v2251
        %v2287 = vsel %vm2193, %v2271, %v2253
        %v2288 = vsel %vm2193, %v2272, %v2255
        %v2289 = vsel %vm2193, %v2273, %v2257
        %v2290 = vld [vmem:[%s2] sm:$0xff]
        %v2291 = vld [vmem:[%s2 + $0x8] sm:$0xff]
        %v2292 = vld [vmem:[%s2 + $0x10] sm:$0xff]
        %v2293 = vld [vmem:[%s2 + $0x18] sm:$0xff]
        %v2294 = vld [vmem:[%s2 + $0x20] sm:$0xff]
        %v2295 = vld [vmem:[%s2 + $0x28] sm:$0xff]
        %v2296 = vld [vmem:[%s2 + $0x30] sm:$0xff]
        %v2297 = vld [vmem:[%s2 + $0x38] sm:$0xff]
        %v2298 = vld [vmem:[%s2 + $0x40] sm:$0xff]
        %v2299 = vld [vmem:[%s2 + $0x48] sm:$0xff]
        %v2300 = vld [vmem:[%s2 + $0x50] sm:$0xff]
        %v2301 = vld [vmem:[%s2 + $0x58] sm:$0xff]
        %v2302 = vld [vmem:[%s2 + $0x60] sm:$0xff]
        %v2303 = vld [vmem:[%s2 + $0x68] sm:$0xff]
        %v2304 = vld [vmem:[%s2 + $0x70] sm:$0xff]
        %v2305 = vld [vmem:[%s2 + $0x78] sm:$0xff]
        %v2306 = vmul.f32 %v2274, %v2290
        %v2307 = vmul.f32 %v2275, %v2291
        %v2308 = vmul.f32 %v2276, %v2292
        %v2309 = vmul.f32 %v2277, %v2293
        %v2310 = vmul.f32 %v2278, %v2294
        %v2311 = vmul.f32 %v2279, %v2295
        %v2312 = vmul.f32 %v2280, %v2296
        %v2313 = vmul.f32 %v2281, %v2297
        %v2314 = vmul.f32 %v2282, %v2298
        %v2315 = vmul.f32 %v2283, %v2299
        %v2316 = vmul.f32 %v2284, %v2300
        %v2317 = vmul.f32 %v2285, %v2301
        %v2318 = vmul.f32 %v2286, %v2302
        %v2319 = vmul.f32 %v2287, %v2303
        %v2320 = vmul.f32 %v2288, %v2304
        %v2321 = vmul.f32 %v2289, %v2305
        %v2322 = vadd.f32 %v2174, %v2306
        %v2323 = vadd.f32 %v2175, %v2307
        %v2324 = vadd.f32 %v2176, %v2308
        %v2325 = vadd.f32 %v2177, %v2309
        %v2326 = vadd.f32 %v2178, %v2310
        %v2327 = vadd.f32 %v2179, %v2311
        %v2328 = vadd.f32 %v2180, %v2312
        %v2329 = vadd.f32 %v2181, %v2313
        %v2330 = vadd.f32 %v2182, %v2314
        %v2331 = vadd.f32 %v2183, %v2315
        %v2332 = vadd.f32 %v2184, %v2316
        %v2333 = vadd.f32 %v2185, %v2317
        %v2334 = vadd.f32 %v2186, %v2318
        %v2335 = vadd.f32 %v2187, %v2319
        %v2336 = vadd.f32 %v2188, %v2320
        %v2337 = vadd.f32 %v2189, %v2321
        %v2338 = vmul.f32 %v2322, 0.17677669
        %v2339 = vmul.f32 %v2323, 0.17677669
        %v2340 = vmul.f32 %v2324, 0.17677669
        %v2341 = vmul.f32 %v2325, 0.17677669
        %v2342 = vmul.f32 %v2326, 0.17677669
        %v2343 = vmul.f32 %v2327, 0.17677669
        %v2344 = vmul.f32 %v2328, 0.17677669
        %v2345 = vmul.f32 %v2329, 0.17677669
        %v2346 = vmul.f32 %v2330, 0.17677669
        %v2347 = vmul.f32 %v2331, 0.17677669
        %v2348 = vmul.f32 %v2332, 0.17677669
        %v2349 = vmul.f32 %v2333, 0.17677669
        %v2350 = vmul.f32 %v2334, 0.17677669
        %v2351 = vmul.f32 %v2335, 0.17677669
        %v2352 = vmul.f32 %v2336, 0.17677669
        %v2353 = vmul.f32 %v2337, 0.17677669
        %v2354 = vpack.c.bf16 %v2339, %v2338
        %v2355 = vpack.c.bf16 %v2341, %v2340
        %v2356 = vpack.c.bf16 %v2343, %v2342
        %v2357 = vpack.c.bf16 %v2345, %v2344
        %v2358 = vpack.c.bf16 %v2347, %v2346
        %v2359 = vpack.c.bf16 %v2349, %v2348
        %v2360 = vpack.c.bf16 %v2351, %v2350
        %v2361 = vpack.c.bf16 %v2353, %v2352
        %v2362 = vpack.c.bf16 %v2323, %v2322
        %v2363 = vpack.c.bf16 %v2325, %v2324
        %v2364 = vpack.c.bf16 %v2327, %v2326
        %v2365 = vpack.c.bf16 %v2329, %v2328
        %v2366 = vpack.c.bf16 %v2331, %v2330
        %v2367 = vpack.c.bf16 %v2333, %v2332
        %v2368 = vpack.c.bf16 %v2335, %v2334
        %v2369 = vpack.c.bf16 %v2337, %v2336
        %2374 = vrot.lane.b32.xlu0 %v2362, 64
        %v2375 = vpop.permute.xlu0 %2374
        %2376 = vrot.lane.b32.xlu0 %v2363, 64
        %v2377 = vpop.permute.xlu0 %2376
        %2378 = vrot.lane.b32.xlu0 %v2364, 64
        %v2379 = vpop.permute.xlu0 %2378
        %2380 = vrot.lane.b32.xlu0 %v2365, 64
        %v2381 = vpop.permute.xlu0 %2380
        %vm2382 = vcmask 261120
        %v2384 = vsel %vm2382, %v2354, 0
        %v2387 = vsel %vm2382, %v2355, 0
        %v2390 = vsel %vm2382, %v2356, 0
        %v2393 = vsel %vm2382, %v2357, 0
        %v2396 = vsel %vm2382, %v2375, 0
        %v2399 = vsel %vm2382, %v2377, 0
        %v2402 = vsel %vm2382, %v2379, 0
        %v2405 = vsel %vm2382, %v2381, 0
        %2407 = vmatprep.subr.bf16.mxu0 0
        %2408 = vmatpush1.bf16.xpose.msra.mxu0 %v2396
        %2409 = vmatprep.subr.bf16.mxu0 0
        %2410 = vmatpush1.bf16.xpose.msra.mxu0 %v2399
        %2411 = vmatprep.subr.bf16.mxu0 0
        %2412 = vmatpush1.bf16.xpose.msra.mxu0 %v2402
        %2413 = vmatprep.subr.bf16.mxu0 0
        %2414 = vmatpush1.bf16.xpose.msra.mxu0 %v2405
        %2415 = vmatprep.subr.bf16.mxu0 0
        %2416 = vmatpush1.bf16.xpose.msra.mxu0 0
        %2417 = vmatprep.subr.bf16.mxu0 0
        %2418 = vmatpush1.bf16.xpose.msra.mxu0 0
        %2419 = vmatprep.subr.bf16.mxu0 0
        %2420 = vmatpush1.bf16.xpose.msra.mxu0 0
        %2421 = vmatprep.subr.bf16.mxu0 0
        %2422 = vmatpush1.bf16.xpose.msra.mxu0 0
        %2423 = vmatprep.subr.bf16.mxu0 0
        %2424 = vmatpush1.bf16.xpose.msra.mxu0 0
        %2425 = vmatprep.subr.bf16.mxu0 0
        %2426 = vmatpush1.bf16.xpose.msra.mxu0 0
        %2427 = vmatprep.subr.bf16.mxu0 0
        %2428 = vmatpush1.bf16.xpose.msra.mxu0 0
        %2429 = vmatprep.subr.bf16.mxu0 0
        %2430 = vmatpush1.bf16.xpose.msra.mxu0 0
        %2431 = vmatprep.subr.bf16.mxu0 0
        %2432 = vmatpush1.bf16.xpose.msra.mxu0 0
        %2433 = vmatprep.subr.bf16.mxu0 0
        %2434 = vmatpush1.bf16.xpose.msra.mxu0 0
        %2435 = vmatprep.subr.bf16.mxu0 0
        %2436 = vmatpush1.bf16.xpose.msra.mxu0 0
        %2437 = vmatprep.subr.bf16.mxu0 0
        %2438 = vmatpush1.bf16.xpose.msra.mxu0 0
        %2439 = vmatprep.mubr.bf16.mxu0 0
        %2440 = vmatmul.mubr.bf16.gmra.mrb[0].mxu0 %v2384
        %v2441 = vpop.f32.mrb[0].mxu0
        %v2442 = vadd.f32 0.0, %v2441
        %v2443 = vpop.f32.mrb[0].mxu0
        %v2444 = vpop.f32.mrb[0].mxu0
        %v2445 = vadd.f32 0.0, %v2444
        %v2446 = vpop.f32.mrb[0].mxu0
        %2447 = vmatprep.mubr.bf16.mxu0 0
        %2448 = vmatmul.mubr.bf16.gmra.mrb[0].mxu0 %v2387
        %v2449 = vpop.f32.mrb[0].mxu0
        %v2450 = vadd.f32 0.0, %v2449
        %v2451 = vpop.f32.mrb[0].mxu0
        %v2452 = vpop.f32.mrb[0].mxu0
        %v2453 = vadd.f32 0.0, %v2452
        %v2454 = vpop.f32.mrb[0].mxu0
        %2455 = vmatprep.mubr.bf16.mxu0 0
        %2456 = vmatmul.mubr.bf16.gmra.mrb[0].mxu0 %v2390
        %v2457 = vpop.f32.mrb[0].mxu0
        %v2458 = vadd.f32 0.0, %v2457
        %v2459 = vpop.f32.mrb[0].mxu0
        %v2460 = vpop.f32.mrb[0].mxu0
        %v2461 = vadd.f32 0.0, %v2460
        %v2462 = vpop.f32.mrb[0].mxu0
        %2463 = vmatprep.mubr.bf16.mxu0 0
        %2464 = vmatmul.mubr.bf16.gmra.mrb[0].mxu0 %v2393
        %v2465 = vpop.f32.mrb[0].mxu0
        %v2466 = vadd.f32 0.0, %v2465
        %v2467 = vpop.f32.mrb[0].mxu0
        %v2468 = vpop.f32.mrb[0].mxu0
        %v2469 = vadd.f32 0.0, %v2468
        %v2470 = vpop.f32.mrb[0].mxu0
        %2471 = vdwg.mxu0
        %v2472 = vsel %vm1736, %v2442, -inf
        %2473 = vmax.xlane.f32.xlu0 %v2472
        %v2474 = vpop.xlane.xlu0 %2473
        %v2475 = vsel %vm1736, %v2445, -inf
        %2476 = vmax.xlane.f32.xlu0 %v2475
        %v2477 = vpop.xlane.xlu0 %2476
        %v2478 = vsel %vm1736, %v2450, -inf
        %2479 = vmax.xlane.f32.xlu0 %v2478
        %v2480 = vpop.xlane.xlu0 %2479
        %v2481 = vsel %vm1736, %v2453, -inf
        %2482 = vmax.xlane.f32.xlu0 %v2481
        %v2483 = vpop.xlane.xlu0 %2482
        %v2484 = vsel %vm1736, %v2458, -inf
        %2485 = vmax.xlane.f32.xlu0 %v2484
        %v2486 = vpop.xlane.xlu0 %2485
        %v2487 = vsel %vm1736, %v2461, -inf
        %2488 = vmax.xlane.f32.xlu0 %v2487
        %v2489 = vpop.xlane.xlu0 %2488
        %v2490 = vsel %vm1736, %v2466, -inf
        %2491 = vmax.xlane.f32.xlu0 %v2490
        %v2492 = vpop.xlane.xlu0 %2491
        %v2493 = vsel %vm1736, %v2469, -inf
        %2494 = vmax.xlane.f32.xlu0 %v2493
        %v2495 = vpop.xlane.xlu0 %2494
        %v2496 = vsub.f32 %v2442, %v2474
        %v2497 = vsub.f32 %v2445, %v2477
        %v2498 = vsub.f32 %v2450, %v2480
        %v2499 = vsub.f32 %v2453, %v2483
        %v2500 = vsub.f32 %v2458, %v2486
        %v2501 = vsub.f32 %v2461, %v2489
        %v2502 = vsub.f32 %v2466, %v2492
        %v2503 = vsub.f32 %v2469, %v2495
        %v2504 = vmul.f32 %v2496, 1.442695
        %v2505 = vpow.pop %v2504
        %v2506 = vmul.f32 %v2497, 1.442695
        %v2507 = vpow.pop %v2506
        %v2508 = vmul.f32 %v2498, 1.442695
        %v2509 = vpow.pop %v2508
        %v2510 = vmul.f32 %v2499, 1.442695
        %v2511 = vpow.pop %v2510
        %v2512 = vmul.f32 %v2500, 1.442695
        %v2513 = vpow.pop %v2512
        %v2514 = vmul.f32 %v2501, 1.442695
        %v2515 = vpow.pop %v2514
        %v2516 = vmul.f32 %v2502, 1.442695
        %v2517 = vpow.pop %v2516
        %v2518 = vmul.f32 %v2503, 1.442695
        %v2519 = vpow.pop %v2518
        %v2520 = vsel %vm1736, %v2505, 0.0
        %2521 = vadd.xlane.f32.xlu0 %v2520
        %v2522 = vpop.xlane.xlu0 %2521
        %v2523 = vsel %vm1736, %v2507, 0.0
        %2524 = vadd.xlane.f32.xlu0 %v2523
        %v2525 = vpop.xlane.xlu0 %2524
        %v2526 = vsel %vm1736, %v2509, 0.0
        %2527 = vadd.xlane.f32.xlu0 %v2526
        %v2528 = vpop.xlane.xlu0 %2527
        %v2529 = vsel %vm1736, %v2511, 0.0
        %2530 = vadd.xlane.f32.xlu0 %v2529
        %v2531 = vpop.xlane.xlu0 %2530
        %v2532 = vsel %vm1736, %v2513, 0.0
        %2533 = vadd.xlane.f32.xlu0 %v2532
        %v2534 = vpop.xlane.xlu0 %2533
        %v2535 = vsel %vm1736, %v2515, 0.0
        %2536 = vadd.xlane.f32.xlu0 %v2535
        %v2537 = vpop.xlane.xlu0 %2536
        %v2538 = vsel %vm1736, %v2517, 0.0
        %2539 = vadd.xlane.f32.xlu0 %v2538
        %v2540 = vpop.xlane.xlu0 %2539
        %v2541 = vsel %vm1736, %v2519, 0.0
        %2542 = vadd.xlane.f32.xlu0 %v2541
        %v2543 = vpop.xlane.xlu0 %2542
        %v2544 = vrcp.pop %v2522
        %v2545 = vrcp.pop %v2525
        %v2546 = vrcp.pop %v2528
        %v2547 = vrcp.pop %v2531
        %v2548 = vrcp.pop %v2534
        %v2549 = vrcp.pop %v2537
        %v2550 = vrcp.pop %v2540
        %v2551 = vrcp.pop %v2543
        %v2552 = vmul.f32 %v2505, %v2544
        %v2553 = vmul.f32 %v2507, %v2545
        %v2554 = vmul.f32 %v2509, %v2546
        %v2555 = vmul.f32 %v2511, %v2547
        %v2556 = vmul.f32 %v2513, %v2548
        %v2557 = vmul.f32 %v2515, %v2549
        %v2558 = vmul.f32 %v2517, %v2550
        %v2559 = vmul.f32 %v2519, %v2551
        %v2560 = vpack.c.bf16 %v2553, %v2552
        %v2561 = vpack.c.bf16 %v2555, %v2554
        %v2562 = vpack.c.bf16 %v2557, %v2556
        %v2563 = vpack.c.bf16 %v2559, %v2558
        %v2569 = vsel %vm1736, %v2560, 0
        %v2572 = vsel %vm1736, %v2561, 0
        %v2575 = vsel %vm1736, %v2562, 0
        %v2578 = vsel %vm1736, %v2563, 0
        %2580 = vmatprep.subr.bf16.mxu0 0
        %2581 = vmatpush1.bf16.msra.mxu0 %v2375
        %2582 = vmatprep.subr.bf16.mxu0 0
        %2583 = vmatpush1.bf16.msra.mxu0 %v2377
        %2584 = vmatprep.subr.bf16.mxu0 0
        %2585 = vmatpush1.bf16.msra.mxu0 %v2379
        %2586 = vmatprep.subr.bf16.mxu0 0
        %2587 = vmatpush1.bf16.msra.mxu0 %v2381
        %2588 = vmatprep.subr.bf16.mxu0 0
        %2589 = vmatpush1.bf16.msra.mxu0 0
        %2590 = vmatprep.subr.bf16.mxu0 0
        %2591 = vmatpush1.bf16.msra.mxu0 0
        %2592 = vmatprep.subr.bf16.mxu0 0
        %2593 = vmatpush1.bf16.msra.mxu0 0
        %2594 = vmatprep.subr.bf16.mxu0 0
        %2595 = vmatpush1.bf16.msra.mxu0 0
        %2596 = vmatprep.subr.bf16.mxu0 0
        %2597 = vmatpush1.bf16.msra.mxu0 0
        %2598 = vmatprep.subr.bf16.mxu0 0
        %2599 = vmatpush1.bf16.msra.mxu0 0
        %2600 = vmatprep.subr.bf16.mxu0 0
        %2601 = vmatpush1.bf16.msra.mxu0 0
        %2602 = vmatprep.subr.bf16.mxu0 0
        %2603 = vmatpush1.bf16.msra.mxu0 0
        %2604 = vmatprep.subr.bf16.mxu0 0
        %2605 = vmatpush1.bf16.msra.mxu0 0
        %2606 = vmatprep.subr.bf16.mxu0 0
        %2607 = vmatpush1.bf16.msra.mxu0 0
        %2608 = vmatprep.subr.bf16.mxu0 0
        %2609 = vmatpush1.bf16.msra.mxu0 0
        %2610 = vmatprep.subr.bf16.mxu0 0
        %2611 = vmatpush1.bf16.msra.mxu0 0
        %2612 = vmatprep.mubr.bf16.mxu0 0
        %2613 = vmatmul.mubr.bf16.gmra.mrb[0].mxu0 %v2569
        %v2614 = vpop.f32.mrb[0].mxu0
        %v2615 = vadd.f32 0.0, %v2614
        %v2616 = vpop.f32.mrb[0].mxu0
        %v2617 = vpop.f32.mrb[0].mxu0
        %v2618 = vadd.f32 0.0, %v2617
        %v2619 = vpop.f32.mrb[0].mxu0
        %2620 = vmatprep.mubr.bf16.mxu0 0
        %2621 = vmatmul.mubr.bf16.gmra.mrb[0].mxu0 %v2572
        %v2622 = vpop.f32.mrb[0].mxu0
        %v2623 = vadd.f32 0.0, %v2622
        %v2624 = vpop.f32.mrb[0].mxu0
        %v2625 = vpop.f32.mrb[0].mxu0
        %v2626 = vadd.f32 0.0, %v2625
        %v2627 = vpop.f32.mrb[0].mxu0
        %2628 = vmatprep.mubr.bf16.mxu0 0
        %2629 = vmatmul.mubr.bf16.gmra.mrb[0].mxu0 %v2575
        %v2630 = vpop.f32.mrb[0].mxu0
        %v2631 = vadd.f32 0.0, %v2630
        %v2632 = vpop.f32.mrb[0].mxu0
        %v2633 = vpop.f32.mrb[0].mxu0
        %v2634 = vadd.f32 0.0, %v2633
        %v2635 = vpop.f32.mrb[0].mxu0
        %2636 = vmatprep.mubr.bf16.mxu0 0
        %2637 = vmatmul.mubr.bf16.gmra.mrb[0].mxu0 %v2578
        %v2638 = vpop.f32.mrb[0].mxu0
        %v2639 = vadd.f32 0.0, %v2638
        %v2640 = vpop.f32.mrb[0].mxu0
        %v2641 = vpop.f32.mrb[0].mxu0
        %v2642 = vadd.f32 0.0, %v2641
        %v2643 = vpop.f32.mrb[0].mxu0
        %2644 = vdwg.mxu0
        %2649 = vrot.lane.b32.xlu0 %v2354, 96
        %v2650 = vpop.permute.xlu0 %2649
        %2651 = vrot.lane.b32.xlu0 %v2355, 96
        %v2652 = vpop.permute.xlu0 %2651
        %2653 = vrot.lane.b32.xlu0 %v2356, 96
        %v2654 = vpop.permute.xlu0 %2653
        %2655 = vrot.lane.b32.xlu0 %v2357, 96
        %v2656 = vpop.permute.xlu0 %2655
        %2657 = vrot.lane.b32.xlu0 %v2362, 32
        %v2658 = vpop.permute.xlu0 %2657
        %2659 = vrot.lane.b32.xlu0 %v2363, 32
        %v2660 = vpop.permute.xlu0 %2659
        %2661 = vrot.lane.b32.xlu0 %v2364, 32
        %v2662 = vpop.permute.xlu0 %2661
        %2663 = vrot.lane.b32.xlu0 %v2365, 32
        %v2664 = vpop.permute.xlu0 %2663
        %v2666 = vsel %vm2382, %v2650, 0
        %v2669 = vsel %vm2382, %v2652, 0
        %v2672 = vsel %vm2382, %v2654, 0
        %v2675 = vsel %vm2382, %v2656, 0
        %v2678 = vsel %vm2382, %v2658, 0
        %v2681 = vsel %vm2382, %v2660, 0
        %v2684 = vsel %vm2382, %v2662, 0
        %v2687 = vsel %vm2382, %v2664, 0
        %2689 = vmatprep.subr.bf16.mxu0 0
        %2690 = vmatpush1.bf16.xpose.msra.mxu0 %v2678
        %2691 = vmatprep.subr.bf16.mxu0 0
        %2692 = vmatpush1.bf16.xpose.msra.mxu0 %v2681
        %2693 = vmatprep.subr.bf16.mxu0 0
        %2694 = vmatpush1.bf16.xpose.msra.mxu0 %v2684
        %2695 = vmatprep.subr.bf16.mxu0 0
        %2696 = vmatpush1.bf16.xpose.msra.mxu0 %v2687
        %2697 = vmatprep.subr.bf16.mxu0 0
        %2698 = vmatpush1.bf16.xpose.msra.mxu0 0
        %2699 = vmatprep.subr.bf16.mxu0 0
        %2700 = vmatpush1.bf16.xpose.msra.mxu0 0
        %2701 = vmatprep.subr.bf16.mxu0 0
        %2702 = vmatpush1.bf16.xpose.msra.mxu0 0
        %2703 = vmatprep.subr.bf16.mxu0 0
        %2704 = vmatpush1.bf16.xpose.msra.mxu0 0
        %2705 = vmatprep.subr.bf16.mxu0 0
        %2706 = vmatpush1.bf16.xpose.msra.mxu0 0
        %2707 = vmatprep.subr.bf16.mxu0 0
        %2708 = vmatpush1.bf16.xpose.msra.mxu0 0
        %2709 = vmatprep.subr.bf16.mxu0 0
        %2710 = vmatpush1.bf16.xpose.msra.mxu0 0
        %2711 = vmatprep.subr.bf16.mxu0 0
        %2712 = vmatpush1.bf16.xpose.msra.mxu0 0
        %2713 = vmatprep.subr.bf16.mxu0 0
        %2714 = vmatpush1.bf16.xpose.msra.mxu0 0
        %2715 = vmatprep.subr.bf16.mxu0 0
        %2716 = vmatpush1.bf16.xpose.msra.mxu0 0
        %2717 = vmatprep.subr.bf16.mxu0 0
        %2718 = vmatpush1.bf16.xpose.msra.mxu0 0
        %2719 = vmatprep.subr.bf16.mxu0 0
        %2720 = vmatpush1.bf16.xpose.msra.mxu0 0
        %2721 = vmatprep.mubr.bf16.mxu0 0
        %2722 = vmatmul.mubr.bf16.gmra.mrb[0].mxu0 %v2666
        %v2723 = vpop.f32.mrb[0].mxu0
        %v2724 = vadd.f32 0.0, %v2723
        %v2725 = vpop.f32.mrb[0].mxu0
        %v2726 = vpop.f32.mrb[0].mxu0
        %v2727 = vadd.f32 0.0, %v2726
        %v2728 = vpop.f32.mrb[0].mxu0
        %2729 = vmatprep.mubr.bf16.mxu0 0
        %2730 = vmatmul.mubr.bf16.gmra.mrb[0].mxu0 %v2669
        %v2731 = vpop.f32.mrb[0].mxu0
        %v2732 = vadd.f32 0.0, %v2731
        %v2733 = vpop.f32.mrb[0].mxu0
        %v2734 = vpop.f32.mrb[0].mxu0
        %v2735 = vadd.f32 0.0, %v2734
        %v2736 = vpop.f32.mrb[0].mxu0
        %2737 = vmatprep.mubr.bf16.mxu0 0
        %2738 = vmatmul.mubr.bf16.gmra.mrb[0].mxu0 %v2672
        %v2739 = vpop.f32.mrb[0].mxu0
        %v2740 = vadd.f32 0.0, %v2739
        %v2741 = vpop.f32.mrb[0].mxu0
        %v2742 = vpop.f32.mrb[0].mxu0
        %v2743 = vadd.f32 0.0, %v2742
        %v2744 = vpop.f32.mrb[0].mxu0
        %2745 = vmatprep.mubr.bf16.mxu0 0
        %2746 = vmatmul.mubr.bf16.gmra.mrb[0].mxu0 %v2675
        %v2747 = vpop.f32.mrb[0].mxu0
        %v2748 = vadd.f32 0.0, %v2747
        %v2749 = vpop.f32.mrb[0].mxu0
        %v2750 = vpop.f32.mrb[0].mxu0
        %v2751 = vadd.f32 0.0, %v2750
        %v2752 = vpop.f32.mrb[0].mxu0
        %2753 = vdwg.mxu0
        %v2754 = vsel %vm1736, %v2724, -inf
        %2755 = vmax.xlane.f32.xlu0 %v2754
        %v2756 = vpop.xlane.xlu0 %2755
        %v2757 = vsel %vm1736, %v2727, -inf
        %2758 = vmax.xlane.f32.xlu0 %v2757
        %v2759 = vpop.xlane.xlu0 %2758
        %v2760 = vsel %vm1736, %v2732, -inf
        %2761 = vmax.xlane.f32.xlu0 %v2760
        %v2762 = vpop.xlane.xlu0 %2761
        %v2763 = vsel %vm1736, %v2735, -inf
        %2764 = vmax.xlane.f32.xlu0 %v2763
        %v2765 = vpop.xlane.xlu0 %2764
        %v2766 = vsel %vm1736, %v2740, -inf
        %2767 = vmax.xlane.f32.xlu0 %v2766
        %v2768 = vpop.xlane.xlu0 %2767
        %v2769 = vsel %vm1736, %v2743, -inf
        %2770 = vmax.xlane.f32.xlu0 %v2769
        %v2771 = vpop.xlane.xlu0 %2770
        %v2772 = vsel %vm1736, %v2748, -inf
        %2773 = vmax.xlane.f32.xlu0 %v2772
        %v2774 = vpop.xlane.xlu0 %2773
        %v2775 = vsel %vm1736, %v2751, -inf
        %2776 = vmax.xlane.f32.xlu0 %v2775
        %v2777 = vpop.xlane.xlu0 %2776
        %v2778 = vsub.f32 %v2724, %v2756
        %v2779 = vsub.f32 %v2727, %v2759
        %v2780 = vsub.f32 %v2732, %v2762
        %v2781 = vsub.f32 %v2735, %v2765
        %v2782 = vsub.f32 %v2740, %v2768
        %v2783 = vsub.f32 %v2743, %v2771
        %v2784 = vsub.f32 %v2748, %v2774
        %v2785 = vsub.f32 %v2751, %v2777
        %v2786 = vmul.f32 %v2778, 1.442695
        %v2787 = vpow.pop %v2786
        %v2788 = vmul.f32 %v2779, 1.442695
        %v2789 = vpow.pop %v2788
        %v2790 = vmul.f32 %v2780, 1.442695
        %v2791 = vpow.pop %v2790
        %v2792 = vmul.f32 %v2781, 1.442695
        %v2793 = vpow.pop %v2792
        %v2794 = vmul.f32 %v2782, 1.442695
        %v2795 = vpow.pop %v2794
        %v2796 = vmul.f32 %v2783, 1.442695
        %v2797 = vpow.pop %v2796
        %v2798 = vmul.f32 %v2784, 1.442695
        %v2799 = vpow.pop %v2798
        %v2800 = vmul.f32 %v2785, 1.442695
        %v2801 = vpow.pop %v2800
        %v2802 = vsel %vm1736, %v2787, 0.0
        %2803 = vadd.xlane.f32.xlu0 %v2802
        %v2804 = vpop.xlane.xlu0 %2803
        %v2805 = vsel %vm1736, %v2789, 0.0
        %2806 = vadd.xlane.f32.xlu0 %v2805
        %v2807 = vpop.xlane.xlu0 %2806
        %v2808 = vsel %vm1736, %v2791, 0.0
        %2809 = vadd.xlane.f32.xlu0 %v2808
        %v2810 = vpop.xlane.xlu0 %2809
        %v2811 = vsel %vm1736, %v2793, 0.0
        %2812 = vadd.xlane.f32.xlu0 %v2811
        %v2813 = vpop.xlane.xlu0 %2812
        %v2814 = vsel %vm1736, %v2795, 0.0
        %2815 = vadd.xlane.f32.xlu0 %v2814
        %v2816 = vpop.xlane.xlu0 %2815
        %v2817 = vsel %vm1736, %v2797, 0.0
        %2818 = vadd.xlane.f32.xlu0 %v2817
        %v2819 = vpop.xlane.xlu0 %2818
        %v2820 = vsel %vm1736, %v2799, 0.0
        %2821 = vadd.xlane.f32.xlu0 %v2820
        %v2822 = vpop.xlane.xlu0 %2821
        %v2823 = vsel %vm1736, %v2801, 0.0
        %2824 = vadd.xlane.f32.xlu0 %v2823
        %v2825 = vpop.xlane.xlu0 %2824
        %v2826 = vrcp.pop %v2804
        %v2827 = vrcp.pop %v2807
        %v2828 = vrcp.pop %v2810
        %v2829 = vrcp.pop %v2813
        %v2830 = vrcp.pop %v2816
        %v2831 = vrcp.pop %v2819
        %v2832 = vrcp.pop %v2822
        %v2833 = vrcp.pop %v2825
        %v2834 = vmul.f32 %v2787, %v2826
        %v2835 = vmul.f32 %v2789, %v2827
        %v2836 = vmul.f32 %v2791, %v2828
        %v2837 = vmul.f32 %v2793, %v2829
        %v2838 = vmul.f32 %v2795, %v2830
        %v2839 = vmul.f32 %v2797, %v2831
        %v2840 = vmul.f32 %v2799, %v2832
        %v2841 = vmul.f32 %v2801, %v2833
        %v2842 = vpack.c.bf16 %v2835, %v2834
        %v2843 = vpack.c.bf16 %v2837, %v2836
        %v2844 = vpack.c.bf16 %v2839, %v2838
        %v2845 = vpack.c.bf16 %v2841, %v2840
        %v2851 = vsel %vm1736, %v2842, 0
        %v2854 = vsel %vm1736, %v2843, 0
        %v2857 = vsel %vm1736, %v2844, 0
        %v2860 = vsel %vm1736, %v2845, 0
        %2862 = vmatprep.subr.bf16.mxu0 0
        %2863 = vmatpush1.bf16.msra.mxu0 %v2658
        %2864 = vmatprep.subr.bf16.mxu0 0
        %2865 = vmatpush1.bf16.msra.mxu0 %v2660
        %2866 = vmatprep.subr.bf16.mxu0 0
        %2867 = vmatpush1.bf16.msra.mxu0 %v2662
        %2868 = vmatprep.subr.bf16.mxu0 0
        %2869 = vmatpush1.bf16.msra.mxu0 %v2664
        %2870 = vmatprep.subr.bf16.mxu0 0
        %2871 = vmatpush1.bf16.msra.mxu0 0
        %2872 = vmatprep.subr.bf16.mxu0 0
        %2873 = vmatpush1.bf16.msra.mxu0 0
        %2874 = vmatprep.subr.bf16.mxu0 0
        %2875 = vmatpush1.bf16.msra.mxu0 0
        %2876 = vmatprep.subr.bf16.mxu0 0
        %2877 = vmatpush1.bf16.msra.mxu0 0
        %2878 = vmatprep.subr.bf16.mxu0 0
        %2879 = vmatpush1.bf16.msra.mxu0 0
        %2880 = vmatprep.subr.bf16.mxu0 0
        %2881 = vmatpush1.bf16.msra.mxu0 0
        %2882 = vmatprep.subr.bf16.mxu0 0
        %2883 = vmatpush1.bf16.msra.mxu0 0
        %2884 = vmatprep.subr.bf16.mxu0 0
        %2885 = vmatpush1.bf16.msra.mxu0 0
        %2886 = vmatprep.subr.bf16.mxu0 0
        %2887 = vmatpush1.bf16.msra.mxu0 0
        %2888 = vmatprep.subr.bf16.mxu0 0
        %2889 = vmatpush1.bf16.msra.mxu0 0
        %2890 = vmatprep.subr.bf16.mxu0 0
        %2891 = vmatpush1.bf16.msra.mxu0 0
        %2892 = vmatprep.subr.bf16.mxu0 0
        %2893 = vmatpush1.bf16.msra.mxu0 0
        %2894 = vmatprep.mubr.bf16.mxu0 0
        %2895 = vmatmul.mubr.bf16.gmra.mrb[0].mxu0 %v2851
        %v2896 = vpop.f32.mrb[0].mxu0
        %v2897 = vadd.f32 0.0, %v2896
        %v2898 = vpop.f32.mrb[0].mxu0
        %v2899 = vpop.f32.mrb[0].mxu0
        %v2900 = vadd.f32 0.0, %v2899
        %v2901 = vpop.f32.mrb[0].mxu0
        %2902 = vmatprep.mubr.bf16.mxu0 0
        %2903 = vmatmul.mubr.bf16.gmra.mrb[0].mxu0 %v2854
        %v2904 = vpop.f32.mrb[0].mxu0
        %v2905 = vadd.f32 0.0, %v2904
        %v2906 = vpop.f32.mrb[0].mxu0
        %v2907 = vpop.f32.mrb[0].mxu0
        %v2908 = vadd.f32 0.0, %v2907
        %v2909 = vpop.f32.mrb[0].mxu0
        %2910 = vmatprep.mubr.bf16.mxu0 0
        %2911 = vmatmul.mubr.bf16.gmra.mrb[0].mxu0 %v2857
        %v2912 = vpop.f32.mrb[0].mxu0
        %v2913 = vadd.f32 0.0, %v2912
        %v2914 = vpop.f32.mrb[0].mxu0
        %v2915 = vpop.f32.mrb[0].mxu0
        %v2916 = vadd.f32 0.0, %v2915
        %v2917 = vpop.f32.mrb[0].mxu0
        %2918 = vmatprep.mubr.bf16.mxu0 0
        %2919 = vmatmul.mubr.bf16.gmra.mrb[0].mxu0 %v2860
        %v2920 = vpop.f32.mrb[0].mxu0
        %v2921 = vadd.f32 0.0, %v2920
        %v2922 = vpop.f32.mrb[0].mxu0
        %v2923 = vpop.f32.mrb[0].mxu0
        %v2924 = vadd.f32 0.0, %v2923
        %v2925 = vpop.f32.mrb[0].mxu0
        %2926 = vdwg.mxu0
        %2935 = vrot.lane.b32.xlu0 %v2897, 32
        %v2936 = vpop.permute.xlu0 %2935
        %2937 = vrot.lane.b32.xlu0 %v2900, 32
        %v2938 = vpop.permute.xlu0 %2937
        %2939 = vrot.lane.b32.xlu0 %v2905, 32
        %v2940 = vpop.permute.xlu0 %2939
        %2941 = vrot.lane.b32.xlu0 %v2908, 32
        %v2942 = vpop.permute.xlu0 %2941
        %2943 = vrot.lane.b32.xlu0 %v2913, 32
        %v2944 = vpop.permute.xlu0 %2943
        %2945 = vrot.lane.b32.xlu0 %v2916, 32
        %v2946 = vpop.permute.xlu0 %2945
        %2947 = vrot.lane.b32.xlu0 %v2921, 32
        %v2948 = vpop.permute.xlu0 %2947
        %2949 = vrot.lane.b32.xlu0 %v2924, 32
        %v2950 = vpop.permute.xlu0 %2949
        %v2959 = vsel %vm2382, %v2615, %v2936
        %v2960 = vsel %vm2382, %v2618, %v2938
        %v2961 = vsel %vm2382, %v2623, %v2940
        %v2962 = vsel %vm2382, %v2626, %v2942
        %v2963 = vsel %vm2382, %v2631, %v2944
        %v2964 = vsel %vm2382, %v2634, %v2946
        %v2965 = vsel %vm2382, %v2639, %v2948
        %v2966 = vsel %vm2382, %v2642, %v2950
        %2971 = vrot.lane.b32.xlu0 %v2366, 64
        %v2972 = vpop.permute.xlu0 %2971
        %2973 = vrot.lane.b32.xlu0 %v2367, 64
        %v2974 = vpop.permute.xlu0 %2973
        %2975 = vrot.lane.b32.xlu0 %v2368, 64
        %v2976 = vpop.permute.xlu0 %2975
        %2977 = vrot.lane.b32.xlu0 %v2369, 64
        %v2978 = vpop.permute.xlu0 %2977
        %v2980 = vsel %vm2382, %v2358, 0
        %v2983 = vsel %vm2382, %v2359, 0
        %v2986 = vsel %vm2382, %v2360, 0
        %v2989 = vsel %vm2382, %v2361, 0
        %v2992 = vsel %vm2382, %v2972, 0
        %v2995 = vsel %vm2382, %v2974, 0
        %v2998 = vsel %vm2382, %v2976, 0
        %v3001 = vsel %vm2382, %v2978, 0
        %3003 = vmatprep.subr.bf16.mxu0 0
        %3004 = vmatpush1.bf16.xpose.msra.mxu0 %v2992
        %3005 = vmatprep.subr.bf16.mxu0 0
        %3006 = vmatpush1.bf16.xpose.msra.mxu0 %v2995
        %3007 = vmatprep.subr.bf16.mxu0 0
        %3008 = vmatpush1.bf16.xpose.msra.mxu0 %v2998
        %3009 = vmatprep.subr.bf16.mxu0 0
        %3010 = vmatpush1.bf16.xpose.msra.mxu0 %v3001
        %3011 = vmatprep.subr.bf16.mxu0 0
        %3012 = vmatpush1.bf16.xpose.msra.mxu0 0
        %3013 = vmatprep.subr.bf16.mxu0 0
        %3014 = vmatpush1.bf16.xpose.msra.mxu0 0
        %3015 = vmatprep.subr.bf16.mxu0 0
        %3016 = vmatpush1.bf16.xpose.msra.mxu0 0
        %3017 = vmatprep.subr.bf16.mxu0 0
        %3018 = vmatpush1.bf16.xpose.msra.mxu0 0
        %3019 = vmatprep.subr.bf16.mxu0 0
        %3020 = vmatpush1.bf16.xpose.msra.mxu0 0
        %3021 = vmatprep.subr.bf16.mxu0 0
        %3022 = vmatpush1.bf16.xpose.msra.mxu0 0
        %3023 = vmatprep.subr.bf16.mxu0 0
        %3024 = vmatpush1.bf16.xpose.msra.mxu0 0
        %3025 = vmatprep.subr.bf16.mxu0 0
        %3026 = vmatpush1.bf16.xpose.msra.mxu0 0
        %3027 = vmatprep.subr.bf16.mxu0 0
        %3028 = vmatpush1.bf16.xpose.msra.mxu0 0
        %3029 = vmatprep.subr.bf16.mxu0 0
        %3030 = vmatpush1.bf16.xpose.msra.mxu0 0
        %3031 = vmatprep.subr.bf16.mxu0 0
        %3032 = vmatpush1.bf16.xpose.msra.mxu0 0
        %3033 = vmatprep.subr.bf16.mxu0 0
        %3034 = vmatpush1.bf16.xpose.msra.mxu0 0
        %3035 = vmatprep.mubr.bf16.mxu0 0
        %3036 = vmatmul.mubr.bf16.gmra.mrb[0].mxu0 %v2980
        %v3037 = vpop.f32.mrb[0].mxu0
        %v3038 = vadd.f32 0.0, %v3037
        %v3039 = vpop.f32.mrb[0].mxu0
        %v3040 = vpop.f32.mrb[0].mxu0
        %v3041 = vadd.f32 0.0, %v3040
        %v3042 = vpop.f32.mrb[0].mxu0
        %3043 = vmatprep.mubr.bf16.mxu0 0
        %3044 = vmatmul.mubr.bf16.gmra.mrb[0].mxu0 %v2983
        %v3045 = vpop.f32.mrb[0].mxu0
        %v3046 = vadd.f32 0.0, %v3045
        %v3047 = vpop.f32.mrb[0].mxu0
        %v3048 = vpop.f32.mrb[0].mxu0
        %v3049 = vadd.f32 0.0, %v3048
        %v3050 = vpop.f32.mrb[0].mxu0
        %3051 = vmatprep.mubr.bf16.mxu0 0
        %3052 = vmatmul.mubr.bf16.gmra.mrb[0].mxu0 %v2986
        %v3053 = vpop.f32.mrb[0].mxu0
        %v3054 = vadd.f32 0.0, %v3053
        %v3055 = vpop.f32.mrb[0].mxu0
        %v3056 = vpop.f32.mrb[0].mxu0
        %v3057 = vadd.f32 0.0, %v3056
        %v3058 = vpop.f32.mrb[0].mxu0
        %3059 = vmatprep.mubr.bf16.mxu0 0
        %3060 = vmatmul.mubr.bf16.gmra.mrb[0].mxu0 %v2989
        %v3061 = vpop.f32.mrb[0].mxu0
        %v3062 = vadd.f32 0.0, %v3061
        %v3063 = vpop.f32.mrb[0].mxu0
        %v3064 = vpop.f32.mrb[0].mxu0
        %v3065 = vadd.f32 0.0, %v3064
        %v3066 = vpop.f32.mrb[0].mxu0
        %3067 = vdwg.mxu0
        %v3068 = vsel %vm1736, %v3038, -inf
        %3069 = vmax.xlane.f32.xlu0 %v3068
        %v3070 = vpop.xlane.xlu0 %3069
        %v3071 = vsel %vm1736, %v3041, -inf
        %3072 = vmax.xlane.f32.xlu0 %v3071
        %v3073 = vpop.xlane.xlu0 %3072
        %v3074 = vsel %vm1736, %v3046, -inf
        %3075 = vmax.xlane.f32.xlu0 %v3074
        %v3076 = vpop.xlane.xlu0 %3075
        %v3077 = vsel %vm1736, %v3049, -inf
        %3078 = vmax.xlane.f32.xlu0 %v3077
        %v3079 = vpop.xlane.xlu0 %3078
        %v3080 = vsel %vm1736, %v3054, -inf
        %3081 = vmax.xlane.f32.xlu0 %v3080
        %v3082 = vpop.xlane.xlu0 %3081
        %v3083 = vsel %vm1736, %v3057, -inf
        %3084 = vmax.xlane.f32.xlu0 %v3083
        %v3085 = vpop.xlane.xlu0 %3084
        %v3086 = vsel %vm1736, %v3062, -inf
        %3087 = vmax.xlane.f32.xlu0 %v3086
        %v3088 = vpop.xlane.xlu0 %3087
        %v3089 = vsel %vm1736, %v3065, -inf
        %3090 = vmax.xlane.f32.xlu0 %v3089
        %v3091 = vpop.xlane.xlu0 %3090
        %v3092 = vsub.f32 %v3038, %v3070
        %v3093 = vsub.f32 %v3041, %v3073
        %v3094 = vsub.f32 %v3046, %v3076
        %v3095 = vsub.f32 %v3049, %v3079
        %v3096 = vsub.f32 %v3054, %v3082
        %v3097 = vsub.f32 %v3057, %v3085
        %v3098 = vsub.f32 %v3062, %v3088
        %v3099 = vsub.f32 %v3065, %v3091
        %v3100 = vmul.f32 %v3092, 1.442695
        %v3101 = vpow.pop %v3100
        %v3102 = vmul.f32 %v3093, 1.442695
        %v3103 = vpow.pop %v3102
        %v3104 = vmul.f32 %v3094, 1.442695
        %v3105 = vpow.pop %v3104
        %v3106 = vmul.f32 %v3095, 1.442695
        %v3107 = vpow.pop %v3106
        %v3108 = vmul.f32 %v3096, 1.442695
        %v3109 = vpow.pop %v3108
        %v3110 = vmul.f32 %v3097, 1.442695
        %v3111 = vpow.pop %v3110
        %v3112 = vmul.f32 %v3098, 1.442695
        %v3113 = vpow.pop %v3112
        %v3114 = vmul.f32 %v3099, 1.442695
        %v3115 = vpow.pop %v3114
        %v3116 = vsel %vm1736, %v3101, 0.0
        %3117 = vadd.xlane.f32.xlu0 %v3116
        %v3118 = vpop.xlane.xlu0 %3117
        %v3119 = vsel %vm1736, %v3103, 0.0
        %3120 = vadd.xlane.f32.xlu0 %v3119
        %v3121 = vpop.xlane.xlu0 %3120
        %v3122 = vsel %vm1736, %v3105, 0.0
        %3123 = vadd.xlane.f32.xlu0 %v3122
        %v3124 = vpop.xlane.xlu0 %3123
        %v3125 = vsel %vm1736, %v3107, 0.0
        %3126 = vadd.xlane.f32.xlu0 %v3125
        %v3127 = vpop.xlane.xlu0 %3126
        %v3128 = vsel %vm1736, %v3109, 0.0
        %3129 = vadd.xlane.f32.xlu0 %v3128
        %v3130 = vpop.xlane.xlu0 %3129
        %v3131 = vsel %vm1736, %v3111, 0.0
        %3132 = vadd.xlane.f32.xlu0 %v3131
        %v3133 = vpop.xlane.xlu0 %3132
        %v3134 = vsel %vm1736, %v3113, 0.0
        %3135 = vadd.xlane.f32.xlu0 %v3134
        %v3136 = vpop.xlane.xlu0 %3135
        %v3137 = vsel %vm1736, %v3115, 0.0
        %3138 = vadd.xlane.f32.xlu0 %v3137
        %v3139 = vpop.xlane.xlu0 %3138
        %v3140 = vrcp.pop %v3118
        %v3141 = vrcp.pop %v3121
        %v3142 = vrcp.pop %v3124
        %v3143 = vrcp.pop %v3127
        %v3144 = vrcp.pop %v3130
        %v3145 = vrcp.pop %v3133
        %v3146 = vrcp.pop %v3136
        %v3147 = vrcp.pop %v3139
        %v3148 = vmul.f32 %v3101, %v3140
        %v3149 = vmul.f32 %v3103, %v3141
        %v3150 = vmul.f32 %v3105, %v3142
        %v3151 = vmul.f32 %v3107, %v3143
        %v3152 = vmul.f32 %v3109, %v3144
        %v3153 = vmul.f32 %v3111, %v3145
        %v3154 = vmul.f32 %v3113, %v3146
        %v3155 = vmul.f32 %v3115, %v3147
        %v3156 = vpack.c.bf16 %v3149, %v3148
        %v3157 = vpack.c.bf16 %v3151, %v3150
        %v3158 = vpack.c.bf16 %v3153, %v3152
        %v3159 = vpack.c.bf16 %v3155, %v3154
        %v3165 = vsel %vm1736, %v3156, 0
        %v3168 = vsel %vm1736, %v3157, 0
        %v3171 = vsel %vm1736, %v3158, 0
        %v3174 = vsel %vm1736, %v3159, 0
        %3176 = vmatprep.subr.bf16.mxu0 0
        %3177 = vmatpush1.bf16.msra.mxu0 %v2972
        %3178 = vmatprep.subr.bf16.mxu0 0
        %3179 = vmatpush1.bf16.msra.mxu0 %v2974
        %3180 = vmatprep.subr.bf16.mxu0 0
        %3181 = vmatpush1.bf16.msra.mxu0 %v2976
        %3182 = vmatprep.subr.bf16.mxu0 0
        %3183 = vmatpush1.bf16.msra.mxu0 %v2978
        %3184 = vmatprep.subr.bf16.mxu0 0
        %3185 = vmatpush1.bf16.msra.mxu0 0
        %3186 = vmatprep.subr.bf16.mxu0 0
        %3187 = vmatpush1.bf16.msra.mxu0 0
        %3188 = vmatprep.subr.bf16.mxu0 0
        %3189 = vmatpush1.bf16.msra.mxu0 0
        %3190 = vmatprep.subr.bf16.mxu0 0
        %3191 = vmatpush1.bf16.msra.mxu0 0
        %3192 = vmatprep.subr.bf16.mxu0 0
        %3193 = vmatpush1.bf16.msra.mxu0 0
        %3194 = vmatprep.subr.bf16.mxu0 0
        %3195 = vmatpush1.bf16.msra.mxu0 0
        %3196 = vmatprep.subr.bf16.mxu0 0
        %3197 = vmatpush1.bf16.msra.mxu0 0
        %3198 = vmatprep.subr.bf16.mxu0 0
        %3199 = vmatpush1.bf16.msra.mxu0 0
        %3200 = vmatprep.subr.bf16.mxu0 0
        %3201 = vmatpush1.bf16.msra.mxu0 0
        %3202 = vmatprep.subr.bf16.mxu0 0
        %3203 = vmatpush1.bf16.msra.mxu0 0
        %3204 = vmatprep.subr.bf16.mxu0 0
        %3205 = vmatpush1.bf16.msra.mxu0 0
        %3206 = vmatprep.subr.bf16.mxu0 0
        %3207 = vmatpush1.bf16.msra.mxu0 0
        %3208 = vmatprep.mubr.bf16.mxu0 0
        %3209 = vmatmul.mubr.bf16.gmra.mrb[0].mxu0 %v3165
        %v3210 = vpop.f32.mrb[0].mxu0
        %v3211 = vadd.f32 0.0, %v3210
        %v3212 = vpop.f32.mrb[0].mxu0
        %v3213 = vpop.f32.mrb[0].mxu0
        %v3214 = vadd.f32 0.0, %v3213
        %v3215 = vpop.f32.mrb[0].mxu0
        %3216 = vmatprep.mubr.bf16.mxu0 0
        %3217 = vmatmul.mubr.bf16.gmra.mrb[0].mxu0 %v3168
        %v3218 = vpop.f32.mrb[0].mxu0
        %v3219 = vadd.f32 0.0, %v3218
        %v3220 = vpop.f32.mrb[0].mxu0
        %v3221 = vpop.f32.mrb[0].mxu0
        %v3222 = vadd.f32 0.0, %v3221
        %v3223 = vpop.f32.mrb[0].mxu0
        %3224 = vmatprep.mubr.bf16.mxu0 0
        %3225 = vmatmul.mubr.bf16.gmra.mrb[0].mxu0 %v3171
        %v3226 = vpop.f32.mrb[0].mxu0
        %v3227 = vadd.f32 0.0, %v3226
        %v3228 = vpop.f32.mrb[0].mxu0
        %v3229 = vpop.f32.mrb[0].mxu0
        %v3230 = vadd.f32 0.0, %v3229
        %v3231 = vpop.f32.mrb[0].mxu0
        %3232 = vmatprep.mubr.bf16.mxu0 0
        %3233 = vmatmul.mubr.bf16.gmra.mrb[0].mxu0 %v3174
        %v3234 = vpop.f32.mrb[0].mxu0
        %v3235 = vadd.f32 0.0, %v3234
        %v3236 = vpop.f32.mrb[0].mxu0
        %v3237 = vpop.f32.mrb[0].mxu0
        %v3238 = vadd.f32 0.0, %v3237
        %v3239 = vpop.f32.mrb[0].mxu0
        %3240 = vdwg.mxu0
        %3245 = vrot.lane.b32.xlu0 %v2358, 96
        %v3246 = vpop.permute.xlu0 %3245
        %3247 = vrot.lane.b32.xlu0 %v2359, 96
        %v3248 = vpop.permute.xlu0 %3247
        %3249 = vrot.lane.b32.xlu0 %v2360, 96
        %v3250 = vpop.permute.xlu0 %3249
        %3251 = vrot.lane.b32.xlu0 %v2361, 96
        %v3252 = vpop.permute.xlu0 %3251
        %3253 = vrot.lane.b32.xlu0 %v2366, 32
        %v3254 = vpop.permute.xlu0 %3253
        %3255 = vrot.lane.b32.xlu0 %v2367, 32
        %v3256 = vpop.permute.xlu0 %3255
        %3257 = vrot.lane.b32.xlu0 %v2368, 32
        %v3258 = vpop.permute.xlu0 %3257
        %3259 = vrot.lane.b32.xlu0 %v2369, 32
        %v3260 = vpop.permute.xlu0 %3259
        %v3262 = vsel %vm2382, %v3246, 0
        %v3265 = vsel %vm2382, %v3248, 0
        %v3268 = vsel %vm2382, %v3250, 0
        %v3271 = vsel %vm2382, %v3252, 0
        %v3274 = vsel %vm2382, %v3254, 0
        %v3277 = vsel %vm2382, %v3256, 0
        %v3280 = vsel %vm2382, %v3258, 0
        %v3283 = vsel %vm2382, %v3260, 0
        %3285 = vmatprep.subr.bf16.mxu0 0
        %3286 = vmatpush1.bf16.xpose.msra.mxu0 %v3274
        %3287 = vmatprep.subr.bf16.mxu0 0
        %3288 = vmatpush1.bf16.xpose.msra.mxu0 %v3277
        %3289 = vmatprep.subr.bf16.mxu0 0
        %3290 = vmatpush1.bf16.xpose.msra.mxu0 %v3280
        %3291 = vmatprep.subr.bf16.mxu0 0
        %3292 = vmatpush1.bf16.xpose.msra.mxu0 %v3283
        %3293 = vmatprep.subr.bf16.mxu0 0
        %3294 = vmatpush1.bf16.xpose.msra.mxu0 0
        %3295 = vmatprep.subr.bf16.mxu0 0
        %3296 = vmatpush1.bf16.xpose.msra.mxu0 0
        %3297 = vmatprep.subr.bf16.mxu0 0
        %3298 = vmatpush1.bf16.xpose.msra.mxu0 0
        %3299 = vmatprep.subr.bf16.mxu0 0
        %3300 = vmatpush1.bf16.xpose.msra.mxu0 0
        %3301 = vmatprep.subr.bf16.mxu0 0
        %3302 = vmatpush1.bf16.xpose.msra.mxu0 0
        %3303 = vmatprep.subr.bf16.mxu0 0
        %3304 = vmatpush1.bf16.xpose.msra.mxu0 0
        %3305 = vmatprep.subr.bf16.mxu0 0
        %3306 = vmatpush1.bf16.xpose.msra.mxu0 0
        %3307 = vmatprep.subr.bf16.mxu0 0
        %3308 = vmatpush1.bf16.xpose.msra.mxu0 0
        %3309 = vmatprep.subr.bf16.mxu0 0
        %3310 = vmatpush1.bf16.xpose.msra.mxu0 0
        %3311 = vmatprep.subr.bf16.mxu0 0
        %3312 = vmatpush1.bf16.xpose.msra.mxu0 0
        %3313 = vmatprep.subr.bf16.mxu0 0
        %3314 = vmatpush1.bf16.xpose.msra.mxu0 0
        %3315 = vmatprep.subr.bf16.mxu0 0
        %3316 = vmatpush1.bf16.xpose.msra.mxu0 0
        %3317 = vmatprep.mubr.bf16.mxu0 0
        %3318 = vmatmul.mubr.bf16.gmra.mrb[0].mxu0 %v3262
        %v3319 = vpop.f32.mrb[0].mxu0
        %v3320 = vadd.f32 0.0, %v3319
        %v3321 = vpop.f32.mrb[0].mxu0
        %v3322 = vpop.f32.mrb[0].mxu0
        %v3323 = vadd.f32 0.0, %v3322
        %v3324 = vpop.f32.mrb[0].mxu0
        %3325 = vmatprep.mubr.bf16.mxu0 0
        %3326 = vmatmul.mubr.bf16.gmra.mrb[0].mxu0 %v3265
        %v3327 = vpop.f32.mrb[0].mxu0
        %v3328 = vadd.f32 0.0, %v3327
        %v3329 = vpop.f32.mrb[0].mxu0
        %v3330 = vpop.f32.mrb[0].mxu0
        %v3331 = vadd.f32 0.0, %v3330
        %v3332 = vpop.f32.mrb[0].mxu0
        %3333 = vmatprep.mubr.bf16.mxu0 0
        %3334 = vmatmul.mubr.bf16.gmra.mrb[0].mxu0 %v3268
        %v3335 = vpop.f32.mrb[0].mxu0
        %v3336 = vadd.f32 0.0, %v3335
        %v3337 = vpop.f32.mrb[0].mxu0
        %v3338 = vpop.f32.mrb[0].mxu0
        %v3339 = vadd.f32 0.0, %v3338
        %v3340 = vpop.f32.mrb[0].mxu0
        %3341 = vmatprep.mubr.bf16.mxu0 0
        %3342 = vmatmul.mubr.bf16.gmra.mrb[0].mxu0 %v3271
        %v3343 = vpop.f32.mrb[0].mxu0
        %v3344 = vadd.f32 0.0, %v3343
        %v3345 = vpop.f32.mrb[0].mxu0
        %v3346 = vpop.f32.mrb[0].mxu0
        %v3347 = vadd.f32 0.0, %v3346
        %v3348 = vpop.f32.mrb[0].mxu0
        %3349 = vdwg.mxu0
        %v3350 = vsel %vm1736, %v3320, -inf
        %3351 = vmax.xlane.f32.xlu0 %v3350
        %v3352 = vpop.xlane.xlu0 %3351
        %v3353 = vsel %vm1736, %v3323, -inf
        %3354 = vmax.xlane.f32.xlu0 %v3353
        %v3355 = vpop.xlane.xlu0 %3354
        %v3356 = vsel %vm1736, %v3328, -inf
        %3357 = vmax.xlane.f32.xlu0 %v3356
        %v3358 = vpop.xlane.xlu0 %3357
        %v3359 = vsel %vm1736, %v3331, -inf
        %3360 = vmax.xlane.f32.xlu0 %v3359
        %v3361 = vpop.xlane.xlu0 %3360
        %v3362 = vsel %vm1736, %v3336, -inf
        %3363 = vmax.xlane.f32.xlu0 %v3362
        %v3364 = vpop.xlane.xlu0 %3363
        %v3365 = vsel %vm1736, %v3339, -inf
        %3366 = vmax.xlane.f32.xlu0 %v3365
        %v3367 = vpop.xlane.xlu0 %3366
        %v3368 = vsel %vm1736, %v3344, -inf
        %3369 = vmax.xlane.f32.xlu0 %v3368
        %v3370 = vpop.xlane.xlu0 %3369
        %v3371 = vsel %vm1736, %v3347, -inf
        %3372 = vmax.xlane.f32.xlu0 %v3371
        %v3373 = vpop.xlane.xlu0 %3372
        %v3374 = vsub.f32 %v3320, %v3352
        %v3375 = vsub.f32 %v3323, %v3355
        %v3376 = vsub.f32 %v3328, %v3358
        %v3377 = vsub.f32 %v3331, %v3361
        %v3378 = vsub.f32 %v3336, %v3364
        %v3379 = vsub.f32 %v3339, %v3367
        %v3380 = vsub.f32 %v3344, %v3370
        %v3381 = vsub.f32 %v3347, %v3373
        %v3382 = vmul.f32 %v3374, 1.442695
        %v3383 = vpow.pop %v3382
        %v3384 = vmul.f32 %v3375, 1.442695
        %v3385 = vpow.pop %v3384
        %v3386 = vmul.f32 %v3376, 1.442695
        %v3387 = vpow.pop %v3386
        %v3388 = vmul.f32 %v3377, 1.442695
        %v3389 = vpow.pop %v3388
        %v3390 = vmul.f32 %v3378, 1.442695
        %v3391 = vpow.pop %v3390
        %v3392 = vmul.f32 %v3379, 1.442695
        %v3393 = vpow.pop %v3392
        %v3394 = vmul.f32 %v3380, 1.442695
        %v3395 = vpow.pop %v3394
        %v3396 = vmul.f32 %v3381, 1.442695
        %v3397 = vpow.pop %v3396
        %v3398 = vsel %vm1736, %v3383, 0.0
        %3399 = vadd.xlane.f32.xlu0 %v3398
        %v3400 = vpop.xlane.xlu0 %3399
        %v3401 = vsel %vm1736, %v3385, 0.0
        %3402 = vadd.xlane.f32.xlu0 %v3401
        %v3403 = vpop.xlane.xlu0 %3402
        %v3404 = vsel %vm1736, %v3387, 0.0
        %3405 = vadd.xlane.f32.xlu0 %v3404
        %v3406 = vpop.xlane.xlu0 %3405
        %v3407 = vsel %vm1736, %v3389, 0.0
        %3408 = vadd.xlane.f32.xlu0 %v3407
        %v3409 = vpop.xlane.xlu0 %3408
        %v3410 = vsel %vm1736, %v3391, 0.0
        %3411 = vadd.xlane.f32.xlu0 %v3410
        %v3412 = vpop.xlane.xlu0 %3411
        %v3413 = vsel %vm1736, %v3393, 0.0
        %3414 = vadd.xlane.f32.xlu0 %v3413
        %v3415 = vpop.xlane.xlu0 %3414
        %v3416 = vsel %vm1736, %v3395, 0.0
        %3417 = vadd.xlane.f32.xlu0 %v3416
        %v3418 = vpop.xlane.xlu0 %3417
        %v3419 = vsel %vm1736, %v3397, 0.0
        %3420 = vadd.xlane.f32.xlu0 %v3419
        %v3421 = vpop.xlane.xlu0 %3420
        %v3422 = vrcp.pop %v3400
        %v3423 = vrcp.pop %v3403
        %v3424 = vrcp.pop %v3406
        %v3425 = vrcp.pop %v3409
        %v3426 = vrcp.pop %v3412
        %v3427 = vrcp.pop %v3415
        %v3428 = vrcp.pop %v3418
        %v3429 = vrcp.pop %v3421
        %v3430 = vmul.f32 %v3383, %v3422
        %v3431 = vmul.f32 %v3385, %v3423
        %v3432 = vmul.f32 %v3387, %v3424
        %v3433 = vmul.f32 %v3389, %v3425
        %v3434 = vmul.f32 %v3391, %v3426
        %v3435 = vmul.f32 %v3393, %v3427
        %v3436 = vmul.f32 %v3395, %v3428
        %v3437 = vmul.f32 %v3397, %v3429
        %v3438 = vpack.c.bf16 %v3431, %v3430
        %v3439 = vpack.c.bf16 %v3433, %v3432
        %v3440 = vpack.c.bf16 %v3435, %v3434
        %v3441 = vpack.c.bf16 %v3437, %v3436
        %v3447 = vsel %vm1736, %v3438, 0
        %v3450 = vsel %vm1736, %v3439, 0
        %v3453 = vsel %vm1736, %v3440, 0
        %v3456 = vsel %vm1736, %v3441, 0
        %3458 = vmatprep.subr.bf16.mxu0 0
        %3459 = vmatpush1.bf16.msra.mxu0 %v3254
        %3460 = vmatprep.subr.bf16.mxu0 0
        %3461 = vmatpush1.bf16.msra.mxu0 %v3256
        %3462 = vmatprep.subr.bf16.mxu0 0
        %3463 = vmatpush1.bf16.msra.mxu0 %v3258
        %3464 = vmatprep.subr.bf16.mxu0 0
        %3465 = vmatpush1.bf16.msra.mxu0 %v3260
        %3466 = vmatprep.subr.bf16.mxu0 0
        %3467 = vmatpush1.bf16.msra.mxu0 0
        %3468 = vmatprep.subr.bf16.mxu0 0
        %3469 = vmatpush1.bf16.msra.mxu0 0
        %3470 = vmatprep.subr.bf16.mxu0 0
        %3471 = vmatpush1.bf16.msra.mxu0 0
        %3472 = vmatprep.subr.bf16.mxu0 0
        %3473 = vmatpush1.bf16.msra.mxu0 0
        %3474 = vmatprep.subr.bf16.mxu0 0
        %3475 = vmatpush1.bf16.msra.mxu0 0
        %3476 = vmatprep.subr.bf16.mxu0 0
        %3477 = vmatpush1.bf16.msra.mxu0 0
        %3478 = vmatprep.subr.bf16.mxu0 0
        %3479 = vmatpush1.bf16.msra.mxu0 0
        %3480 = vmatprep.subr.bf16.mxu0 0
        %3481 = vmatpush1.bf16.msra.mxu0 0
        %3482 = vmatprep.subr.bf16.mxu0 0
        %3483 = vmatpush1.bf16.msra.mxu0 0
        %3484 = vmatprep.subr.bf16.mxu0 0
        %3485 = vmatpush1.bf16.msra.mxu0 0
        %3486 = vmatprep.subr.bf16.mxu0 0
        %3487 = vmatpush1.bf16.msra.mxu0 0
        %3488 = vmatprep.subr.bf16.mxu0 0
        %3489 = vmatpush1.bf16.msra.mxu0 0
        %3490 = vmatprep.mubr.bf16.mxu0 0
        %3491 = vmatmul.mubr.bf16.gmra.mrb[0].mxu0 %v3447
        %v3492 = vpop.f32.mrb[0].mxu0
        %v3493 = vadd.f32 0.0, %v3492
        %v3494 = vpop.f32.mrb[0].mxu0
        %v3495 = vpop.f32.mrb[0].mxu0
        %v3496 = vadd.f32 0.0, %v3495
        %v3497 = vpop.f32.mrb[0].mxu0
        %3498 = vmatprep.mubr.bf16.mxu0 0
        %3499 = vmatmul.mubr.bf16.gmra.mrb[0].mxu0 %v3450
        %v3500 = vpop.f32.mrb[0].mxu0
        %v3501 = vadd.f32 0.0, %v3500
        %v3502 = vpop.f32.mrb[0].mxu0
        %v3503 = vpop.f32.mrb[0].mxu0
        %v3504 = vadd.f32 0.0, %v3503
        %v3505 = vpop.f32.mrb[0].mxu0
        %3506 = vmatprep.mubr.bf16.mxu0 0
        %3507 = vmatmul.mubr.bf16.gmra.mrb[0].mxu0 %v3453
        %v3508 = vpop.f32.mrb[0].mxu0
        %v3509 = vadd.f32 0.0, %v3508
        %v3510 = vpop.f32.mrb[0].mxu0
        %v3511 = vpop.f32.mrb[0].mxu0
        %v3512 = vadd.f32 0.0, %v3511
        %v3513 = vpop.f32.mrb[0].mxu0
        %3514 = vmatprep.mubr.bf16.mxu0 0
        %3515 = vmatmul.mubr.bf16.gmra.mrb[0].mxu0 %v3456
        %v3516 = vpop.f32.mrb[0].mxu0
        %v3517 = vadd.f32 0.0, %v3516
        %v3518 = vpop.f32.mrb[0].mxu0
        %v3519 = vpop.f32.mrb[0].mxu0
        %v3520 = vadd.f32 0.0, %v3519
        %v3521 = vpop.f32.mrb[0].mxu0
        %3522 = vdwg.mxu0
        %3531 = vrot.lane.b32.xlu0 %v3493, 32
        %v3532 = vpop.permute.xlu0 %3531
        %3533 = vrot.lane.b32.xlu0 %v3496, 32
        %v3534 = vpop.permute.xlu0 %3533
        %3535 = vrot.lane.b32.xlu0 %v3501, 32
        %v3536 = vpop.permute.xlu0 %3535
        %3537 = vrot.lane.b32.xlu0 %v3504, 32
        %v3538 = vpop.permute.xlu0 %3537
        %3539 = vrot.lane.b32.xlu0 %v3509, 32
        %v3540 = vpop.permute.xlu0 %3539
        %3541 = vrot.lane.b32.xlu0 %v3512, 32
        %v3542 = vpop.permute.xlu0 %3541
        %3543 = vrot.lane.b32.xlu0 %v3517, 32
        %v3544 = vpop.permute.xlu0 %3543
        %3545 = vrot.lane.b32.xlu0 %v3520, 32
        %v3546 = vpop.permute.xlu0 %3545
        %v3555 = vsel %vm2382, %v3211, %v3532
        %v3556 = vsel %vm2382, %v3214, %v3534
        %v3557 = vsel %vm2382, %v3219, %v3536
        %v3558 = vsel %vm2382, %v3222, %v3538
        %v3559 = vsel %vm2382, %v3227, %v3540
        %v3560 = vsel %vm2382, %v3230, %v3542
        %v3561 = vsel %vm2382, %v3235, %v3544
        %v3562 = vsel %vm2382, %v3238, %v3546
        %v3563 = vadd.f32 %v1718, %v2959
        %v3564 = vadd.f32 %v1719, %v2960
        %v3565 = vadd.f32 %v1720, %v2961
        %v3566 = vadd.f32 %v1721, %v2962
        %v3567 = vadd.f32 %v1722, %v2963
        %v3568 = vadd.f32 %v1723, %v2964
        %v3569 = vadd.f32 %v1724, %v2965
        %v3570 = vadd.f32 %v1725, %v2966
        %v3571 = vadd.f32 %v1726, %v3555
        %v3572 = vadd.f32 %v1727, %v3556
        %v3573 = vadd.f32 %v1728, %v3557
        %v3574 = vadd.f32 %v1729, %v3558
        %v3575 = vadd.f32 %v1730, %v3559
        %v3576 = vadd.f32 %v1731, %v3560
        %v3577 = vadd.f32 %v1732, %v3561
        %v3578 = vadd.f32 %v1733, %v3562
        %v3579 = vld [vmem:[%s10] sm:$0x1]
        %v3580 = vld [vmem:[%s11] sm:$0x1]
        %v3581 = vsel %vm1736, %v3563, 0.0
        %3582 = vadd.xlane.f32.xlu0 %v3581
        %v3583 = vpop.xlane.xlu0 %3582
        %v3584 = vsel %vm1736, %v3564, 0.0
        %3585 = vadd.xlane.f32.xlu0 %v3584
        %v3586 = vpop.xlane.xlu0 %3585
        %v3587 = vsel %vm1736, %v3565, 0.0
        %3588 = vadd.xlane.f32.xlu0 %v3587
        %v3589 = vpop.xlane.xlu0 %3588
        %v3590 = vsel %vm1736, %v3566, 0.0
        %3591 = vadd.xlane.f32.xlu0 %v3590
        %v3592 = vpop.xlane.xlu0 %3591
        %v3593 = vsel %vm1736, %v3567, 0.0
        %3594 = vadd.xlane.f32.xlu0 %v3593
        %v3595 = vpop.xlane.xlu0 %3594
        %v3596 = vsel %vm1736, %v3568, 0.0
        %3597 = vadd.xlane.f32.xlu0 %v3596
        %v3598 = vpop.xlane.xlu0 %3597
        %v3599 = vsel %vm1736, %v3569, 0.0
        %3600 = vadd.xlane.f32.xlu0 %v3599
        %v3601 = vpop.xlane.xlu0 %3600
        %v3602 = vsel %vm1736, %v3570, 0.0
        %3603 = vadd.xlane.f32.xlu0 %v3602
        %v3604 = vpop.xlane.xlu0 %3603
        %v3605 = vsel %vm1736, %v3571, 0.0
        %3606 = vadd.xlane.f32.xlu0 %v3605
        %v3607 = vpop.xlane.xlu0 %3606
        %v3608 = vsel %vm1736, %v3572, 0.0
        %3609 = vadd.xlane.f32.xlu0 %v3608
        %v3610 = vpop.xlane.xlu0 %3609
        %v3611 = vsel %vm1736, %v3573, 0.0
        %3612 = vadd.xlane.f32.xlu0 %v3611
        %v3613 = vpop.xlane.xlu0 %3612
        %v3614 = vsel %vm1736, %v3574, 0.0
        %3615 = vadd.xlane.f32.xlu0 %v3614
        %v3616 = vpop.xlane.xlu0 %3615
        %v3617 = vsel %vm1736, %v3575, 0.0
        %3618 = vadd.xlane.f32.xlu0 %v3617
        %v3619 = vpop.xlane.xlu0 %3618
        %v3620 = vsel %vm1736, %v3576, 0.0
        %3621 = vadd.xlane.f32.xlu0 %v3620
        %v3622 = vpop.xlane.xlu0 %3621
        %v3623 = vsel %vm1736, %v3577, 0.0
        %3624 = vadd.xlane.f32.xlu0 %v3623
        %v3625 = vpop.xlane.xlu0 %3624
        %v3626 = vsel %vm1736, %v3578, 0.0
        %3627 = vadd.xlane.f32.xlu0 %v3626
        %v3628 = vpop.xlane.xlu0 %3627
        %v3629 = vmul.f32 %v3583, %v1785
        %v3630 = vmul.f32 %v3586, %v1785
        %v3631 = vmul.f32 %v3589, %v1785
        %v3632 = vmul.f32 %v3592, %v1785
        %v3633 = vmul.f32 %v3595, %v1785
        %v3634 = vmul.f32 %v3598, %v1785
        %v3635 = vmul.f32 %v3601, %v1785
        %v3636 = vmul.f32 %v3604, %v1785
        %v3637 = vmul.f32 %v3607, %v1785
        %v3638 = vmul.f32 %v3610, %v1785
        %v3639 = vmul.f32 %v3613, %v1785
        %v3640 = vmul.f32 %v3616, %v1785
        %v3641 = vmul.f32 %v3619, %v1785
        %v3642 = vmul.f32 %v3622, %v1785
        %v3643 = vmul.f32 %v3625, %v1785
        %v3644 = vmul.f32 %v3628, %v1785
        %v3645 = vsub.f32 %v3563, %v3629
        %v3646 = vsub.f32 %v3564, %v3630
        %v3647 = vsub.f32 %v3565, %v3631
        %v3648 = vsub.f32 %v3566, %v3632
        %v3649 = vsub.f32 %v3567, %v3633
        %v3650 = vsub.f32 %v3568, %v3634
        %v3651 = vsub.f32 %v3569, %v3635
        %v3652 = vsub.f32 %v3570, %v3636
        %v3653 = vsub.f32 %v3571, %v3637
        %v3654 = vsub.f32 %v3572, %v3638
        %v3655 = vsub.f32 %v3573, %v3639
        %v3656 = vsub.f32 %v3574, %v3640
        %v3657 = vsub.f32 %v3575, %v3641
        %v3658 = vsub.f32 %v3576, %v3642
        %v3659 = vsub.f32 %v3577, %v3643
        %v3660 = vsub.f32 %v3578, %v3644
        %v3661 = vmul.f32 %v3645, %v3645
        %v3662 = vmul.f32 %v3646, %v3646
        %v3663 = vmul.f32 %v3647, %v3647
        %v3664 = vmul.f32 %v3648, %v3648
        %v3665 = vmul.f32 %v3649, %v3649
        %v3666 = vmul.f32 %v3650, %v3650
        %v3667 = vmul.f32 %v3651, %v3651
        %v3668 = vmul.f32 %v3652, %v3652
        %v3669 = vmul.f32 %v3653, %v3653
        %v3670 = vmul.f32 %v3654, %v3654
        %v3671 = vmul.f32 %v3655, %v3655
        %v3672 = vmul.f32 %v3656, %v3656
        %v3673 = vmul.f32 %v3657, %v3657
        %v3674 = vmul.f32 %v3658, %v3658
        %v3675 = vmul.f32 %v3659, %v3659
        %v3676 = vmul.f32 %v3660, %v3660
        %v3677 = vsel %vm1736, %v3661, 0.0
        %3678 = vadd.xlane.f32.xlu0 %v3677
        %v3679 = vpop.xlane.xlu0 %3678
        %v3680 = vsel %vm1736, %v3662, 0.0
        %3681 = vadd.xlane.f32.xlu0 %v3680
        %v3682 = vpop.xlane.xlu0 %3681
        %v3683 = vsel %vm1736, %v3663, 0.0
        %3684 = vadd.xlane.f32.xlu0 %v3683
        %v3685 = vpop.xlane.xlu0 %3684
        %v3686 = vsel %vm1736, %v3664, 0.0
        %3687 = vadd.xlane.f32.xlu0 %v3686
        %v3688 = vpop.xlane.xlu0 %3687
        %v3689 = vsel %vm1736, %v3665, 0.0
        %3690 = vadd.xlane.f32.xlu0 %v3689
        %v3691 = vpop.xlane.xlu0 %3690
        %v3692 = vsel %vm1736, %v3666, 0.0
        %3693 = vadd.xlane.f32.xlu0 %v3692
        %v3694 = vpop.xlane.xlu0 %3693
        %v3695 = vsel %vm1736, %v3667, 0.0
        %3696 = vadd.xlane.f32.xlu0 %v3695
        %v3697 = vpop.xlane.xlu0 %3696
        %v3698 = vsel %vm1736, %v3668, 0.0
        %3699 = vadd.xlane.f32.xlu0 %v3698
        %v3700 = vpop.xlane.xlu0 %3699
        %v3701 = vsel %vm1736, %v3669, 0.0
        %3702 = vadd.xlane.f32.xlu0 %v3701
        %v3703 = vpop.xlane.xlu0 %3702
        %v3704 = vsel %vm1736, %v3670, 0.0
        %3705 = vadd.xlane.f32.xlu0 %v3704
        %v3706 = vpop.xlane.xlu0 %3705
        %v3707 = vsel %vm1736, %v3671, 0.0
        %3708 = vadd.xlane.f32.xlu0 %v3707
        %v3709 = vpop.xlane.xlu0 %3708
        %v3710 = vsel %vm1736, %v3672, 0.0
        %3711 = vadd.xlane.f32.xlu0 %v3710
        %v3712 = vpop.xlane.xlu0 %3711
        %v3713 = vsel %vm1736, %v3673, 0.0
        %3714 = vadd.xlane.f32.xlu0 %v3713
        %v3715 = vpop.xlane.xlu0 %3714
        %v3716 = vsel %vm1736, %v3674, 0.0
        %3717 = vadd.xlane.f32.xlu0 %v3716
        %v3718 = vpop.xlane.xlu0 %3717
        %v3719 = vsel %vm1736, %v3675, 0.0
        %3720 = vadd.xlane.f32.xlu0 %v3719
        %v3721 = vpop.xlane.xlu0 %3720
        %v3722 = vsel %vm1736, %v3676, 0.0
        %3723 = vadd.xlane.f32.xlu0 %v3722
        %v3724 = vpop.xlane.xlu0 %3723
        %v3725 = vmul.f32 %v3679, %v1785
        %v3726 = vmul.f32 %v3682, %v1785
        %v3727 = vmul.f32 %v3685, %v1785
        %v3728 = vmul.f32 %v3688, %v1785
        %v3729 = vmul.f32 %v3691, %v1785
        %v3730 = vmul.f32 %v3694, %v1785
        %v3731 = vmul.f32 %v3697, %v1785
        %v3732 = vmul.f32 %v3700, %v1785
        %v3733 = vmul.f32 %v3703, %v1785
        %v3734 = vmul.f32 %v3706, %v1785
        %v3735 = vmul.f32 %v3709, %v1785
        %v3736 = vmul.f32 %v3712, %v1785
        %v3737 = vmul.f32 %v3715, %v1785
        %v3738 = vmul.f32 %v3718, %v1785
        %v3739 = vmul.f32 %v3721, %v1785
        %v3740 = vmul.f32 %v3724, %v1785
        %v3741 = vadd.f32 %v3725, 1e-06
        %v3742 = vadd.f32 %v3726, 1e-06
        %v3743 = vadd.f32 %v3727, 1e-06
        %v3744 = vadd.f32 %v3728, 1e-06
        %v3745 = vadd.f32 %v3729, 1e-06
        %v3746 = vadd.f32 %v3730, 1e-06
        %v3747 = vadd.f32 %v3731, 1e-06
        %v3748 = vadd.f32 %v3732, 1e-06
        %v3749 = vadd.f32 %v3733, 1e-06
        %v3750 = vadd.f32 %v3734, 1e-06
        %v3751 = vadd.f32 %v3735, 1e-06
        %v3752 = vadd.f32 %v3736, 1e-06
        %v3753 = vadd.f32 %v3737, 1e-06
        %v3754 = vadd.f32 %v3738, 1e-06
        %v3755 = vadd.f32 %v3739, 1e-06
        %v3756 = vadd.f32 %v3740, 1e-06
        %v3757 = vrsqrt.pop %v3741
        %v3758 = vrsqrt.pop %v3742
        %v3759 = vrsqrt.pop %v3743
        %v3760 = vrsqrt.pop %v3744
        %v3761 = vrsqrt.pop %v3745
        %v3762 = vrsqrt.pop %v3746
        %v3763 = vrsqrt.pop %v3747
        %v3764 = vrsqrt.pop %v3748
        %v3765 = vrsqrt.pop %v3749
        %v3766 = vrsqrt.pop %v3750
        %v3767 = vrsqrt.pop %v3751
        %v3768 = vrsqrt.pop %v3752
        %v3769 = vrsqrt.pop %v3753
        %v3770 = vrsqrt.pop %v3754
        %v3771 = vrsqrt.pop %v3755
        %v3772 = vrsqrt.pop %v3756
        %v3773 = vmul.f32 %v3645, %v3757
        %v3774 = vmul.f32 %v3646, %v3758
        %v3775 = vmul.f32 %v3647, %v3759
        %v3776 = vmul.f32 %v3648, %v3760
        %v3777 = vmul.f32 %v3649, %v3761
        %v3778 = vmul.f32 %v3650, %v3762
        %v3779 = vmul.f32 %v3651, %v3763
        %v3780 = vmul.f32 %v3652, %v3764
        %v3781 = vmul.f32 %v3653, %v3765
        %v3782 = vmul.f32 %v3654, %v3766
        %v3783 = vmul.f32 %v3655, %v3767
        %v3784 = vmul.f32 %v3656, %v3768
        %v3785 = vmul.f32 %v3657, %v3769
        %v3786 = vmul.f32 %v3658, %v3770
        %v3787 = vmul.f32 %v3659, %v3771
        %v3788 = vmul.f32 %v3660, %v3772
        %v3790 = vlaneseq
        %v3791 = vshrl.u32 %v3790, 7
        %v3792 = vsub.s32 0, %v3791
        %v3793 = vrot.slane %v3579, %v3792
        %v3795 = vmul.f32 %v3773, %v3793
        %v3796 = vmul.f32 %v3774, %v3793
        %v3797 = vmul.f32 %v3775, %v3793
        %v3798 = vmul.f32 %v3776, %v3793
        %v3799 = vmul.f32 %v3777, %v3793
        %v3800 = vmul.f32 %v3778, %v3793
        %v3801 = vmul.f32 %v3779, %v3793
        %v3802 = vmul.f32 %v3780, %v3793
        %v3803 = vmul.f32 %v3781, %v3793
        %v3804 = vmul.f32 %v3782, %v3793
        %v3805 = vmul.f32 %v3783, %v3793
        %v3806 = vmul.f32 %v3784, %v3793
        %v3807 = vmul.f32 %v3785, %v3793
        %v3808 = vmul.f32 %v3786, %v3793
        %v3809 = vmul.f32 %v3787, %v3793
        %v3810 = vmul.f32 %v3788, %v3793
        %v3812 = vlaneseq
        %v3813 = vshrl.u32 %v3812, 7
        %v3814 = vsub.s32 0, %v3813
        %v3815 = vrot.slane %v3580, %v3814
        %v3817 = vadd.f32 %v3795, %v3815
        %v3818 = vadd.f32 %v3796, %v3815
        %v3819 = vadd.f32 %v3797, %v3815
        %v3820 = vadd.f32 %v3798, %v3815
        %v3821 = vadd.f32 %v3799, %v3815
        %v3822 = vadd.f32 %v3800, %v3815
        %v3823 = vadd.f32 %v3801, %v3815
        %v3824 = vadd.f32 %v3802, %v3815
        %v3825 = vadd.f32 %v3803, %v3815
        %v3826 = vadd.f32 %v3804, %v3815
        %v3827 = vadd.f32 %v3805, %v3815
        %v3828 = vadd.f32 %v3806, %v3815
        %v3829 = vadd.f32 %v3807, %v3815
        %v3830 = vadd.f32 %v3808, %v3815
        %v3831 = vadd.f32 %v3809, %v3815
        %v3832 = vadd.f32 %v3810, %v3815
        %v3833 = vpack.c.bf16 %v3818, %v3817
        %v3834 = vpack.c.bf16 %v3820, %v3819
        %v3835 = vpack.c.bf16 %v3822, %v3821
        %v3836 = vpack.c.bf16 %v3824, %v3823
        %v3837 = vpack.c.bf16 %v3826, %v3825
        %v3838 = vpack.c.bf16 %v3828, %v3827
        %v3839 = vpack.c.bf16 %v3830, %v3829
        %v3840 = vpack.c.bf16 %v3832, %v3831
        %v3841 = vld [vmem:[%s12] sm:$0xf]
        %v3842 = vld [vmem:[%s12 + $0x4] sm:$0xf]
        %v3843 = vld [vmem:[%s12 + $0x8] sm:$0xf]
        %v3844 = vld [vmem:[%s12 + $0xc] sm:$0xf]
        %v3845 = vld [vmem:[%s12 + $0x10] sm:$0xf]
        %v3846 = vld [vmem:[%s12 + $0x14] sm:$0xf]
        %v3847 = vld [vmem:[%s12 + $0x18] sm:$0xf]
        %v3848 = vld [vmem:[%s12 + $0x1c] sm:$0xf]
        %v3849 = vld [vmem:[%s13] sm:$0x1]
        %v3851 = vlaneseq
        %v3852 = vshrl.u32 %v3851, 7
        %v3853 = vsub.s32 0, %v3852
        %v3854 = vrot.slane %v3849, %v3853
        %v3864 = vunpack.c.l.b16 %v3841
        %v3865 = vunpack.c.l.b16 %v3842
        %v3866 = vunpack.c.l.b16 %v3843
        %v3867 = vunpack.c.l.b16 %v3844
        %v3868 = vunpack.c.l.b16 %v3845
        %v3869 = vunpack.c.l.b16 %v3846
        %v3870 = vunpack.c.l.b16 %v3847
        %v3871 = vunpack.c.l.b16 %v3848
        %v3872 = vpack.c.b16 %v3865, %v3864
        %v3873 = vpack.c.b16 %v3867, %v3866
        %v3874 = vpack.c.b16 %v3869, %v3868
        %v3875 = vpack.c.b16 %v3871, %v3870
        %v3881 = vsel %vm1736, %v3833, 0
        %v3884 = vsel %vm1736, %v3834, 0
        %v3887 = vsel %vm1736, %v3835, 0
        %v3890 = vsel %vm1736, %v3836, 0
        %v3893 = vsel %vm1736, %v3837, 0
        %v3896 = vsel %vm1736, %v3838, 0
        %v3899 = vsel %vm1736, %v3839, 0
        %v3902 = vsel %vm1736, %v3840, 0
        %3904 = vmatprep.subr.bf16.mxu0 0
        %3905 = vmatpush1.bf16.msra.mxu0 %v3872
        %3906 = vmatprep.subr.bf16.mxu0 0
        %3907 = vmatpush1.bf16.msra.mxu0 %v3873
        %3908 = vmatprep.subr.bf16.mxu0 0
        %3909 = vmatpush1.bf16.msra.mxu0 %v3874
        %3910 = vmatprep.subr.bf16.mxu0 0
        %3911 = vmatpush1.bf16.msra.mxu0 %v3875
        %3912 = vmatprep.subr.bf16.mxu0 0
        %3913 = vmatpush1.bf16.msra.mxu0 0
        %3914 = vmatprep.subr.bf16.mxu0 0
        %3915 = vmatpush1.bf16.msra.mxu0 0
        %3916 = vmatprep.subr.bf16.mxu0 0
        %3917 = vmatpush1.bf16.msra.mxu0 0
        %3918 = vmatprep.subr.bf16.mxu0 0
        %3919 = vmatpush1.bf16.msra.mxu0 0
        %3920 = vmatprep.subr.bf16.mxu0 0
        %3921 = vmatpush1.bf16.msra.mxu0 0
        %3922 = vmatprep.subr.bf16.mxu0 0
        %3923 = vmatpush1.bf16.msra.mxu0 0
        %3924 = vmatprep.subr.bf16.mxu0 0
        %3925 = vmatpush1.bf16.msra.mxu0 0
        %3926 = vmatprep.subr.bf16.mxu0 0
        %3927 = vmatpush1.bf16.msra.mxu0 0
        %3928 = vmatprep.subr.bf16.mxu0 0
        %3929 = vmatpush1.bf16.msra.mxu0 0
        %3930 = vmatprep.subr.bf16.mxu0 0
        %3931 = vmatpush1.bf16.msra.mxu0 0
        %3932 = vmatprep.subr.bf16.mxu0 0
        %3933 = vmatpush1.bf16.msra.mxu0 0
        %3934 = vmatprep.subr.bf16.mxu0 0
        %3935 = vmatpush1.bf16.msra.mxu0 0
        %3936 = vmatprep.mubr.bf16.mxu0 0
        %3937 = vmatmul.mubr.bf16.gmra.mrb[0].mxu0 %v3881
        %v3938 = vpop.f32.mrb[0].mxu0
        %v3939 = vadd.f32 %v3854, %v3938
        %v3940 = vpop.f32.mrb[0].mxu0
        %v3941 = vpop.f32.mrb[0].mxu0
        %v3942 = vadd.f32 %v3854, %v3941
        %v3943 = vpop.f32.mrb[0].mxu0
        %3944 = vmatprep.mubr.bf16.mxu0 0
        %3945 = vmatmul.mubr.bf16.gmra.mrb[0].mxu0 %v3884
        %v3946 = vpop.f32.mrb[0].mxu0
        %v3947 = vadd.f32 %v3854, %v3946
        %v3948 = vpop.f32.mrb[0].mxu0
        %v3949 = vpop.f32.mrb[0].mxu0
        %v3950 = vadd.f32 %v3854, %v3949
        %v3951 = vpop.f32.mrb[0].mxu0
        %3952 = vmatprep.mubr.bf16.mxu0 0
        %3953 = vmatmul.mubr.bf16.gmra.mrb[0].mxu0 %v3887
        %v3954 = vpop.f32.mrb[0].mxu0
        %v3955 = vadd.f32 %v3854, %v3954
        %v3956 = vpop.f32.mrb[0].mxu0
        %v3957 = vpop.f32.mrb[0].mxu0
        %v3958 = vadd.f32 %v3854, %v3957
        %v3959 = vpop.f32.mrb[0].mxu0
        %3960 = vmatprep.mubr.bf16.mxu0 0
        %3961 = vmatmul.mubr.bf16.gmra.mrb[0].mxu0 %v3890
        %v3962 = vpop.f32.mrb[0].mxu0
        %v3963 = vadd.f32 %v3854, %v3962
        %v3964 = vpop.f32.mrb[0].mxu0
        %v3965 = vpop.f32.mrb[0].mxu0
        %v3966 = vadd.f32 %v3854, %v3965
        %v3967 = vpop.f32.mrb[0].mxu0
        %3968 = vmatprep.mubr.bf16.mxu0 0
        %3969 = vmatmul.mubr.bf16.gmra.mrb[0].mxu0 %v3893
        %v3970 = vpop.f32.mrb[0].mxu0
        %v3971 = vadd.f32 %v3854, %v3970
        %v3972 = vpop.f32.mrb[0].mxu0
        %v3973 = vpop.f32.mrb[0].mxu0
        %v3974 = vadd.f32 %v3854, %v3973
        %v3975 = vpop.f32.mrb[0].mxu0
        %3976 = vmatprep.mubr.bf16.mxu0 0
        %3977 = vmatmul.mubr.bf16.gmra.mrb[0].mxu0 %v3896
        %v3978 = vpop.f32.mrb[0].mxu0
        %v3979 = vadd.f32 %v3854, %v3978
        %v3980 = vpop.f32.mrb[0].mxu0
        %v3981 = vpop.f32.mrb[0].mxu0
        %v3982 = vadd.f32 %v3854, %v3981
        %v3983 = vpop.f32.mrb[0].mxu0
        %3984 = vmatprep.mubr.bf16.mxu0 0
        %3985 = vmatmul.mubr.bf16.gmra.mrb[0].mxu0 %v3899
        %v3986 = vpop.f32.mrb[0].mxu0
        %v3987 = vadd.f32 %v3854, %v3986
        %v3988 = vpop.f32.mrb[0].mxu0
        %v3989 = vpop.f32.mrb[0].mxu0
        %v3990 = vadd.f32 %v3854, %v3989
        %v3991 = vpop.f32.mrb[0].mxu0
        %3992 = vmatprep.mubr.bf16.mxu0 0
        %3993 = vmatmul.mubr.bf16.gmra.mrb[0].mxu0 %v3902
        %v3994 = vpop.f32.mrb[0].mxu0
        %v3995 = vadd.f32 %v3854, %v3994
        %v3996 = vpop.f32.mrb[0].mxu0
        %v3997 = vpop.f32.mrb[0].mxu0
        %v3998 = vadd.f32 %v3854, %v3997
        %v3999 = vpop.f32.mrb[0].mxu0
        %4000 = vdwg.mxu0
        %v4001 = vmul.f32 %v3939, 0.5
        %v4002 = vmul.f32 %v3942, 0.5
        %v4003 = vmul.f32 %v3947, 0.5
        %v4004 = vmul.f32 %v3950, 0.5
        %v4005 = vmul.f32 %v3955, 0.5
        %v4006 = vmul.f32 %v3958, 0.5
        %v4007 = vmul.f32 %v3963, 0.5
        %v4008 = vmul.f32 %v3966, 0.5
        %v4009 = vmul.f32 %v3971, 0.5
        %v4010 = vmul.f32 %v3974, 0.5
        %v4011 = vmul.f32 %v3979, 0.5
        %v4012 = vmul.f32 %v3982, 0.5
        %v4013 = vmul.f32 %v3987, 0.5
        %v4014 = vmul.f32 %v3990, 0.5
        %v4015 = vmul.f32 %v3995, 0.5
        %v4016 = vmul.f32 %v3998, 0.5
        %v4017 = vmul.f32 %v3939, 0.70710677
        %v4018 = vmul.f32 %v3942, 0.70710677
        %v4019 = vmul.f32 %v3947, 0.70710677
        %v4020 = vmul.f32 %v3950, 0.70710677
        %v4021 = vmul.f32 %v3955, 0.70710677
        %v4022 = vmul.f32 %v3958, 0.70710677
        %v4023 = vmul.f32 %v3963, 0.70710677
        %v4024 = vmul.f32 %v3966, 0.70710677
        %v4025 = vmul.f32 %v3971, 0.70710677
        %v4026 = vmul.f32 %v3974, 0.70710677
        %v4027 = vmul.f32 %v3979, 0.70710677
        %v4028 = vmul.f32 %v3982, 0.70710677
        %v4029 = vmul.f32 %v3987, 0.70710677
        %v4030 = vmul.f32 %v3990, 0.70710677
        %v4031 = vmul.f32 %v3995, 0.70710677
        %v4032 = vmul.f32 %v3998, 0.70710677
        %v4033 = verf.f32.pop %v4017
        %v4034 = verf.f32.pop %v4018
        %v4035 = verf.f32.pop %v4019
        %v4036 = verf.f32.pop %v4020
        %v4037 = verf.f32.pop %v4021
        %v4038 = verf.f32.pop %v4022
        %v4039 = verf.f32.pop %v4023
        %v4040 = verf.f32.pop %v4024
        %v4041 = verf.f32.pop %v4025
        %v4042 = verf.f32.pop %v4026
        %v4043 = verf.f32.pop %v4027
        %v4044 = verf.f32.pop %v4028
        %v4045 = verf.f32.pop %v4029
        %v4046 = verf.f32.pop %v4030
        %v4047 = verf.f32.pop %v4031
        %v4048 = verf.f32.pop %v4032
        %v4049 = vadd.f32 %v4033, 1.0
        %v4050 = vadd.f32 %v4034, 1.0
        %v4051 = vadd.f32 %v4035, 1.0
        %v4052 = vadd.f32 %v4036, 1.0
        %v4053 = vadd.f32 %v4037, 1.0
        %v4054 = vadd.f32 %v4038, 1.0
        %v4055 = vadd.f32 %v4039, 1.0
        %v4056 = vadd.f32 %v4040, 1.0
        %v4057 = vadd.f32 %v4041, 1.0
        %v4058 = vadd.f32 %v4042, 1.0
        %v4059 = vadd.f32 %v4043, 1.0
        %v4060 = vadd.f32 %v4044, 1.0
        %v4061 = vadd.f32 %v4045, 1.0
        %v4062 = vadd.f32 %v4046, 1.0
        %v4063 = vadd.f32 %v4047, 1.0
        %v4064 = vadd.f32 %v4048, 1.0
        %v4065 = vmul.f32 %v4001, %v4049
        %v4066 = vmul.f32 %v4002, %v4050
        %v4067 = vmul.f32 %v4003, %v4051
        %v4068 = vmul.f32 %v4004, %v4052
        %v4069 = vmul.f32 %v4005, %v4053
        %v4070 = vmul.f32 %v4006, %v4054
        %v4071 = vmul.f32 %v4007, %v4055
        %v4072 = vmul.f32 %v4008, %v4056
        %v4073 = vmul.f32 %v4009, %v4057
        %v4074 = vmul.f32 %v4010, %v4058
        %v4075 = vmul.f32 %v4011, %v4059
        %v4076 = vmul.f32 %v4012, %v4060
        %v4077 = vmul.f32 %v4013, %v4061
        %v4078 = vmul.f32 %v4014, %v4062
        %v4079 = vmul.f32 %v4015, %v4063
        %v4080 = vmul.f32 %v4016, %v4064
        %v4081 = vld [vmem:[%s14] sm:$0xff]
        %v4082 = vld [vmem:[%s14 + $0x8] sm:$0x1]
        %v4083 = vld [vmem:[%s15] sm:$0x1]
        %v4084 = vrot.slane %v4065, 7
        %v4085 = vrot.slane %v4066, 7
        %v4086 = vrot.slane %v4067, 7
        %v4087 = vrot.slane %v4068, 7
        %v4088 = vrot.slane %v4069, 7
        %v4089 = vrot.slane %v4070, 7
        %v4090 = vrot.slane %v4071, 7
        %v4091 = vrot.slane %v4072, 7
        %v4092 = vrot.slane %v4073, 7
        %v4093 = vrot.slane %v4074, 7
        %v4094 = vrot.slane %v4075, 7
        %v4095 = vrot.slane %v4076, 7
        %v4096 = vrot.slane %v4077, 7
        %v4097 = vrot.slane %v4078, 7
        %v4098 = vrot.slane %v4079, 7
        %v4099 = vrot.slane %v4080, 7
        %v4100 = vsel %vm666, %v4098, %v4099
        %v4101 = vsel %vm666, %v4097, %v4098
        %v4102 = vsel %vm666, %v4096, %v4097
        %v4103 = vsel %vm666, %v4095, %v4096
        %v4104 = vsel %vm666, %v4094, %v4095
        %v4105 = vsel %vm666, %v4093, %v4094
        %v4106 = vsel %vm666, %v4092, %v4093
        %v4107 = vsel %vm666, %v4091, %v4092
        %v4108 = vsel %vm666, %v4090, %v4091
        %v4109 = vsel %vm666, %v4089, %v4090
        %v4110 = vsel %vm666, %v4088, %v4089
        %v4111 = vsel %vm666, %v4087, %v4088
        %v4112 = vsel %vm666, %v4086, %v4087
        %v4113 = vsel %vm666, %v4085, %v4086
        %v4114 = vsel %vm666, %v4084, %v4085
        %v4115 = vsel %vm666, %v4099, %v4084
        %v4116 = vmul.f32 %v4100, %v686
        %v4117 = vmul.f32 %v4115, %v691
        %v4118 = vmul.f32 %v4114, %v696
        %v4119 = vmul.f32 %v4113, %v701
        %v4120 = vmul.f32 %v4112, %v706
        %v4121 = vmul.f32 %v4111, %v711
        %v4122 = vmul.f32 %v4110, %v716
        %v4123 = vmul.f32 %v4109, %v721
        %v4124 = vmul.f32 %v4108, %v726
        %v4125 = vmul.f32 %v4107, %v731
        %v4126 = vmul.f32 %v4106, %v736
        %v4127 = vmul.f32 %v4105, %v741
        %v4128 = vmul.f32 %v4104, %v746
        %v4129 = vmul.f32 %v4103, %v751
        %v4130 = vmul.f32 %v4102, %v756
        %v4131 = vmul.f32 %v4101, %v761
        %v4132 = vlaneseq
        %v4133 = vshrl.u32 %v4132, 7
        %v4134 = vsub.s32 0, %v4133
        %v4135 = vrot.slane %v4081, %v4134
        %v4136 = vmul.f32 %v4116, %v4135
        %v4137 = vmul.f32 %v4117, %v4135
        %v4138 = vmul.f32 %v4118, %v4135
        %v4139 = vmul.f32 %v4119, %v4135
        %v4140 = vmul.f32 %v4120, %v4135
        %v4141 = vmul.f32 %v4121, %v4135
        %v4142 = vmul.f32 %v4122, %v4135
        %v4143 = vmul.f32 %v4123, %v4135
        %v4144 = vmul.f32 %v4124, %v4135
        %v4145 = vmul.f32 %v4125, %v4135
        %v4146 = vmul.f32 %v4126, %v4135
        %v4147 = vmul.f32 %v4127, %v4135
        %v4148 = vmul.f32 %v4128, %v4135
        %v4149 = vmul.f32 %v4129, %v4135
        %v4150 = vmul.f32 %v4130, %v4135
        %v4151 = vmul.f32 %v4131, %v4135
        %v4152 = vadd.f32 %v4136, 0.0
        %v4153 = vadd.f32 %v4137, 0.0
        %v4154 = vadd.f32 %v4138, 0.0
        %v4155 = vadd.f32 %v4139, 0.0
        %v4156 = vadd.f32 %v4140, 0.0
        %v4157 = vadd.f32 %v4141, 0.0
        %v4158 = vadd.f32 %v4142, 0.0
        %v4159 = vadd.f32 %v4143, 0.0
        %v4160 = vadd.f32 %v4144, 0.0
        %v4161 = vadd.f32 %v4145, 0.0
        %v4162 = vadd.f32 %v4146, 0.0
        %v4163 = vadd.f32 %v4147, 0.0
        %v4164 = vadd.f32 %v4148, 0.0
        %v4165 = vadd.f32 %v4149, 0.0
        %v4166 = vadd.f32 %v4150, 0.0
        %v4167 = vadd.f32 %v4151, 0.0
        %v4168 = vmul.f32 %v4080, %v817
        %v4169 = vmul.f32 %v4065, %v821
        %v4170 = vmul.f32 %v4066, %v825
        %v4171 = vmul.f32 %v4067, %v829
        %v4172 = vmul.f32 %v4068, %v833
        %v4173 = vmul.f32 %v4069, %v837
        %v4174 = vmul.f32 %v4070, %v841
        %v4175 = vmul.f32 %v4071, %v845
        %v4176 = vmul.f32 %v4072, %v849
        %v4177 = vmul.f32 %v4073, %v853
        %v4178 = vmul.f32 %v4074, %v857
        %v4179 = vmul.f32 %v4075, %v861
        %v4180 = vmul.f32 %v4076, %v865
        %v4181 = vmul.f32 %v4077, %v869
        %v4182 = vmul.f32 %v4078, %v873
        %v4183 = vmul.f32 %v4079, %v877
        %v4184 = vlaneseq
        %v4185 = vshrl.u32 %v4184, 7
        %v4186 = vsub.s32 1, %v4185
        %v4187 = vrot.slane %v4081, %v4186
        %v4188 = vmul.f32 %v4168, %v4187
        %v4189 = vmul.f32 %v4169, %v4187
        %v4190 = vmul.f32 %v4170, %v4187
        %v4191 = vmul.f32 %v4171, %v4187
        %v4192 = vmul.f32 %v4172, %v4187
        %v4193 = vmul.f32 %v4173, %v4187
        %v4194 = vmul.f32 %v4174, %v4187
        %v4195 = vmul.f32 %v4175, %v4187
        %v4196 = vmul.f32 %v4176, %v4187
        %v4197 = vmul.f32 %v4177, %v4187
        %v4198 = vmul.f32 %v4178, %v4187
        %v4199 = vmul.f32 %v4179, %v4187
        %v4200 = vmul.f32 %v4180, %v4187
        %v4201 = vmul.f32 %v4181, %v4187
        %v4202 = vmul.f32 %v4182, %v4187
        %v4203 = vmul.f32 %v4183, %v4187
        %v4204 = vadd.f32 %v4152, %v4188
        %v4205 = vadd.f32 %v4153, %v4189
        %v4206 = vadd.f32 %v4154, %v4190
        %v4207 = vadd.f32 %v4155, %v4191
        %v4208 = vadd.f32 %v4156, %v4192
        %v4209 = vadd.f32 %v4157, %v4193
        %v4210 = vadd.f32 %v4158, %v4194
        %v4211 = vadd.f32 %v4159, %v4195
        %v4212 = vadd.f32 %v4160, %v4196
        %v4213 = vadd.f32 %v4161, %v4197
        %v4214 = vadd.f32 %v4162, %v4198
        %v4215 = vadd.f32 %v4163, %v4199
        %v4216 = vadd.f32 %v4164, %v4200
        %v4217 = vadd.f32 %v4165, %v4201
        %v4218 = vadd.f32 %v4166, %v4202
        %v4219 = vadd.f32 %v4167, %v4203
        %v4220 = vrot.slane %v4065, 1
        %v4221 = vrot.slane %v4066, 1
        %v4222 = vrot.slane %v4067, 1
        %v4223 = vrot.slane %v4068, 1
        %v4224 = vrot.slane %v4069, 1
        %v4225 = vrot.slane %v4070, 1
        %v4226 = vrot.slane %v4071, 1
        %v4227 = vrot.slane %v4072, 1
        %v4228 = vrot.slane %v4073, 1
        %v4229 = vrot.slane %v4074, 1
        %v4230 = vrot.slane %v4075, 1
        %v4231 = vrot.slane %v4076, 1
        %v4232 = vrot.slane %v4077, 1
        %v4233 = vrot.slane %v4078, 1
        %v4234 = vrot.slane %v4079, 1
        %v4235 = vrot.slane %v4080, 1
        %v4236 = vsel %vm947, %v4234, %v4235
        %v4237 = vsel %vm947, %v4233, %v4234
        %v4238 = vsel %vm947, %v4232, %v4233
        %v4239 = vsel %vm947, %v4231, %v4232
        %v4240 = vsel %vm947, %v4230, %v4231
        %v4241 = vsel %vm947, %v4229, %v4230
        %v4242 = vsel %vm947, %v4228, %v4229
        %v4243 = vsel %vm947, %v4227, %v4228
        %v4244 = vsel %vm947, %v4226, %v4227
        %v4245 = vsel %vm947, %v4225, %v4226
        %v4246 = vsel %vm947, %v4224, %v4225
        %v4247 = vsel %vm947, %v4223, %v4224
        %v4248 = vsel %vm947, %v4222, %v4223
        %v4249 = vsel %vm947, %v4221, %v4222
        %v4250 = vsel %vm947, %v4220, %v4221
        %v4251 = vsel %vm947, %v4235, %v4220
        %v4252 = vmul.f32 %v4251, %v966
        %v4253 = vmul.f32 %v4250, %v970
        %v4254 = vmul.f32 %v4249, %v974
        %v4255 = vmul.f32 %v4248, %v978
        %v4256 = vmul.f32 %v4247, %v982
        %v4257 = vmul.f32 %v4246, %v986
        %v4258 = vmul.f32 %v4245, %v990
        %v4259 = vmul.f32 %v4244, %v994
        %v4260 = vmul.f32 %v4243, %v998
        %v4261 = vmul.f32 %v4242, %v1002
        %v4262 = vmul.f32 %v4241, %v1006
        %v4263 = vmul.f32 %v4240, %v1010
        %v4264 = vmul.f32 %v4239, %v1014
        %v4265 = vmul.f32 %v4238, %v1018
        %v4266 = vmul.f32 %v4237, %v1022
        %v4267 = vmul.f32 %v4236, %v1026
        %v4268 = vlaneseq
        %v4269 = vshrl.u32 %v4268, 7
        %v4270 = vsub.s32 2, %v4269
        %v4271 = vrot.slane %v4081, %v4270
        %v4272 = vmul.f32 %v4252, %v4271
        %v4273 = vmul.f32 %v4253, %v4271
        %v4274 = vmul.f32 %v4254, %v4271
        %v4275 = vmul.f32 %v4255, %v4271
        %v4276 = vmul.f32 %v4256, %v4271
        %v4277 = vmul.f32 %v4257, %v4271
        %v4278 = vmul.f32 %v4258, %v4271
        %v4279 = vmul.f32 %v4259, %v4271
        %v4280 = vmul.f32 %v4260, %v4271
        %v4281 = vmul.f32 %v4261, %v4271
        %v4282 = vmul.f32 %v4262, %v4271
        %v4283 = vmul.f32 %v4263, %v4271
        %v4284 = vmul.f32 %v4264, %v4271
        %v4285 = vmul.f32 %v4265, %v4271
        %v4286 = vmul.f32 %v4266, %v4271
        %v4287 = vmul.f32 %v4267, %v4271
        %v4288 = vadd.f32 %v4204, %v4272
        %v4289 = vadd.f32 %v4205, %v4273
        %v4290 = vadd.f32 %v4206, %v4274
        %v4291 = vadd.f32 %v4207, %v4275
        %v4292 = vadd.f32 %v4208, %v4276
        %v4293 = vadd.f32 %v4209, %v4277
        %v4294 = vadd.f32 %v4210, %v4278
        %v4295 = vadd.f32 %v4211, %v4279
        %v4296 = vadd.f32 %v4212, %v4280
        %v4297 = vadd.f32 %v4213, %v4281
        %v4298 = vadd.f32 %v4214, %v4282
        %v4299 = vadd.f32 %v4215, %v4283
        %v4300 = vadd.f32 %v4216, %v4284
        %v4301 = vadd.f32 %v4217, %v4285
        %v4302 = vadd.f32 %v4218, %v4286
        %v4303 = vadd.f32 %v4219, %v4287
        %v4304 = vmul.f32 %v4115, %v1082
        %v4305 = vmul.f32 %v4114, %v1086
        %v4306 = vmul.f32 %v4113, %v1090
        %v4307 = vmul.f32 %v4112, %v1094
        %v4308 = vmul.f32 %v4111, %v1098
        %v4309 = vmul.f32 %v4110, %v1102
        %v4310 = vmul.f32 %v4109, %v1106
        %v4311 = vmul.f32 %v4108, %v1110
        %v4312 = vmul.f32 %v4107, %v1114
        %v4313 = vmul.f32 %v4106, %v1118
        %v4314 = vmul.f32 %v4105, %v1122
        %v4315 = vmul.f32 %v4104, %v1126
        %v4316 = vmul.f32 %v4103, %v1130
        %v4317 = vmul.f32 %v4102, %v1134
        %v4318 = vmul.f32 %v4101, %v1138
        %v4319 = vmul.f32 %v4100, %v1142
        %v4320 = vlaneseq
        %v4321 = vshrl.u32 %v4320, 7
        %v4322 = vsub.s32 3, %v4321
        %v4323 = vrot.slane %v4081, %v4322
        %v4324 = vmul.f32 %v4304, %v4323
        %v4325 = vmul.f32 %v4305, %v4323
        %v4326 = vmul.f32 %v4306, %v4323
        %v4327 = vmul.f32 %v4307, %v4323
        %v4328 = vmul.f32 %v4308, %v4323
        %v4329 = vmul.f32 %v4309, %v4323
        %v4330 = vmul.f32 %v4310, %v4323
        %v4331 = vmul.f32 %v4311, %v4323
        %v4332 = vmul.f32 %v4312, %v4323
        %v4333 = vmul.f32 %v4313, %v4323
        %v4334 = vmul.f32 %v4314, %v4323
        %v4335 = vmul.f32 %v4315, %v4323
        %v4336 = vmul.f32 %v4316, %v4323
        %v4337 = vmul.f32 %v4317, %v4323
        %v4338 = vmul.f32 %v4318, %v4323
        %v4339 = vmul.f32 %v4319, %v4323
        %v4340 = vadd.f32 %v4288, %v4324
        %v4341 = vadd.f32 %v4289, %v4325
        %v4342 = vadd.f32 %v4290, %v4326
        %v4343 = vadd.f32 %v4291, %v4327
        %v4344 = vadd.f32 %v4292, %v4328
        %v4345 = vadd.f32 %v4293, %v4329
        %v4346 = vadd.f32 %v4294, %v4330
        %v4347 = vadd.f32 %v4295, %v4331
        %v4348 = vadd.f32 %v4296, %v4332
        %v4349 = vadd.f32 %v4297, %v4333
        %v4350 = vadd.f32 %v4298, %v4334
        %v4351 = vadd.f32 %v4299, %v4335
        %v4352 = vadd.f32 %v4300, %v4336
        %v4353 = vadd.f32 %v4301, %v4337
        %v4354 = vadd.f32 %v4302, %v4338
        %v4355 = vadd.f32 %v4303, %v4339
        %v4356 = vlaneseq
        %v4357 = vshrl.u32 %v4356, 7
        %v4358 = vsub.s32 4, %v4357
        %v4359 = vrot.slane %v4081, %v4358
        %v4360 = vmul.f32 %v4065, %v4359
        %v4361 = vmul.f32 %v4066, %v4359
        %v4362 = vmul.f32 %v4067, %v4359
        %v4363 = vmul.f32 %v4068, %v4359
        %v4364 = vmul.f32 %v4069, %v4359
        %v4365 = vmul.f32 %v4070, %v4359
        %v4366 = vmul.f32 %v4071, %v4359
        %v4367 = vmul.f32 %v4072, %v4359
        %v4368 = vmul.f32 %v4073, %v4359
        %v4369 = vmul.f32 %v4074, %v4359
        %v4370 = vmul.f32 %v4075, %v4359
        %v4371 = vmul.f32 %v4076, %v4359
        %v4372 = vmul.f32 %v4077, %v4359
        %v4373 = vmul.f32 %v4078, %v4359
        %v4374 = vmul.f32 %v4079, %v4359
        %v4375 = vmul.f32 %v4080, %v4359
        %v4376 = vadd.f32 %v4340, %v4360
        %v4377 = vadd.f32 %v4341, %v4361
        %v4378 = vadd.f32 %v4342, %v4362
        %v4379 = vadd.f32 %v4343, %v4363
        %v4380 = vadd.f32 %v4344, %v4364
        %v4381 = vadd.f32 %v4345, %v4365
        %v4382 = vadd.f32 %v4346, %v4366
        %v4383 = vadd.f32 %v4347, %v4367
        %v4384 = vadd.f32 %v4348, %v4368
        %v4385 = vadd.f32 %v4349, %v4369
        %v4386 = vadd.f32 %v4350, %v4370
        %v4387 = vadd.f32 %v4351, %v4371
        %v4388 = vadd.f32 %v4352, %v4372
        %v4389 = vadd.f32 %v4353, %v4373
        %v4390 = vadd.f32 %v4354, %v4374
        %v4391 = vadd.f32 %v4355, %v4375
        %v4392 = vmul.f32 %v4250, %v1234
        %v4393 = vmul.f32 %v4249, %v1238
        %v4394 = vmul.f32 %v4248, %v1242
        %v4395 = vmul.f32 %v4247, %v1246
        %v4396 = vmul.f32 %v4246, %v1250
        %v4397 = vmul.f32 %v4245, %v1254
        %v4398 = vmul.f32 %v4244, %v1258
        %v4399 = vmul.f32 %v4243, %v1262
        %v4400 = vmul.f32 %v4242, %v1266
        %v4401 = vmul.f32 %v4241, %v1270
        %v4402 = vmul.f32 %v4240, %v1274
        %v4403 = vmul.f32 %v4239, %v1278
        %v4404 = vmul.f32 %v4238, %v1282
        %v4405 = vmul.f32 %v4237, %v1286
        %v4406 = vmul.f32 %v4236, %v1290
        %v4407 = vmul.f32 %v4251, %v1294
        %v4408 = vlaneseq
        %v4409 = vshrl.u32 %v4408, 7
        %v4410 = vsub.s32 5, %v4409
        %v4411 = vrot.slane %v4081, %v4410
        %v4412 = vmul.f32 %v4392, %v4411
        %v4413 = vmul.f32 %v4393, %v4411
        %v4414 = vmul.f32 %v4394, %v4411
        %v4415 = vmul.f32 %v4395, %v4411
        %v4416 = vmul.f32 %v4396, %v4411
        %v4417 = vmul.f32 %v4397, %v4411
        %v4418 = vmul.f32 %v4398, %v4411
        %v4419 = vmul.f32 %v4399, %v4411
        %v4420 = vmul.f32 %v4400, %v4411
        %v4421 = vmul.f32 %v4401, %v4411
        %v4422 = vmul.f32 %v4402, %v4411
        %v4423 = vmul.f32 %v4403, %v4411
        %v4424 = vmul.f32 %v4404, %v4411
        %v4425 = vmul.f32 %v4405, %v4411
        %v4426 = vmul.f32 %v4406, %v4411
        %v4427 = vmul.f32 %v4407, %v4411
        %v4428 = vadd.f32 %v4376, %v4412
        %v4429 = vadd.f32 %v4377, %v4413
        %v4430 = vadd.f32 %v4378, %v4414
        %v4431 = vadd.f32 %v4379, %v4415
        %v4432 = vadd.f32 %v4380, %v4416
        %v4433 = vadd.f32 %v4381, %v4417
        %v4434 = vadd.f32 %v4382, %v4418
        %v4435 = vadd.f32 %v4383, %v4419
        %v4436 = vadd.f32 %v4384, %v4420
        %v4437 = vadd.f32 %v4385, %v4421
        %v4438 = vadd.f32 %v4386, %v4422
        %v4439 = vadd.f32 %v4387, %v4423
        %v4440 = vadd.f32 %v4388, %v4424
        %v4441 = vadd.f32 %v4389, %v4425
        %v4442 = vadd.f32 %v4390, %v4426
        %v4443 = vadd.f32 %v4391, %v4427
        %v4444 = vmul.f32 %v4114, %v1350
        %v4445 = vmul.f32 %v4113, %v1354
        %v4446 = vmul.f32 %v4112, %v1358
        %v4447 = vmul.f32 %v4111, %v1362
        %v4448 = vmul.f32 %v4110, %v1366
        %v4449 = vmul.f32 %v4109, %v1370
        %v4450 = vmul.f32 %v4108, %v1374
        %v4451 = vmul.f32 %v4107, %v1378
        %v4452 = vmul.f32 %v4106, %v1382
        %v4453 = vmul.f32 %v4105, %v1386
        %v4454 = vmul.f32 %v4104, %v1390
        %v4455 = vmul.f32 %v4103, %v1394
        %v4456 = vmul.f32 %v4102, %v1398
        %v4457 = vmul.f32 %v4101, %v1402
        %v4458 = vmul.f32 %v4100, %v1406
        %v4459 = vmul.f32 %v4115, %v1410
        %v4460 = vlaneseq
        %v4461 = vshrl.u32 %v4460, 7
        %v4462 = vsub.s32 6, %v4461
        %v4463 = vrot.slane %v4081, %v4462
        %v4464 = vmul.f32 %v4444, %v4463
        %v4465 = vmul.f32 %v4445, %v4463
        %v4466 = vmul.f32 %v4446, %v4463
        %v4467 = vmul.f32 %v4447, %v4463
        %v4468 = vmul.f32 %v4448, %v4463
        %v4469 = vmul.f32 %v4449, %v4463
        %v4470 = vmul.f32 %v4450, %v4463
        %v4471 = vmul.f32 %v4451, %v4463
        %v4472 = vmul.f32 %v4452, %v4463
        %v4473 = vmul.f32 %v4453, %v4463
        %v4474 = vmul.f32 %v4454, %v4463
        %v4475 = vmul.f32 %v4455, %v4463
        %v4476 = vmul.f32 %v4456, %v4463
        %v4477 = vmul.f32 %v4457, %v4463
        %v4478 = vmul.f32 %v4458, %v4463
        %v4479 = vmul.f32 %v4459, %v4463
        %v4480 = vadd.f32 %v4428, %v4464
        %v4481 = vadd.f32 %v4429, %v4465
        %v4482 = vadd.f32 %v4430, %v4466
        %v4483 = vadd.f32 %v4431, %v4467
        %v4484 = vadd.f32 %v4432, %v4468
        %v4485 = vadd.f32 %v4433, %v4469
        %v4486 = vadd.f32 %v4434, %v4470
        %v4487 = vadd.f32 %v4435, %v4471
        %v4488 = vadd.f32 %v4436, %v4472
        %v4489 = vadd.f32 %v4437, %v4473
        %v4490 = vadd.f32 %v4438, %v4474
        %v4491 = vadd.f32 %v4439, %v4475
        %v4492 = vadd.f32 %v4440, %v4476
        %v4493 = vadd.f32 %v4441, %v4477
        %v4494 = vadd.f32 %v4442, %v4478
        %v4495 = vadd.f32 %v4443, %v4479
        %v4496 = vmul.f32 %v4066, %v1466
        %v4497 = vmul.f32 %v4067, %v1470
        %v4498 = vmul.f32 %v4068, %v1474
        %v4499 = vmul.f32 %v4069, %v1478
        %v4500 = vmul.f32 %v4070, %v1482
        %v4501 = vmul.f32 %v4071, %v1486
        %v4502 = vmul.f32 %v4072, %v1490
        %v4503 = vmul.f32 %v4073, %v1494
        %v4504 = vmul.f32 %v4074, %v1498
        %v4505 = vmul.f32 %v4075, %v1502
        %v4506 = vmul.f32 %v4076, %v1506
        %v4507 = vmul.f32 %v4077, %v1510
        %v4508 = vmul.f32 %v4078, %v1514
        %v4509 = vmul.f32 %v4079, %v1518
        %v4510 = vmul.f32 %v4080, %v1522
        %v4511 = vmul.f32 %v4065, %v1526
        %v4512 = vlaneseq
        %v4513 = vshrl.u32 %v4512, 7
        %v4514 = vsub.s32 7, %v4513
        %v4515 = vrot.slane %v4081, %v4514
        %v4516 = vmul.f32 %v4496, %v4515
        %v4517 = vmul.f32 %v4497, %v4515
        %v4518 = vmul.f32 %v4498, %v4515
        %v4519 = vmul.f32 %v4499, %v4515
        %v4520 = vmul.f32 %v4500, %v4515
        %v4521 = vmul.f32 %v4501, %v4515
        %v4522 = vmul.f32 %v4502, %v4515
        %v4523 = vmul.f32 %v4503, %v4515
        %v4524 = vmul.f32 %v4504, %v4515
        %v4525 = vmul.f32 %v4505, %v4515
        %v4526 = vmul.f32 %v4506, %v4515
        %v4527 = vmul.f32 %v4507, %v4515
        %v4528 = vmul.f32 %v4508, %v4515
        %v4529 = vmul.f32 %v4509, %v4515
        %v4530 = vmul.f32 %v4510, %v4515
        %v4531 = vmul.f32 %v4511, %v4515
        %v4532 = vadd.f32 %v4480, %v4516
        %v4533 = vadd.f32 %v4481, %v4517
        %v4534 = vadd.f32 %v4482, %v4518
        %v4535 = vadd.f32 %v4483, %v4519
        %v4536 = vadd.f32 %v4484, %v4520
        %v4537 = vadd.f32 %v4485, %v4521
        %v4538 = vadd.f32 %v4486, %v4522
        %v4539 = vadd.f32 %v4487, %v4523
        %v4540 = vadd.f32 %v4488, %v4524
        %v4541 = vadd.f32 %v4489, %v4525
        %v4542 = vadd.f32 %v4490, %v4526
        %v4543 = vadd.f32 %v4491, %v4527
        %v4544 = vadd.f32 %v4492, %v4528
        %v4545 = vadd.f32 %v4493, %v4529
        %v4546 = vadd.f32 %v4494, %v4530
        %v4547 = vadd.f32 %v4495, %v4531
        %v4548 = vmul.f32 %v4249, %v1582
        %v4549 = vmul.f32 %v4248, %v1586
        %v4550 = vmul.f32 %v4247, %v1590
        %v4551 = vmul.f32 %v4246, %v1594
        %v4552 = vmul.f32 %v4245, %v1598
        %v4553 = vmul.f32 %v4244, %v1602
        %v4554 = vmul.f32 %v4243, %v1606
        %v4555 = vmul.f32 %v4242, %v1610
        %v4556 = vmul.f32 %v4241, %v1614
        %v4557 = vmul.f32 %v4240, %v1618
        %v4558 = vmul.f32 %v4239, %v1622
        %v4559 = vmul.f32 %v4238, %v1626
        %v4560 = vmul.f32 %v4237, %v1630
        %v4561 = vmul.f32 %v4236, %v1634
        %v4562 = vmul.f32 %v4251, %v1638
        %v4563 = vmul.f32 %v4250, %v1642
        %v4564 = vlaneseq
        %v4565 = vshrl.u32 %v4564, 7
        %v4566 = vsub.s32 0, %v4565
        %v4567 = vrot.slane %v4082, %v4566
        %v4568 = vmul.f32 %v4548, %v4567
        %v4569 = vmul.f32 %v4549, %v4567
        %v4570 = vmul.f32 %v4550, %v4567
        %v4571 = vmul.f32 %v4551, %v4567
        %v4572 = vmul.f32 %v4552, %v4567
        %v4573 = vmul.f32 %v4553, %v4567
        %v4574 = vmul.f32 %v4554, %v4567
        %v4575 = vmul.f32 %v4555, %v4567
        %v4576 = vmul.f32 %v4556, %v4567
        %v4577 = vmul.f32 %v4557, %v4567
        %v4578 = vmul.f32 %v4558, %v4567
        %v4579 = vmul.f32 %v4559, %v4567
        %v4580 = vmul.f32 %v4560, %v4567
        %v4581 = vmul.f32 %v4561, %v4567
        %v4582 = vmul.f32 %v4562, %v4567
        %v4583 = vmul.f32 %v4563, %v4567
        %v4584 = vadd.f32 %v4532, %v4568
        %v4585 = vadd.f32 %v4533, %v4569
        %v4586 = vadd.f32 %v4534, %v4570
        %v4587 = vadd.f32 %v4535, %v4571
        %v4588 = vadd.f32 %v4536, %v4572
        %v4589 = vadd.f32 %v4537, %v4573
        %v4590 = vadd.f32 %v4538, %v4574
        %v4591 = vadd.f32 %v4539, %v4575
        %v4592 = vadd.f32 %v4540, %v4576
        %v4593 = vadd.f32 %v4541, %v4577
        %v4594 = vadd.f32 %v4542, %v4578
        %v4595 = vadd.f32 %v4543, %v4579
        %v4596 = vadd.f32 %v4544, %v4580
        %v4597 = vadd.f32 %v4545, %v4581
        %v4598 = vadd.f32 %v4546, %v4582
        %v4599 = vadd.f32 %v4547, %v4583
        %v4601 = vlaneseq
        %v4602 = vshrl.u32 %v4601, 7
        %v4603 = vsub.s32 0, %v4602
        %v4604 = vrot.slane %v4083, %v4603
        %v4606 = vadd.f32 %v4584, %v4604
        %v4607 = vadd.f32 %v4585, %v4604
        %v4608 = vadd.f32 %v4586, %v4604
        %v4609 = vadd.f32 %v4587, %v4604
        %v4610 = vadd.f32 %v4588, %v4604
        %v4611 = vadd.f32 %v4589, %v4604
        %v4612 = vadd.f32 %v4590, %v4604
        %v4613 = vadd.f32 %v4591, %v4604
        %v4614 = vadd.f32 %v4592, %v4604
        %v4615 = vadd.f32 %v4593, %v4604
        %v4616 = vadd.f32 %v4594, %v4604
        %v4617 = vadd.f32 %v4595, %v4604
        %v4618 = vadd.f32 %v4596, %v4604
        %v4619 = vadd.f32 %v4597, %v4604
        %v4620 = vadd.f32 %v4598, %v4604
        %v4621 = vadd.f32 %v4599, %v4604
        %v4622 = vadd.f32 %v4065, %v4606
        %v4623 = vadd.f32 %v4066, %v4607
        %v4624 = vadd.f32 %v4067, %v4608
        %v4625 = vadd.f32 %v4068, %v4609
        %v4626 = vadd.f32 %v4069, %v4610
        %v4627 = vadd.f32 %v4070, %v4611
        %v4628 = vadd.f32 %v4071, %v4612
        %v4629 = vadd.f32 %v4072, %v4613
        %v4630 = vadd.f32 %v4073, %v4614
        %v4631 = vadd.f32 %v4074, %v4615
        %v4632 = vadd.f32 %v4075, %v4616
        %v4633 = vadd.f32 %v4076, %v4617
        %v4634 = vadd.f32 %v4077, %v4618
        %v4635 = vadd.f32 %v4078, %v4619
        %v4636 = vadd.f32 %v4079, %v4620
        %v4637 = vadd.f32 %v4080, %v4621
        %v4638 = vpack.c.bf16 %v4623, %v4622
        %v4639 = vpack.c.bf16 %v4625, %v4624
        %v4640 = vpack.c.bf16 %v4627, %v4626
        %v4641 = vpack.c.bf16 %v4629, %v4628
        %v4642 = vpack.c.bf16 %v4631, %v4630
        %v4643 = vpack.c.bf16 %v4633, %v4632
        %v4644 = vpack.c.bf16 %v4635, %v4634
        %v4645 = vpack.c.bf16 %v4637, %v4636
        %v4646 = vld [vmem:[%s16] sm:$0xf]
        %v4647 = vld [vmem:[%s16 + $0x4] sm:$0xf]
        %v4648 = vld [vmem:[%s16 + $0x8] sm:$0xf]
        %v4649 = vld [vmem:[%s16 + $0xc] sm:$0xf]
        %v4650 = vld [vmem:[%s16 + $0x10] sm:$0xf]
        %v4651 = vld [vmem:[%s16 + $0x14] sm:$0xf]
        %v4652 = vld [vmem:[%s16 + $0x18] sm:$0xf]
        %v4653 = vld [vmem:[%s16 + $0x1c] sm:$0xf]
        %v4654 = vld [vmem:[%s16 + $0x20] sm:$0xf]
        %v4655 = vld [vmem:[%s16 + $0x24] sm:$0xf]
        %v4656 = vld [vmem:[%s16 + $0x28] sm:$0xf]
        %v4657 = vld [vmem:[%s16 + $0x2c] sm:$0xf]
        %v4658 = vld [vmem:[%s16 + $0x30] sm:$0xf]
        %v4659 = vld [vmem:[%s16 + $0x34] sm:$0xf]
        %v4660 = vld [vmem:[%s16 + $0x38] sm:$0xf]
        %v4661 = vld [vmem:[%s16 + $0x3c] sm:$0xf]
        %v4662 = vld [vmem:[%s17] sm:$0x1]
        %v4664 = vlaneseq
        %v4665 = vshrl.u32 %v4664, 7
        %v4666 = vsub.s32 0, %v4665
        %v4667 = vrot.slane %v4662, %v4666
        %v4685 = vunpack.c.l.b16 %v4646
        %v4686 = vunpack.c.l.b16 %v4647
        %v4687 = vunpack.c.l.b16 %v4648
        %v4688 = vunpack.c.l.b16 %v4649
        %v4689 = vunpack.c.l.b16 %v4650
        %v4690 = vunpack.c.l.b16 %v4651
        %v4691 = vunpack.c.l.b16 %v4652
        %v4692 = vunpack.c.l.b16 %v4653
        %v4693 = vunpack.c.l.b16 %v4654
        %v4694 = vunpack.c.l.b16 %v4655
        %v4695 = vunpack.c.l.b16 %v4656
        %v4696 = vunpack.c.l.b16 %v4657
        %v4697 = vunpack.c.l.b16 %v4658
        %v4698 = vunpack.c.l.b16 %v4659
        %v4699 = vunpack.c.l.b16 %v4660
        %v4700 = vunpack.c.l.b16 %v4661
        %v4701 = vpack.c.b16 %v4686, %v4685
        %v4702 = vpack.c.b16 %v4688, %v4687
        %v4703 = vpack.c.b16 %v4690, %v4689
        %v4704 = vpack.c.b16 %v4692, %v4691
        %v4705 = vpack.c.b16 %v4694, %v4693
        %v4706 = vpack.c.b16 %v4696, %v4695
        %v4707 = vpack.c.b16 %v4698, %v4697
        %v4708 = vpack.c.b16 %v4700, %v4699
        %4717 = vmatprep.subr.bf16.mxu0 0
        %4718 = vmatpush1.bf16.msra.mxu0 %v4701
        %4719 = vmatprep.subr.bf16.mxu0 0
        %4720 = vmatpush1.bf16.msra.mxu0 %v4702
        %4721 = vmatprep.subr.bf16.mxu0 0
        %4722 = vmatpush1.bf16.msra.mxu0 %v4703
        %4723 = vmatprep.subr.bf16.mxu0 0
        %4724 = vmatpush1.bf16.msra.mxu0 %v4704
        %4725 = vmatprep.subr.bf16.mxu0 0
        %4726 = vmatpush1.bf16.msra.mxu0 %v4705
        %4727 = vmatprep.subr.bf16.mxu0 0
        %4728 = vmatpush1.bf16.msra.mxu0 %v4706
        %4729 = vmatprep.subr.bf16.mxu0 0
        %4730 = vmatpush1.bf16.msra.mxu0 %v4707
        %4731 = vmatprep.subr.bf16.mxu0 0
        %4732 = vmatpush1.bf16.msra.mxu0 %v4708
        %4733 = vmatprep.subr.bf16.mxu0 0
        %4734 = vmatpush1.bf16.msra.mxu0 0
        %4735 = vmatprep.subr.bf16.mxu0 0
        %4736 = vmatpush1.bf16.msra.mxu0 0
        %4737 = vmatprep.subr.bf16.mxu0 0
        %4738 = vmatpush1.bf16.msra.mxu0 0
        %4739 = vmatprep.subr.bf16.mxu0 0
        %4740 = vmatpush1.bf16.msra.mxu0 0
        %4741 = vmatprep.subr.bf16.mxu0 0
        %4742 = vmatpush1.bf16.msra.mxu0 0
        %4743 = vmatprep.subr.bf16.mxu0 0
        %4744 = vmatpush1.bf16.msra.mxu0 0
        %4745 = vmatprep.subr.bf16.mxu0 0
        %4746 = vmatpush1.bf16.msra.mxu0 0
        %4747 = vmatprep.subr.bf16.mxu0 0
        %4748 = vmatpush1.bf16.msra.mxu0 0
        %4749 = vmatprep.mubr.bf16.mxu0 0
        %4750 = vmatmul.mubr.bf16.gmra.mrb[0].mxu0 %v4638
        %v4751 = vpop.f32.mrb[0].mxu0
        %v4752 = vadd.f32 %v4667, %v4751
        %v4753 = vpop.f32.mrb[0].mxu0
        %v4754 = vpop.f32.mrb[0].mxu0
        %v4755 = vadd.f32 %v4667, %v4754
        %v4756 = vpop.f32.mrb[0].mxu0
        %4757 = vmatprep.mubr.bf16.mxu0 0
        %4758 = vmatmul.mubr.bf16.gmra.mrb[0].mxu0 %v4639
        %v4759 = vpop.f32.mrb[0].mxu0
        %v4760 = vadd.f32 %v4667, %v4759
        %v4761 = vpop.f32.mrb[0].mxu0
        %v4762 = vpop.f32.mrb[0].mxu0
        %v4763 = vadd.f32 %v4667, %v4762
        %v4764 = vpop.f32.mrb[0].mxu0
        %4765 = vmatprep.mubr.bf16.mxu0 0
        %4766 = vmatmul.mubr.bf16.gmra.mrb[0].mxu0 %v4640
        %v4767 = vpop.f32.mrb[0].mxu0
        %v4768 = vadd.f32 %v4667, %v4767
        %v4769 = vpop.f32.mrb[0].mxu0
        %v4770 = vpop.f32.mrb[0].mxu0
        %v4771 = vadd.f32 %v4667, %v4770
        %v4772 = vpop.f32.mrb[0].mxu0
        %4773 = vmatprep.mubr.bf16.mxu0 0
        %4774 = vmatmul.mubr.bf16.gmra.mrb[0].mxu0 %v4641
        %v4775 = vpop.f32.mrb[0].mxu0
        %v4776 = vadd.f32 %v4667, %v4775
        %v4777 = vpop.f32.mrb[0].mxu0
        %v4778 = vpop.f32.mrb[0].mxu0
        %v4779 = vadd.f32 %v4667, %v4778
        %v4780 = vpop.f32.mrb[0].mxu0
        %4781 = vmatprep.mubr.bf16.mxu0 0
        %4782 = vmatmul.mubr.bf16.gmra.mrb[0].mxu0 %v4642
        %v4783 = vpop.f32.mrb[0].mxu0
        %v4784 = vadd.f32 %v4667, %v4783
        %v4785 = vpop.f32.mrb[0].mxu0
        %v4786 = vpop.f32.mrb[0].mxu0
        %v4787 = vadd.f32 %v4667, %v4786
        %v4788 = vpop.f32.mrb[0].mxu0
        %4789 = vmatprep.mubr.bf16.mxu0 0
        %4790 = vmatmul.mubr.bf16.gmra.mrb[0].mxu0 %v4643
        %v4791 = vpop.f32.mrb[0].mxu0
        %v4792 = vadd.f32 %v4667, %v4791
        %v4793 = vpop.f32.mrb[0].mxu0
        %v4794 = vpop.f32.mrb[0].mxu0
        %v4795 = vadd.f32 %v4667, %v4794
        %v4796 = vpop.f32.mrb[0].mxu0
        %4797 = vmatprep.mubr.bf16.mxu0 0
        %4798 = vmatmul.mubr.bf16.gmra.mrb[0].mxu0 %v4644
        %v4799 = vpop.f32.mrb[0].mxu0
        %v4800 = vadd.f32 %v4667, %v4799
        %v4801 = vpop.f32.mrb[0].mxu0
        %v4802 = vpop.f32.mrb[0].mxu0
        %v4803 = vadd.f32 %v4667, %v4802
        %v4804 = vpop.f32.mrb[0].mxu0
        %4805 = vmatprep.mubr.bf16.mxu0 0
        %4806 = vmatmul.mubr.bf16.gmra.mrb[0].mxu0 %v4645
        %v4807 = vpop.f32.mrb[0].mxu0
        %v4808 = vadd.f32 %v4667, %v4807
        %v4809 = vpop.f32.mrb[0].mxu0
        %v4810 = vpop.f32.mrb[0].mxu0
        %v4811 = vadd.f32 %v4667, %v4810
        %v4812 = vpop.f32.mrb[0].mxu0
        %4813 = vdwg.mxu0
        %v4814 = vadd.f32 %v3563, %v4752
        %v4815 = vadd.f32 %v3564, %v4755
        %v4816 = vadd.f32 %v3565, %v4760
        %v4817 = vadd.f32 %v3566, %v4763
        %v4818 = vadd.f32 %v3567, %v4768
        %v4819 = vadd.f32 %v3568, %v4771
        %v4820 = vadd.f32 %v3569, %v4776
        %v4821 = vadd.f32 %v3570, %v4779
        %v4822 = vadd.f32 %v3571, %v4784
        %v4823 = vadd.f32 %v3572, %v4787
        %v4824 = vadd.f32 %v3573, %v4792
        %v4825 = vadd.f32 %v3574, %v4795
        %v4826 = vadd.f32 %v3575, %v4800
        %v4827 = vadd.f32 %v3576, %v4803
        %v4828 = vadd.f32 %v3577, %v4808
        %v4829 = vadd.f32 %v3578, %v4811
        %4830 = vst.msk [vmem:[%s609] sm:$0xff] %vm1736, %v4814
        %4831 = vst.msk [vmem:[%s609 + $0x8] sm:$0xff] %vm1736, %v4815
        %4832 = vst.msk [vmem:[%s609 + $0x10] sm:$0xff] %vm1736, %v4816
        %4833 = vst.msk [vmem:[%s609 + $0x18] sm:$0xff] %vm1736, %v4817
        %4834 = vst.msk [vmem:[%s609 + $0x20] sm:$0xff] %vm1736, %v4818
        %4835 = vst.msk [vmem:[%s609 + $0x28] sm:$0xff] %vm1736, %v4819
        %4836 = vst.msk [vmem:[%s609 + $0x30] sm:$0xff] %vm1736, %v4820
        %4837 = vst.msk [vmem:[%s609 + $0x38] sm:$0xff] %vm1736, %v4821
        %4838 = vst.msk [vmem:[%s609 + $0x40] sm:$0xff] %vm1736, %v4822
        %4839 = vst.msk [vmem:[%s609 + $0x48] sm:$0xff] %vm1736, %v4823
        %4840 = vst.msk [vmem:[%s609 + $0x50] sm:$0xff] %vm1736, %v4824
        %4841 = vst.msk [vmem:[%s609 + $0x58] sm:$0xff] %vm1736, %v4825
        %4842 = vst.msk [vmem:[%s609 + $0x60] sm:$0xff] %vm1736, %v4826
        %4843 = vst.msk [vmem:[%s609 + $0x68] sm:$0xff] %vm1736, %v4827
        %4844 = vst.msk [vmem:[%s609 + $0x70] sm:$0xff] %vm1736, %v4828
        %4845 = vst.msk [vmem:[%s609 + $0x78] sm:$0xff] %vm1736, %v4829
        %s4846 = sand.u32 %s427, 1
        %s4847 = scalar_lea.sflag [#allocation4], %s4846
        %s4848 = sand.u32 %s427, 1
        %s4849 = smul.addr %s4848, 128
        %s4850 = scalar_lea.vmem [#allocation7], %s4849
        // Predicated region
        $region101: #{tpu_custom_call.1} parent=91 // pred_check
          %p4851 = pneg %p437
        $region102: #{tpu_custom_call.1} parent=91 // pred_check_branch
          %4853 = sbr.rel (%p4851) target = $region104
        $region103: #{tpu_custom_call.1} parent=91 // pred_region
          %s4854 = smul.u32 2, %s36
          %s4856 = ssub.s32 2048, 2048
          %4857 = vsyncadd %s4847, %s4856
          %s4858 = smul.addr %s4854, 8
          %s4859 = smul.addr %s4858, 128
          %s4860 = scalar_lea.hbm %s18, %s4859
          %s4861 = sshll.u32 %s4850, 4
          %s4862 = int_to_ptr.vmem [resolvable:$true] %s4861
          %4867 = dma.vmem_to_hbm [thread:$0]  %s4862, 2048, %s4860, %s4847, 128, 128, 8
        $region104: #{tpu_custom_call.1} parent=91 // pred_fallthru
          _
      $region92: #{tpu_custom_call.1} parent=5 // pred_fallthru
        _
      %p4868 = scmp.le.s32.totalorder 2, %s31
      // Predicated region
      $region105: #{tpu_custom_call.1} parent=5 // pred_check
        %p4869 = pneg %p4868
      $region106: #{tpu_custom_call.1} parent=5 // pred_check_branch
        %4871 = sbr.rel (%p4869) target = $region108
      $region107: #{tpu_custom_call.1} parent=5 // pred_region
        %s4872 = ssub.s32 %s31, 2
        // Predicated region
        $region109: #{tpu_custom_call.1} parent=107 // pred_check
          %p4873 = pneg %p443
        $region110: #{tpu_custom_call.1} parent=107 // pred_check_branch
          %4875 = sbr.rel (%p4873) target = $region112
        $region111: #{tpu_custom_call.1} parent=107 // pred_region
          %s4876 = sand.u32 %s428, 1
          %s4877 = scalar_lea.sflag [#allocation4], %s4876
          %s4878 = sand.u32 %s428, 1
          %s4879 = smul.addr %s4878, 128
          %s4880 = scalar_lea.vmem [#allocation7], %s4879
          %4881 = dma.done %s4877, 2048
        $region112: #{tpu_custom_call.1} parent=107 // pred_fallthru
          _
      $region108: #{tpu_custom_call.1} parent=5 // pred_fallthru
        _
    $region6: #{tpu_custom_call.1} parent=1 // loop_footer
      %s35 = sadd.s32 1, %s31
    $region7: #{tpu_custom_call.1} parent=1 // loop_footer_branch
      %30 = sbr.rel target = $region3
    $region8: #{tpu_custom_call.1} parent=1 // loop_exit
      _
    %4882 = vsyncpa [#allocation3], 1
    %s4883 = scalar_lea.sflag [#allocation3], 1
    %4884 = vsyncpa %s4883, 1
    %4885 = vsyncpa [#allocation6], 1
    %4886 = vsyncpa [#allocation4], 1
    %s4887 = scalar_lea.sflag [#allocation4], 1
    %4888 = vsyncpa %s4887, 1

</llo_original>
